<compile_context>
chip_gen: v7x
topology: tpu7x:2x2x1
jax: 0.10.0
libtpu: 0.0.40
codegen_flags: <defaults>
</compile_context>

<pallas_src>
import math

import jax
import jax.numpy as jnp
from jax.experimental import pallas as pl
from jax.experimental.pallas import tpu as pltpu

INPUT_DIM = 784
LATENT_DIM = 20
HIDDEN_DIM = 500

# lane-padded dims (multiples of 128)
INPUT_PAD = 896    # 7 * 128
HIDDEN_PAD = 512   # 4 * 128
LATENT_PAD = 128   # 1 * 128


def vae_kernel(x_ref, eps_ref,
               we_ref, be_ref,
               wml_ref, bml_ref,
               wd1_ref, bd1_ref,
               wd2_ref, bd2_ref,
               xout_ref, mu_ref, lv_ref):
    # ---- encoder: h = relu(x @ We + be) ----
    x = x_ref[...]                                                     # bf16 (tb, 896)
    h = jnp.dot(x, we_ref[...], preferred_element_type=jnp.float32)    # f32  (tb, 512)
    h = jnp.maximum(h + be_ref[...], 0.0)

    # ---- fused mean/logvar projection: one lane-dense (512, 256) matmul ----
    ml = jnp.dot(h.astype(jnp.bfloat16), wml_ref[...],
                 preferred_element_type=jnp.float32) + bml_ref[...]    # f32 (tb, 256)
    mu = ml[:, :LATENT_PAD]                                            # (tb, 128)
    lv = ml[:, LATENT_PAD:]                                            # (tb, 128)

    # ---- reparameterization (f32): z = eps * exp(0.5*logvar) + mu ----
    z = eps_ref[...] * jnp.exp(lv * 0.5) + mu

    # ---- decoder: sigmoid(relu(z @ Wd1 + bd1) @ Wd2 + bd2) ----
    h2 = jnp.dot(z.astype(jnp.bfloat16), wd1_ref[...],
                 preferred_element_type=jnp.float32) + bd1_ref[...]
    h2 = jnp.maximum(h2, 0.0)
    logits = jnp.dot(h2.astype(jnp.bfloat16), wd2_ref[...],
                     preferred_element_type=jnp.float32) + bd2_ref[...]

    xout_ref[...] = jax.nn.sigmoid(logits)
    mu_ref[...] = mu
    lv_ref[...] = lv


def init_params(key):
    """PyTorch nn.Linear-style init (U(-1/sqrt(fan_in), +)), zero-padded to lane
    multiples and stored pre-transposed (in, out). Weights bf16, biases f32."""
    def linear(k, fan_in, fan_out, pad_in, pad_out):
        k_w, k_b = jax.random.split(k)
        bound = 1.0 / math.sqrt(fan_in)
        w = jax.random.uniform(k_w, (fan_in, fan_out), jnp.float32, -bound, bound)
        b = jax.random.uniform(k_b, (1, fan_out), jnp.float32, -bound, bound)
        w = jnp.pad(w, ((0, pad_in - fan_in), (0, pad_out - fan_out))).astype(jnp.bfloat16)
        b = jnp.pad(b, ((0, 0), (0, pad_out - fan_out)))               # f32
        return w, b

    keys = jax.random.split(key, 5)
    we, be = linear(keys[0], INPUT_DIM, HIDDEN_DIM, INPUT_PAD, HIDDEN_PAD)      # fc_e
    wmu, bmu = linear(keys[1], HIDDEN_DIM, LATENT_DIM, HIDDEN_PAD, LATENT_PAD)  # fc_mean
    wlv, blv = linear(keys[2], HIDDEN_DIM, LATENT_DIM, HIDDEN_PAD, LATENT_PAD)  # fc_logvar
    # fuse mean||logvar into one lane-padded projection
    wml = jnp.concatenate([wmu, wlv], axis=1)                                   # (512, 256) bf16
    bml = jnp.concatenate([bmu, blv], axis=1)                                   # (1, 256)   f32
    wd1, bd1 = linear(keys[3], LATENT_DIM, HIDDEN_DIM, LATENT_PAD, HIDDEN_PAD)  # fc_d1
    wd2, bd2 = linear(keys[4], HIDDEN_DIM, INPUT_DIM, HIDDEN_PAD, INPUT_PAD)    # fc_d2
    return (we, be, wml, bml, wd1, bd1, wd2, bd2)


def vae_forward(x_nchw, eps, params, tile_b=None):
    B = x_nchw.shape[0]
    if tile_b is None:
        # >=128 rows per tile for real batches (MXU row occupancy); multiple of 8 always.
        tile_b = 128 if B >= 128 else max(8, ((B + 7) // 8) * 8)
    b_pad = ((B + tile_b - 1) // tile_b) * tile_b
    grid = (b_pad // tile_b,)

    # flatten + zero-pad inputs (padded latent lanes of eps MUST be zero)
    x_flat = x_nchw.reshape(B, INPUT_DIM)
    x_pad = jnp.zeros((b_pad, INPUT_PAD), jnp.bfloat16)
    x_pad = x_pad.at[:B, :INPUT_DIM].set(x_flat.astype(jnp.bfloat16))
    eps_pad = jnp.zeros((b_pad, LATENT_PAD), jnp.float32)
    eps_pad = eps_pad.at[:B, :LATENT_DIM].set(eps.astype(jnp.float32))

    we, be, wml, bml, wd1, bd1, wd2, bd2 = params

    def row_block(shape):                       # batch-tiled activations / outputs
        return pl.BlockSpec(shape, lambda i: (i, 0))

    def resident(shape):                        # weights: same block every step -> stays in VMEM
        return pl.BlockSpec(shape, lambda i: (0, 0))

    in_specs = [
        row_block((tile_b, INPUT_PAD)),             # x
        row_block((tile_b, LATENT_PAD)),            # eps
        resident((INPUT_PAD, HIDDEN_PAD)),          # we
        resident((1, HIDDEN_PAD)),                  # be
        resident((HIDDEN_PAD, 2 * LATENT_PAD)),     # wml (fused mu||logvar)
        resident((1, 2 * LATENT_PAD)),              # bml
        resident((LATENT_PAD, HIDDEN_PAD)),         # wd1
        resident((1, HIDDEN_PAD)),                  # bd1
        resident((HIDDEN_PAD, INPUT_PAD)),          # wd2
        resident((1, INPUT_PAD)),                   # bd2
    ]
    out_specs = (
        row_block((tile_b, INPUT_PAD)),
        row_block((tile_b, LATENT_PAD)),
        row_block((tile_b, LATENT_PAD)),
    )

    xout_pad, mu_pad, lv_pad = pl.pallas_call(
        vae_kernel,
        grid=grid,
        out_shape=(
            jax.ShapeDtypeStruct((b_pad, INPUT_PAD), jnp.float32),
            jax.ShapeDtypeStruct((b_pad, LATENT_PAD), jnp.float32),
            jax.ShapeDtypeStruct((b_pad, LATENT_PAD), jnp.float32),
        ),
        in_specs=in_specs,
        out_specs=out_specs,
        compiler_params=pltpu.CompilerParams(dimension_semantics=("parallel",)),
    )(x_pad, eps_pad, we, be, wml, bml, wd1, bd1, wd2, bd2)

    # slice padded lanes/rows away; back to NCHW like PyTorch's .view(-1, 1, 28, 28)
    x_out = xout_pad[:B, :INPUT_DIM].reshape(B, 1, 28, 28)
    mu = mu_pad[:B, :LATENT_DIM]
    logvar = lv_pad[:B, :LATENT_DIM]
    return x_out, mu, logvar


if __name__ == "__main__":
    key = jax.random.PRNGKey(0)
    k_param, k_x, k_eps = jax.random.split(key, 3)

    B = 8
    params = init_params(k_param)
    x_in = jax.random.uniform(k_x, (B, 1, 28, 28), jnp.float32)     # NCHW, like MNIST
    eps = jax.random.normal(k_eps, (B, LATENT_DIM), jnp.float32)    # reparam noise

    x_out, z_mu, z_logvar = vae_forward(x_in, eps, params)
    jax.block_until_ready((x_out, z_mu, z_logvar))

    assert x_out.shape == (B, 1, 28, 28)
    assert z_mu.shape == (B, LATENT_DIM)
    assert z_logvar.shape == (B, LATENT_DIM)
    assert bool(jnp.all(jnp.isfinite(x_out)))
    assert bool(jnp.all(jnp.isfinite(z_mu)))
    assert bool(jnp.all(jnp.isfinite(z_logvar)))
    assert bool(jnp.all((x_out >= 0.0) & (x_out <= 1.0)))           # sigmoid range
    print("KERNEL_OK")
</pallas_src>

<mosaic_0001>
module attributes {stable_mosaic.version = 11 : i64} {
  func.func @vae_kernel(%arg0: i32, %arg1: memref<8x896xbf16, #tpu.memory_space<vmem>>, %arg2: memref<8x128xf32, #tpu.memory_space<vmem>>, %arg3: memref<896x512xbf16, #tpu.memory_space<vmem>>, %arg4: memref<1x512xf32, #tpu.memory_space<vmem>>, %arg5: memref<512x256xbf16, #tpu.memory_space<vmem>>, %arg6: memref<1x256xf32, #tpu.memory_space<vmem>>, %arg7: memref<128x512xbf16, #tpu.memory_space<vmem>>, %arg8: memref<1x512xf32, #tpu.memory_space<vmem>>, %arg9: memref<512x896xbf16, #tpu.memory_space<vmem>>, %arg10: memref<1x896xf32, #tpu.memory_space<vmem>>, %arg11: memref<8x896xf32, #tpu.memory_space<vmem>>, %arg12: memref<8x128xf32, #tpu.memory_space<vmem>>, %arg13: memref<8x128xf32, #tpu.memory_space<vmem>>) attributes {dimension_semantics = [#tpu.dimension_semantics<parallel>], iteration_bounds = array<i64: 1>, scalar_prefetch = 0 : i64, scratch_operands = 0 : i64, tpu.core_type = #tpu.core_type<tc>, window_params = [{transform_indices = @transform_0, window_bounds = array<i64: 8, 896>}, {transform_indices = @transform_1, window_bounds = array<i64: 8, 128>}, {pipeline_mode = #tpu.pipeline_mode<synchronous>, transform_indices = @transform_2, window_bounds = array<i64: 896, 512>}, {pipeline_mode = #tpu.pipeline_mode<synchronous>, transform_indices = @transform_3, window_bounds = array<i64: 1, 512>}, {pipeline_mode = #tpu.pipeline_mode<synchronous>, transform_indices = @transform_4, window_bounds = array<i64: 512, 256>}, {pipeline_mode = #tpu.pipeline_mode<synchronous>, transform_indices = @transform_5, window_bounds = array<i64: 1, 256>}, {pipeline_mode = #tpu.pipeline_mode<synchronous>, transform_indices = @transform_6, window_bounds = array<i64: 128, 512>}, {pipeline_mode = #tpu.pipeline_mode<synchronous>, transform_indices = @transform_7, window_bounds = array<i64: 1, 512>}, {pipeline_mode = #tpu.pipeline_mode<synchronous>, transform_indices = @transform_8, window_bounds = array<i64: 512, 896>}, {pipeline_mode = #tpu.pipeline_mode<synchronous>, transform_indices = @transform_9, window_bounds = array<i64: 1, 896>}, {transform_indices = @transform_10, window_bounds = array<i64: 8, 896>}, {transform_indices = @transform_11, window_bounds = array<i64: 8, 128>}, {transform_indices = @transform_12, window_bounds = array<i64: 8, 128>}]} {
    %c0 = arith.constant 0 : index
    %c0_0 = arith.constant 0 : index
    %0 = vector.load %arg1[%c0, %c0_0] : memref<8x896xbf16, #tpu.memory_space<vmem>>, vector<8x896xbf16>
    %c0_1 = arith.constant 0 : index
    %c0_2 = arith.constant 0 : index
    %1 = vector.load %arg3[%c0_1, %c0_2] : memref<896x512xbf16, #tpu.memory_space<vmem>>, vector<896x512xbf16>
    %cst = arith.constant dense<0.000000e+00> : vector<8x512xf32>
    %2 = tpu.matmul %0, %1, %cst {dimension_numbers = #tpu.dot_dimension_numbers<[1], [0], [0], [1], [0, 0, 1, 1], [], []>} : vector<8x896xbf16>, vector<896x512xbf16>, vector<8x512xf32> -> vector<8x512xf32>
    %c0_3 = arith.constant 0 : index
    %c0_4 = arith.constant 0 : index
    %3 = vector.load %arg4[%c0_3, %c0_4] : memref<1x512xf32, #tpu.memory_space<vmem>>, vector<1x512xf32>
    %4 = vector.broadcast %3 : vector<1x512xf32> to vector<8x512xf32>
    %5 = arith.addf %2, %4 : vector<8x512xf32>
    %cst_5 = arith.constant 0.000000e+00 : f32
    %6 = vector.broadcast %cst_5 : f32 to vector<8x512xf32>
    %7 = arith.maximumf %5, %6 : vector<8x512xf32>
    %8 = arith.truncf %7 : vector<8x512xf32> to vector<8x512xbf16>
    %c0_6 = arith.constant 0 : index
    %c0_7 = arith.constant 0 : index
    %9 = vector.load %arg5[%c0_6, %c0_7] : memref<512x256xbf16, #tpu.memory_space<vmem>>, vector<512x256xbf16>
    %cst_8 = arith.constant dense<0.000000e+00> : vector<8x256xf32>
    %10 = tpu.matmul %8, %9, %cst_8 {dimension_numbers = #tpu.dot_dimension_numbers<[1], [0], [0], [1], [0, 0, 1, 1], [], []>} : vector<8x512xbf16>, vector<512x256xbf16>, vector<8x256xf32> -> vector<8x256xf32>
    %c0_9 = arith.constant 0 : index
    %c0_10 = arith.constant 0 : index
    %11 = vector.load %arg6[%c0_9, %c0_10] : memref<1x256xf32, #tpu.memory_space<vmem>>, vector<1x256xf32>
    %12 = vector.broadcast %11 : vector<1x256xf32> to vector<8x256xf32>
    %13 = arith.addf %10, %12 : vector<8x256xf32>
    %14 = vector.extract_strided_slice %13 {offsets = [0, 0], sizes = [8, 128], strides = [1, 1]} : vector<8x256xf32> to vector<8x128xf32>
    %15 = vector.extract_strided_slice %13 {offsets = [0, 128], sizes = [8, 128], strides = [1, 1]} : vector<8x256xf32> to vector<8x128xf32>
    %c0_11 = arith.constant 0 : index
    %c0_12 = arith.constant 0 : index
    %16 = vector.load %arg2[%c0_11, %c0_12] : memref<8x128xf32, #tpu.memory_space<vmem>>, vector<8x128xf32>
    %cst_13 = arith.constant 5.000000e-01 : f32
    %17 = vector.broadcast %cst_13 : f32 to vector<8x128xf32>
    %18 = arith.mulf %15, %17 : vector<8x128xf32>
    %19 = math.exp %18 : vector<8x128xf32>
    %20 = arith.mulf %16, %19 : vector<8x128xf32>
    %21 = arith.addf %20, %14 : vector<8x128xf32>
    %22 = arith.truncf %21 : vector<8x128xf32> to vector<8x128xbf16>
    %c0_14 = arith.constant 0 : index
    %c0_15 = arith.constant 0 : index
    %23 = vector.load %arg7[%c0_14, %c0_15] : memref<128x512xbf16, #tpu.memory_space<vmem>>, vector<128x512xbf16>
    %cst_16 = arith.constant dense<0.000000e+00> : vector<8x512xf32>
    %24 = tpu.matmul %22, %23, %cst_16 {dimension_numbers = #tpu.dot_dimension_numbers<[1], [0], [0], [1], [0, 0, 1, 1], [], []>} : vector<8x128xbf16>, vector<128x512xbf16>, vector<8x512xf32> -> vector<8x512xf32>
    %c0_17 = arith.constant 0 : index
    %c0_18 = arith.constant 0 : index
    %25 = vector.load %arg8[%c0_17, %c0_18] : memref<1x512xf32, #tpu.memory_space<vmem>>, vector<1x512xf32>
    %26 = vector.broadcast %25 : vector<1x512xf32> to vector<8x512xf32>
    %27 = arith.addf %24, %26 : vector<8x512xf32>
    %cst_19 = arith.constant 0.000000e+00 : f32
    %28 = vector.broadcast %cst_19 : f32 to vector<8x512xf32>
    %29 = arith.maximumf %27, %28 : vector<8x512xf32>
    %30 = arith.truncf %29 : vector<8x512xf32> to vector<8x512xbf16>
    %c0_20 = arith.constant 0 : index
    %c0_21 = arith.constant 0 : index
    %31 = vector.load %arg9[%c0_20, %c0_21] : memref<512x896xbf16, #tpu.memory_space<vmem>>, vector<512x896xbf16>
    %cst_22 = arith.constant dense<0.000000e+00> : vector<8x896xf32>
    %32 = tpu.matmul %30, %31, %cst_22 {dimension_numbers = #tpu.dot_dimension_numbers<[1], [0], [0], [1], [0, 0, 1, 1], [], []>} : vector<8x512xbf16>, vector<512x896xbf16>, vector<8x896xf32> -> vector<8x896xf32>
    %c0_23 = arith.constant 0 : index
    %c0_24 = arith.constant 0 : index
    %33 = vector.load %arg10[%c0_23, %c0_24] : memref<1x896xf32, #tpu.memory_space<vmem>>, vector<1x896xf32>
    %34 = vector.broadcast %33 : vector<1x896xf32> to vector<8x896xf32>
    %35 = arith.addf %32, %34 : vector<8x896xf32>
    %36 = arith.negf %35 : vector<8x896xf32>
    %37 = math.exp %36 : vector<8x896xf32>
    %cst_25 = arith.constant 1.000000e+00 : f32
    %38 = vector.broadcast %cst_25 : f32 to vector<8x896xf32>
    %39 = arith.addf %38, %37 : vector<8x896xf32>
    %40 = arith.divf %38, %39 : vector<8x896xf32>
    %c0_26 = arith.constant 0 : index
    %c0_27 = arith.constant 0 : index
    %41 = vector.load %arg11[%c0_26, %c0_27] : memref<8x896xf32, #tpu.memory_space<vmem>>, vector<8x896xf32>
    tpu.vector_store %arg11[%c0_26, %c0_27], %40 {strides = array<i32>} : memref<8x896xf32, #tpu.memory_space<vmem>>, vector<8x896xf32>,
    %c0_28 = arith.constant 0 : index
    %c0_29 = arith.constant 0 : index
    %42 = vector.load %arg12[%c0_28, %c0_29] : memref<8x128xf32, #tpu.memory_space<vmem>>, vector<8x128xf32>
    tpu.vector_store %arg12[%c0_28, %c0_29], %14 {strides = array<i32>} : memref<8x128xf32, #tpu.memory_space<vmem>>, vector<8x128xf32>,
    %c0_30 = arith.constant 0 : index
    %c0_31 = arith.constant 0 : index
    %43 = vector.load %arg13[%c0_30, %c0_31] : memref<8x128xf32, #tpu.memory_space<vmem>>, vector<8x128xf32>
    tpu.vector_store %arg13[%c0_30, %c0_31], %15 {strides = array<i32>} : memref<8x128xf32, #tpu.memory_space<vmem>>, vector<8x128xf32>,
    return
  }
  func.func @transform_0(%arg0: i32) -> (i32, i32) {
    %c0_i32 = arith.constant 0 : i32
    %c0_i32_0 = arith.constant 0 : i32
    return %arg0, %c0_i32 : i32, i32
  }
  func.func @transform_1(%arg0: i32) -> (i32, i32) {
    %c0_i32 = arith.constant 0 : i32
    %c0_i32_0 = arith.constant 0 : i32
    return %arg0, %c0_i32 : i32, i32
  }
  func.func @transform_2(%arg0: i32) -> (i32, i32) {
    %c0_i32 = arith.constant 0 : i32
    %c0_i32_0 = arith.constant 0 : i32
    %c0_i32_1 = arith.constant 0 : i32
    return %c0_i32, %c0_i32_0 : i32, i32
  }
  func.func @transform_3(%arg0: i32) -> (i32, i32) {
    %c0_i32 = arith.constant 0 : i32
    %c0_i32_0 = arith.constant 0 : i32
    %c0_i32_1 = arith.constant 0 : i32
    return %c0_i32, %c0_i32_0 : i32, i32
  }
  func.func @transform_4(%arg0: i32) -> (i32, i32) {
    %c0_i32 = arith.constant 0 : i32
    %c0_i32_0 = arith.constant 0 : i32
    %c0_i32_1 = arith.constant 0 : i32
    return %c0_i32, %c0_i32_0 : i32, i32
  }
  func.func @transform_5(%arg0: i32) -> (i32, i32) {
    %c0_i32 = arith.constant 0 : i32
    %c0_i32_0 = arith.constant 0 : i32
    %c0_i32_1 = arith.constant 0 : i32
    return %c0_i32, %c0_i32_0 : i32, i32
  }
  func.func @transform_6(%arg0: i32) -> (i32, i32) {
    %c0_i32 = arith.constant 0 : i32
    %c0_i32_0 = arith.constant 0 : i32
    %c0_i32_1 = arith.constant 0 : i32
    return %c0_i32, %c0_i32_0 : i32, i32
  }
  func.func @transform_7(%arg0: i32) -> (i32, i32) {
    %c0_i32 = arith.constant 0 : i32
    %c0_i32_0 = arith.constant 0 : i32
    %c0_i32_1 = arith.constant 0 : i32
    return %c0_i32, %c0_i32_0 : i32, i32
  }
  func.func @transform_8(%arg0: i32) -> (i32, i32) {
    %c0_i32 = arith.constant 0 : i32
    %c0_i32_0 = arith.constant 0 : i32
    %c0_i32_1 = arith.constant 0 : i32
    return %c0_i32, %c0_i32_0 : i32, i32
  }
  func.func @transform_9(%arg0: i32) -> (i32, i32) {
    %c0_i32 = arith.constant 0 : i32
    %c0_i32_0 = arith.constant 0 : i32
    %c0_i32_1 = arith.constant 0 : i32
    return %c0_i32, %c0_i32_0 : i32, i32
  }
  func.func @transform_10(%arg0: i32) -> (i32, i32) {
    %c0_i32 = arith.constant 0 : i32
    %c0_i32_0 = arith.constant 0 : i32
    return %arg0, %c0_i32 : i32, i32
  }
  func.func @transform_11(%arg0: i32) -> (i32, i32) {
    %c0_i32 = arith.constant 0 : i32
    %c0_i32_0 = arith.constant 0 : i32
    return %arg0, %c0_i32 : i32, i32
  }
  func.func @transform_12(%arg0: i32) -> (i32, i32) {
    %c0_i32 = arith.constant 0 : i32
    %c0_i32_0 = arith.constant 0 : i32
    return %arg0, %c0_i32 : i32, i32
  }
}

</mosaic_0001>

<llo_original>
// kernel: tpu_custom_call.1
$region0: #{tpu_custom_call.1}
  #allocation0 [shape = 'u32[]', space=smem, size = 0x4, offset = 0x4, fixed_abs, tag = 'smem constant byte address 0x4 - core index']
  #allocation1 [shape = 'u32[144,128]{1,0:T(1,128)}', space=vmem, size = 0x12000, scoped, tag = 'internal scratch']
  %s0 = inlined_call_operand.hbm [shape: bf16[8,896], index: 0, kind: input, shape index: {}]
  %s1 = inlined_call_operand.hbm [shape: f32[8,128], index: 1, kind: input, shape index: {}]
  %s2 = inlined_call_operand.hbm [shape: bf16[896,512], index: 2, kind: input, shape index: {}]
  %s3 = inlined_call_operand.vmem [shape: f32[1,512], index: 3, kind: input, shape index: {}]
  %s4 = inlined_call_operand.hbm [shape: bf16[512,256], index: 4, kind: input, shape index: {}]
  %s5 = inlined_call_operand.vmem [shape: f32[1,256], index: 5, kind: input, shape index: {}]
  %s6 = inlined_call_operand.hbm [shape: bf16[128,512], index: 6, kind: input, shape index: {}]
  %s7 = inlined_call_operand.vmem [shape: f32[1,512], index: 7, kind: input, shape index: {}]
  %s8 = inlined_call_operand.hbm [shape: bf16[512,896], index: 8, kind: input, shape index: {}]
  %s9 = inlined_call_operand.vmem [shape: f32[1,896], index: 9, kind: input, shape index: {}]
  %s10 = inlined_call_operand.hbm [shape: f32[8,896], index: 10, kind: output, shape index: {0}]
  %s11 = inlined_call_operand.hbm [shape: f32[8,128], index: 11, kind: output, shape index: {1}]
  %s12 = inlined_call_operand.hbm [shape: f32[8,128], index: 12, kind: output, shape index: {2}]
  %13 = xla_tuple %s10, %s11, %s12
  %s14 = sld [smem:[#allocation0]]
  $region90: #{tpu_custom_call.1} parent=0
    _
  %s16 = ssub.s32 1, %s14
  %s17 = scalar_select 0, %s16, %s14
  $region1: #{tpu_custom_call.1} parent=0
    #allocation2 [shape = 'u8[14336]{0}', space=vmem, size = 0x3800, scoped, tag = 'input window, operand 0, single buffered']
    #allocation3 [shape = 's32[1]{0}', space=sflag, size = 0x4, scoped, tag = 'scoped memory for tpu_custom_call.1']
    #allocation4 [shape = 's32[1]{0}', space=sflag, size = 0x4, scoped, tag = 'scoped memory for tpu_custom_call.1']
    #allocation5 [shape = 'u8[4096]{0}', space=vmem, size = 0x1000, scoped, tag = 'input window, operand 1, single buffered']
    #allocation6 [shape = 's32[1]{0}', space=sflag, size = 0x4, scoped, tag = 'scoped memory for tpu_custom_call.1']
    #allocation7 [shape = 'u8[917504]{0}', space=vmem, size = 0xe0000, scoped, tag = 'input window, operand 2, single buffered']
    #allocation8 [shape = 'u8[262144]{0}', space=vmem, size = 0x40000, scoped, tag = 'input window, operand 4, single buffered']
    #allocation9 [shape = 's32[1]{0}', space=sflag, size = 0x4, scoped, tag = 'scoped memory for tpu_custom_call.1']
    #allocation10 [shape = 'u8[131072]{0}', space=vmem, size = 0x20000, scoped, tag = 'input window, operand 6, single buffered']
    #allocation11 [shape = 'u8[917504]{0}', space=vmem, size = 0xe0000, scoped, tag = 'input window, operand 8, single buffered']
    #allocation12 [shape = 's32[1]{0}', space=sflag, size = 0x4, scoped, tag = 'scoped memory for tpu_custom_call.1']
    #allocation13 [shape = 'u8[28672]{0}', space=vmem, size = 0x7000, scoped, tag = 'output window, operand 0, single buffered']
    #allocation14 [shape = 'u8[4096]{0}', space=vmem, size = 0x1000, scoped, tag = 'output window, operand 1, single buffered']
    #allocation15 [shape = 's32[1]{0}', space=sflag, size = 0x4, scoped, tag = 'scoped memory for tpu_custom_call.1']
    #allocation16 [shape = 'u8[4096]{0}', space=vmem, size = 0x1000, scoped, tag = 'output window, operand 2, single buffered']
    %18 = vsyncpa [#allocation3], 0
    %19 = vsyncpa [#allocation6], 0
    %20 = vsyncpa [#allocation9], 0
    %21 = vsyncpa [#allocation12], 0
    %22 = vsyncpa [#allocation4], 0
    %23 = vsyncpa [#allocation15], 0
    // Predicated region
    $region2: #{tpu_custom_call.1} parent=1 // pred_check
      _
    $region3: #{tpu_custom_call.1} parent=1 // pred_check_branch
      %25 = sbr.rel (0) target = $region5
    $region4: #{tpu_custom_call.1} parent=1 // pred_region
      %s27 = ssub.s32 448, 448
      %28 = vsyncadd [#allocation3], %s27
      %s30 = sshll.u32 [#allocation2], 4
      %s31 = int_to_ptr.vmem [resolvable:$true] %s30
      %33 = dma.hbm_to_vmem [thread:$0]  %s0, 448, %s31, [#allocation3]
    $region5: #{tpu_custom_call.1} parent=1 // pred_fallthru
      _
    // Predicated region
    $region6: #{tpu_custom_call.1} parent=1 // pred_check
      _
    $region7: #{tpu_custom_call.1} parent=1 // pred_check_branch
      %35 = sbr.rel (0) target = $region9
    $region8: #{tpu_custom_call.1} parent=1 // pred_region
      %s37 = ssub.s32 128, 128
      %38 = vsyncadd [#allocation6], %s37
      %s40 = sshll.u32 [#allocation5], 4
      %s41 = int_to_ptr.vmem [resolvable:$true] %s40
      %43 = dma.hbm_to_vmem [thread:$0]  %s1, 128, %s41, [#allocation6]
    $region9: #{tpu_custom_call.1} parent=1 // pred_fallthru
      _
    // Predicated region
    $region10: #{tpu_custom_call.1} parent=1 // pred_check
      _
    $region11: #{tpu_custom_call.1} parent=1 // pred_check_branch
      %45 = sbr.rel (0) target = $region13
    $region12: #{tpu_custom_call.1} parent=1 // pred_region
      %s47 = ssub.s32 28672, 28672
      %48 = vsyncadd [#allocation6], %s47
      %s49 = sshll.u32 [#allocation7], 4
      %s50 = int_to_ptr.vmem [resolvable:$true] %s49
      %55 = dma.hbm_to_vmem [thread:$0]  %s2, 28672, %s50, [#allocation6], 256, 256, 16
    $region13: #{tpu_custom_call.1} parent=1 // pred_fallthru
      _
    // Predicated region
    $region14: #{tpu_custom_call.1} parent=1 // pred_check
      _
    $region15: #{tpu_custom_call.1} parent=1 // pred_check_branch
      %57 = sbr.rel (0) target = $region17
    $region16: #{tpu_custom_call.1} parent=1 // pred_region
      _
    $region17: #{tpu_custom_call.1} parent=1 // pred_fallthru
      _
    // Predicated region
    $region18: #{tpu_custom_call.1} parent=1 // pred_check
      _
    $region19: #{tpu_custom_call.1} parent=1 // pred_check_branch
      %59 = sbr.rel (0) target = $region21
    $region20: #{tpu_custom_call.1} parent=1 // pred_region
      %s61 = ssub.s32 8192, 8192
      %62 = vsyncadd [#allocation9], %s61
      %s63 = sshll.u32 [#allocation8], 4
      %s64 = int_to_ptr.vmem [resolvable:$true] %s63
      %69 = dma.hbm_to_vmem [thread:$0]  %s4, 8192, %s64, [#allocation9], 128, 128, 8
    $region21: #{tpu_custom_call.1} parent=1 // pred_fallthru
      _
    // Predicated region
    $region22: #{tpu_custom_call.1} parent=1 // pred_check
      _
    $region23: #{tpu_custom_call.1} parent=1 // pred_check_branch
      %71 = sbr.rel (0) target = $region25
    $region24: #{tpu_custom_call.1} parent=1 // pred_region
      _
    $region25: #{tpu_custom_call.1} parent=1 // pred_fallthru
      _
    // Predicated region
    $region26: #{tpu_custom_call.1} parent=1 // pred_check
      _
    $region27: #{tpu_custom_call.1} parent=1 // pred_check_branch
      %73 = sbr.rel (0) target = $region29
    $region28: #{tpu_custom_call.1} parent=1 // pred_region
      %s75 = ssub.s32 4096, 4096
      %76 = vsyncadd [#allocation9], %s75
      %s77 = sshll.u32 [#allocation10], 4
      %s78 = int_to_ptr.vmem [resolvable:$true] %s77
      %83 = dma.hbm_to_vmem [thread:$0]  %s6, 4096, %s78, [#allocation9], 256, 256, 16
    $region29: #{tpu_custom_call.1} parent=1 // pred_fallthru
      _
    // Predicated region
    $region30: #{tpu_custom_call.1} parent=1 // pred_check
      _
    $region31: #{tpu_custom_call.1} parent=1 // pred_check_branch
      %85 = sbr.rel (0) target = $region33
    $region32: #{tpu_custom_call.1} parent=1 // pred_region
      _
    $region33: #{tpu_custom_call.1} parent=1 // pred_fallthru
      _
    // Predicated region
    $region34: #{tpu_custom_call.1} parent=1 // pred_check
      _
    $region35: #{tpu_custom_call.1} parent=1 // pred_check_branch
      %87 = sbr.rel (0) target = $region37
    $region36: #{tpu_custom_call.1} parent=1 // pred_region
      %s89 = ssub.s32 28672, 28672
      %90 = vsyncadd [#allocation12], %s89
      %s91 = sshll.u32 [#allocation11], 4
      %s92 = int_to_ptr.vmem [resolvable:$true] %s91
      %97 = dma.hbm_to_vmem [thread:$0]  %s8, 28672, %s92, [#allocation12], 448, 448, 28
    $region37: #{tpu_custom_call.1} parent=1 // pred_fallthru
      _
    // Predicated region
    $region38: #{tpu_custom_call.1} parent=1 // pred_check
      _
    $region39: #{tpu_custom_call.1} parent=1 // pred_check_branch
      %99 = sbr.rel (0) target = $region41
    $region40: #{tpu_custom_call.1} parent=1 // pred_region
      _
    $region41: #{tpu_custom_call.1} parent=1 // pred_fallthru
      _
    // Predicated region
    $region42: #{tpu_custom_call.1} parent=1 // pred_check
      _
    $region43: #{tpu_custom_call.1} parent=1 // pred_check_branch
      %101 = sbr.rel (0) target = $region45
    $region44: #{tpu_custom_call.1} parent=1 // pred_region
      %102 = dma.done [#allocation3], 448
    $region45: #{tpu_custom_call.1} parent=1 // pred_fallthru
      _
    // Predicated region
    $region46: #{tpu_custom_call.1} parent=1 // pred_check
      _
    $region47: #{tpu_custom_call.1} parent=1 // pred_check_branch
      %104 = sbr.rel (0) target = $region49
    $region48: #{tpu_custom_call.1} parent=1 // pred_region
      %105 = dma.done [#allocation6], 128
    $region49: #{tpu_custom_call.1} parent=1 // pred_fallthru
      _
    // Predicated region
    $region50: #{tpu_custom_call.1} parent=1 // pred_check
      _
    $region51: #{tpu_custom_call.1} parent=1 // pred_check_branch
      %107 = sbr.rel (0) target = $region53
    $region52: #{tpu_custom_call.1} parent=1 // pred_region
      %108 = dma.done [#allocation6], 28672
    $region53: #{tpu_custom_call.1} parent=1 // pred_fallthru
      _
    // Predicated region
    $region54: #{tpu_custom_call.1} parent=1 // pred_check
      _
    $region55: #{tpu_custom_call.1} parent=1 // pred_check_branch
      %110 = sbr.rel (0) target = $region57
    $region56: #{tpu_custom_call.1} parent=1 // pred_region
      %111 = dma.done [#allocation9], 8192
    $region57: #{tpu_custom_call.1} parent=1 // pred_fallthru
      _
    // Predicated region
    $region58: #{tpu_custom_call.1} parent=1 // pred_check
      _
    $region59: #{tpu_custom_call.1} parent=1 // pred_check_branch
      %113 = sbr.rel (0) target = $region61
    $region60: #{tpu_custom_call.1} parent=1 // pred_region
      %114 = dma.done [#allocation9], 4096
    $region61: #{tpu_custom_call.1} parent=1 // pred_fallthru
      _
    // Predicated region
    $region62: #{tpu_custom_call.1} parent=1 // pred_check
      _
    $region63: #{tpu_custom_call.1} parent=1 // pred_check_branch
      %116 = sbr.rel (0) target = $region65
    $region64: #{tpu_custom_call.1} parent=1 // pred_region
      %117 = dma.done [#allocation12], 28672
    $region65: #{tpu_custom_call.1} parent=1 // pred_fallthru
      _
    %v119 = vld [vmem:[#allocation2] sm:$0xff]
    %v120 = vld [vmem:[#allocation2 + $0x8] sm:$0xff]
    %v121 = vld [vmem:[#allocation2 + $0x10] sm:$0xff]
    %v122 = vld [vmem:[#allocation2 + $0x18] sm:$0xf]
    %v123 = vld [vmem:[#allocation7] sm:$0xff]
    %v124 = vld [vmem:[#allocation7 + $0x8] sm:$0xff]
    %v125 = vld [vmem:[#allocation7 + $0x10] sm:$0xff]
    %v126 = vld [vmem:[#allocation7 + $0x18] sm:$0xff]
    %v127 = vld [vmem:[#allocation7 + $0x20] sm:$0xff]
    %v128 = vld [vmem:[#allocation7 + $0x28] sm:$0xff]
    %v129 = vld [vmem:[#allocation7 + $0x30] sm:$0xff]
    %v130 = vld [vmem:[#allocation7 + $0x38] sm:$0xff]
    %v131 = vld [vmem:[#allocation7 + $0x40] sm:$0xff]
    %v132 = vld [vmem:[#allocation7 + $0x48] sm:$0xff]
    %v133 = vld [vmem:[#allocation7 + $0x50] sm:$0xff]
    %v134 = vld [vmem:[#allocation7 + $0x58] sm:$0xff]
    %v135 = vld [vmem:[#allocation7 + $0x60] sm:$0xff]
    %v136 = vld [vmem:[#allocation7 + $0x68] sm:$0xff]
    %v137 = vld [vmem:[#allocation7 + $0x70] sm:$0xff]
    %v138 = vld [vmem:[#allocation7 + $0x78] sm:$0xff]
    %v139 = vld [vmem:[#allocation7 + $0x80] sm:$0xff]
    %v140 = vld [vmem:[#allocation7 + $0x88] sm:$0xff]
    %v141 = vld [vmem:[#allocation7 + $0x90] sm:$0xff]
    %v142 = vld [vmem:[#allocation7 + $0x98] sm:$0xff]
    %v143 = vld [vmem:[#allocation7 + $0xa0] sm:$0xff]
    %v144 = vld [vmem:[#allocation7 + $0xa8] sm:$0xff]
    %v145 = vld [vmem:[#allocation7 + $0xb0] sm:$0xff]
    %v146 = vld [vmem:[#allocation7 + $0xb8] sm:$0xff]
    %v147 = vld [vmem:[#allocation7 + $0xc0] sm:$0xff]
    %v148 = vld [vmem:[#allocation7 + $0xc8] sm:$0xff]
    %v149 = vld [vmem:[#allocation7 + $0xd0] sm:$0xff]
    %v150 = vld [vmem:[#allocation7 + $0xd8] sm:$0xff]
    %v151 = vld [vmem:[#allocation7 + $0xe0] sm:$0xff]
    %v152 = vld [vmem:[#allocation7 + $0xe8] sm:$0xff]
    %v153 = vld [vmem:[#allocation7 + $0xf0] sm:$0xff]
    %v154 = vld [vmem:[#allocation7 + $0xf8] sm:$0xff]
    %v155 = vld [vmem:[#allocation7 + $0x100] sm:$0xff]
    %v156 = vld [vmem:[#allocation7 + $0x108] sm:$0xff]
    %v157 = vld [vmem:[#allocation7 + $0x110] sm:$0xff]
    %v158 = vld [vmem:[#allocation7 + $0x118] sm:$0xff]
    %v159 = vld [vmem:[#allocation7 + $0x120] sm:$0xff]
    %v160 = vld [vmem:[#allocation7 + $0x128] sm:$0xff]
    %v161 = vld [vmem:[#allocation7 + $0x130] sm:$0xff]
    %v162 = vld [vmem:[#allocation7 + $0x138] sm:$0xff]
    %v163 = vld [vmem:[#allocation7 + $0x140] sm:$0xff]
    %v164 = vld [vmem:[#allocation7 + $0x148] sm:$0xff]
    %v165 = vld [vmem:[#allocation7 + $0x150] sm:$0xff]
    %v166 = vld [vmem:[#allocation7 + $0x158] sm:$0xff]
    %v167 = vld [vmem:[#allocation7 + $0x160] sm:$0xff]
    %v168 = vld [vmem:[#allocation7 + $0x168] sm:$0xff]
    %v169 = vld [vmem:[#allocation7 + $0x170] sm:$0xff]
    %v170 = vld [vmem:[#allocation7 + $0x178] sm:$0xff]
    %v171 = vld [vmem:[#allocation7 + $0x180] sm:$0xff]
    %v172 = vld [vmem:[#allocation7 + $0x188] sm:$0xff]
    %v173 = vld [vmem:[#allocation7 + $0x190] sm:$0xff]
    %v174 = vld [vmem:[#allocation7 + $0x198] sm:$0xff]
    %v175 = vld [vmem:[#allocation7 + $0x1a0] sm:$0xff]
    %v176 = vld [vmem:[#allocation7 + $0x1a8] sm:$0xff]
    %v177 = vld [vmem:[#allocation7 + $0x1b0] sm:$0xff]
    %v178 = vld [vmem:[#allocation7 + $0x1b8] sm:$0xff]
    %v179 = vld [vmem:[#allocation7 + $0x1c0] sm:$0xff]
    %v180 = vld [vmem:[#allocation7 + $0x1c8] sm:$0xff]
    %v181 = vld [vmem:[#allocation7 + $0x1d0] sm:$0xff]
    %v182 = vld [vmem:[#allocation7 + $0x1d8] sm:$0xff]
    %v183 = vld [vmem:[#allocation7 + $0x1e0] sm:$0xff]
    %v184 = vld [vmem:[#allocation7 + $0x1e8] sm:$0xff]
    %v185 = vld [vmem:[#allocation7 + $0x1f0] sm:$0xff]
    %v186 = vld [vmem:[#allocation7 + $0x1f8] sm:$0xff]
    %v187 = vld [vmem:[#allocation7 + $0x200] sm:$0xff]
    %v188 = vld [vmem:[#allocation7 + $0x208] sm:$0xff]
    %v189 = vld [vmem:[#allocation7 + $0x210] sm:$0xff]
    %v190 = vld [vmem:[#allocation7 + $0x218] sm:$0xff]
    %v191 = vld [vmem:[#allocation7 + $0x220] sm:$0xff]
    %v192 = vld [vmem:[#allocation7 + $0x228] sm:$0xff]
    %v193 = vld [vmem:[#allocation7 + $0x230] sm:$0xff]
    %v194 = vld [vmem:[#allocation7 + $0x238] sm:$0xff]
    %v195 = vld [vmem:[#allocation7 + $0x240] sm:$0xff]
    %v196 = vld [vmem:[#allocation7 + $0x248] sm:$0xff]
    %v197 = vld [vmem:[#allocation7 + $0x250] sm:$0xff]
    %v198 = vld [vmem:[#allocation7 + $0x258] sm:$0xff]
    %v199 = vld [vmem:[#allocation7 + $0x260] sm:$0xff]
    %v200 = vld [vmem:[#allocation7 + $0x268] sm:$0xff]
    %v201 = vld [vmem:[#allocation7 + $0x270] sm:$0xff]
    %v202 = vld [vmem:[#allocation7 + $0x278] sm:$0xff]
    %v203 = vld [vmem:[#allocation7 + $0x280] sm:$0xff]
    %v204 = vld [vmem:[#allocation7 + $0x288] sm:$0xff]
    %v205 = vld [vmem:[#allocation7 + $0x290] sm:$0xff]
    %v206 = vld [vmem:[#allocation7 + $0x298] sm:$0xff]
    %v207 = vld [vmem:[#allocation7 + $0x2a0] sm:$0xff]
    %v208 = vld [vmem:[#allocation7 + $0x2a8] sm:$0xff]
    %v209 = vld [vmem:[#allocation7 + $0x2b0] sm:$0xff]
    %v210 = vld [vmem:[#allocation7 + $0x2b8] sm:$0xff]
    %v211 = vld [vmem:[#allocation7 + $0x2c0] sm:$0xff]
    %v212 = vld [vmem:[#allocation7 + $0x2c8] sm:$0xff]
    %v213 = vld [vmem:[#allocation7 + $0x2d0] sm:$0xff]
    %v214 = vld [vmem:[#allocation7 + $0x2d8] sm:$0xff]
    %v215 = vld [vmem:[#allocation7 + $0x2e0] sm:$0xff]
    %v216 = vld [vmem:[#allocation7 + $0x2e8] sm:$0xff]
    %v217 = vld [vmem:[#allocation7 + $0x2f0] sm:$0xff]
    %v218 = vld [vmem:[#allocation7 + $0x2f8] sm:$0xff]
    %v219 = vld [vmem:[#allocation7 + $0x300] sm:$0xff]
    %v220 = vld [vmem:[#allocation7 + $0x308] sm:$0xff]
    %v221 = vld [vmem:[#allocation7 + $0x310] sm:$0xff]
    %v222 = vld [vmem:[#allocation7 + $0x318] sm:$0xff]
    %v223 = vld [vmem:[#allocation7 + $0x320] sm:$0xff]
    %v224 = vld [vmem:[#allocation7 + $0x328] sm:$0xff]
    %v225 = vld [vmem:[#allocation7 + $0x330] sm:$0xff]
    %v226 = vld [vmem:[#allocation7 + $0x338] sm:$0xff]
    %v227 = vld [vmem:[#allocation7 + $0x340] sm:$0xff]
    %v228 = vld [vmem:[#allocation7 + $0x348] sm:$0xff]
    %v229 = vld [vmem:[#allocation7 + $0x350] sm:$0xff]
    %v230 = vld [vmem:[#allocation7 + $0x358] sm:$0xff]
    %v231 = vld [vmem:[#allocation7 + $0x360] sm:$0xff]
    %v232 = vld [vmem:[#allocation7 + $0x368] sm:$0xff]
    %v233 = vld [vmem:[#allocation7 + $0x370] sm:$0xff]
    %v234 = vld [vmem:[#allocation7 + $0x378] sm:$0xff]
    %v235 = vld [vmem:[#allocation7 + $0x380] sm:$0xff]
    %v236 = vld [vmem:[#allocation7 + $0x388] sm:$0xff]
    %v237 = vld [vmem:[#allocation7 + $0x390] sm:$0xff]
    %v238 = vld [vmem:[#allocation7 + $0x398] sm:$0xff]
    %v239 = vld [vmem:[#allocation7 + $0x3a0] sm:$0xff]
    %v240 = vld [vmem:[#allocation7 + $0x3a8] sm:$0xff]
    %v241 = vld [vmem:[#allocation7 + $0x3b0] sm:$0xff]
    %v242 = vld [vmem:[#allocation7 + $0x3b8] sm:$0xff]
    %v243 = vld [vmem:[#allocation7 + $0x3c0] sm:$0xff]
    %v244 = vld [vmem:[#allocation7 + $0x3c8] sm:$0xff]
    %v245 = vld [vmem:[#allocation7 + $0x3d0] sm:$0xff]
    %v246 = vld [vmem:[#allocation7 + $0x3d8] sm:$0xff]
    %v247 = vld [vmem:[#allocation7 + $0x3e0] sm:$0xff]
    %v248 = vld [vmem:[#allocation7 + $0x3e8] sm:$0xff]
    %v249 = vld [vmem:[#allocation7 + $0x3f0] sm:$0xff]
    %v250 = vld [vmem:[#allocation7 + $0x3f8] sm:$0xff]
    %v251 = vld [vmem:[#allocation7 + $0x400] sm:$0xff]
    %v252 = vld [vmem:[#allocation7 + $0x408] sm:$0xff]
    %v253 = vld [vmem:[#allocation7 + $0x410] sm:$0xff]
    %v254 = vld [vmem:[#allocation7 + $0x418] sm:$0xff]
    %v255 = vld [vmem:[#allocation7 + $0x420] sm:$0xff]
    %v256 = vld [vmem:[#allocation7 + $0x428] sm:$0xff]
    %v257 = vld [vmem:[#allocation7 + $0x430] sm:$0xff]
    %v258 = vld [vmem:[#allocation7 + $0x438] sm:$0xff]
    %v259 = vld [vmem:[#allocation7 + $0x440] sm:$0xff]
    %v260 = vld [vmem:[#allocation7 + $0x448] sm:$0xff]
    %v261 = vld [vmem:[#allocation7 + $0x450] sm:$0xff]
    %v262 = vld [vmem:[#allocation7 + $0x458] sm:$0xff]
    %v263 = vld [vmem:[#allocation7 + $0x460] sm:$0xff]
    %v264 = vld [vmem:[#allocation7 + $0x468] sm:$0xff]
    %v265 = vld [vmem:[#allocation7 + $0x470] sm:$0xff]
    %v266 = vld [vmem:[#allocation7 + $0x478] sm:$0xff]
    %v267 = vld [vmem:[#allocation7 + $0x480] sm:$0xff]
    %v268 = vld [vmem:[#allocation7 + $0x488] sm:$0xff]
    %v269 = vld [vmem:[#allocation7 + $0x490] sm:$0xff]
    %v270 = vld [vmem:[#allocation7 + $0x498] sm:$0xff]
    %v271 = vld [vmem:[#allocation7 + $0x4a0] sm:$0xff]
    %v272 = vld [vmem:[#allocation7 + $0x4a8] sm:$0xff]
    %v273 = vld [vmem:[#allocation7 + $0x4b0] sm:$0xff]
    %v274 = vld [vmem:[#allocation7 + $0x4b8] sm:$0xff]
    %v275 = vld [vmem:[#allocation7 + $0x4c0] sm:$0xff]
    %v276 = vld [vmem:[#allocation7 + $0x4c8] sm:$0xff]
    %v277 = vld [vmem:[#allocation7 + $0x4d0] sm:$0xff]
    %v278 = vld [vmem:[#allocation7 + $0x4d8] sm:$0xff]
    %v279 = vld [vmem:[#allocation7 + $0x4e0] sm:$0xff]
    %v280 = vld [vmem:[#allocation7 + $0x4e8] sm:$0xff]
    %v281 = vld [vmem:[#allocation7 + $0x4f0] sm:$0xff]
    %v282 = vld [vmem:[#allocation7 + $0x4f8] sm:$0xff]
    %v283 = vld [vmem:[#allocation7 + $0x500] sm:$0xff]
    %v284 = vld [vmem:[#allocation7 + $0x508] sm:$0xff]
    %v285 = vld [vmem:[#allocation7 + $0x510] sm:$0xff]
    %v286 = vld [vmem:[#allocation7 + $0x518] sm:$0xff]
    %v287 = vld [vmem:[#allocation7 + $0x520] sm:$0xff]
    %v288 = vld [vmem:[#allocation7 + $0x528] sm:$0xff]
    %v289 = vld [vmem:[#allocation7 + $0x530] sm:$0xff]
    %v290 = vld [vmem:[#allocation7 + $0x538] sm:$0xff]
    %v291 = vld [vmem:[#allocation7 + $0x540] sm:$0xff]
    %v292 = vld [vmem:[#allocation7 + $0x548] sm:$0xff]
    %v293 = vld [vmem:[#allocation7 + $0x550] sm:$0xff]
    %v294 = vld [vmem:[#allocation7 + $0x558] sm:$0xff]
    %v295 = vld [vmem:[#allocation7 + $0x560] sm:$0xff]
    %v296 = vld [vmem:[#allocation7 + $0x568] sm:$0xff]
    %v297 = vld [vmem:[#allocation7 + $0x570] sm:$0xff]
    %v298 = vld [vmem:[#allocation7 + $0x578] sm:$0xff]
    %v299 = vld [vmem:[#allocation7 + $0x580] sm:$0xff]
    %v300 = vld [vmem:[#allocation7 + $0x588] sm:$0xff]
    %v301 = vld [vmem:[#allocation7 + $0x590] sm:$0xff]
    %v302 = vld [vmem:[#allocation7 + $0x598] sm:$0xff]
    %v303 = vld [vmem:[#allocation7 + $0x5a0] sm:$0xff]
    %v304 = vld [vmem:[#allocation7 + $0x5a8] sm:$0xff]
    %v305 = vld [vmem:[#allocation7 + $0x5b0] sm:$0xff]
    %v306 = vld [vmem:[#allocation7 + $0x5b8] sm:$0xff]
    %v307 = vld [vmem:[#allocation7 + $0x5c0] sm:$0xff]
    %v308 = vld [vmem:[#allocation7 + $0x5c8] sm:$0xff]
    %v309 = vld [vmem:[#allocation7 + $0x5d0] sm:$0xff]
    %v310 = vld [vmem:[#allocation7 + $0x5d8] sm:$0xff]
    %v311 = vld [vmem:[#allocation7 + $0x5e0] sm:$0xff]
    %v312 = vld [vmem:[#allocation7 + $0x5e8] sm:$0xff]
    %v313 = vld [vmem:[#allocation7 + $0x5f0] sm:$0xff]
    %v314 = vld [vmem:[#allocation7 + $0x5f8] sm:$0xff]
    %v315 = vld [vmem:[#allocation7 + $0x600] sm:$0xff]
    %v316 = vld [vmem:[#allocation7 + $0x608] sm:$0xff]
    %v317 = vld [vmem:[#allocation7 + $0x610] sm:$0xff]
    %v318 = vld [vmem:[#allocation7 + $0x618] sm:$0xff]
    %v319 = vld [vmem:[#allocation7 + $0x620] sm:$0xff]
    %v320 = vld [vmem:[#allocation7 + $0x628] sm:$0xff]
    %v321 = vld [vmem:[#allocation7 + $0x630] sm:$0xff]
    %v322 = vld [vmem:[#allocation7 + $0x638] sm:$0xff]
    %v323 = vld [vmem:[#allocation7 + $0x640] sm:$0xff]
    %v324 = vld [vmem:[#allocation7 + $0x648] sm:$0xff]
    %v325 = vld [vmem:[#allocation7 + $0x650] sm:$0xff]
    %v326 = vld [vmem:[#allocation7 + $0x658] sm:$0xff]
    %v327 = vld [vmem:[#allocation7 + $0x660] sm:$0xff]
    %v328 = vld [vmem:[#allocation7 + $0x668] sm:$0xff]
    %v329 = vld [vmem:[#allocation7 + $0x670] sm:$0xff]
    %v330 = vld [vmem:[#allocation7 + $0x678] sm:$0xff]
    %v331 = vld [vmem:[#allocation7 + $0x680] sm:$0xff]
    %v332 = vld [vmem:[#allocation7 + $0x688] sm:$0xff]
    %v333 = vld [vmem:[#allocation7 + $0x690] sm:$0xff]
    %v334 = vld [vmem:[#allocation7 + $0x698] sm:$0xff]
    %v335 = vld [vmem:[#allocation7 + $0x6a0] sm:$0xff]
    %v336 = vld [vmem:[#allocation7 + $0x6a8] sm:$0xff]
    %v337 = vld [vmem:[#allocation7 + $0x6b0] sm:$0xff]
    %v338 = vld [vmem:[#allocation7 + $0x6b8] sm:$0xff]
    %v339 = vld [vmem:[#allocation7 + $0x6c0] sm:$0xff]
    %v340 = vld [vmem:[#allocation7 + $0x6c8] sm:$0xff]
    %v341 = vld [vmem:[#allocation7 + $0x6d0] sm:$0xff]
    %v342 = vld [vmem:[#allocation7 + $0x6d8] sm:$0xff]
    %v343 = vld [vmem:[#allocation7 + $0x6e0] sm:$0xff]
    %v344 = vld [vmem:[#allocation7 + $0x6e8] sm:$0xff]
    %v345 = vld [vmem:[#allocation7 + $0x6f0] sm:$0xff]
    %v346 = vld [vmem:[#allocation7 + $0x6f8] sm:$0xff]
    %v347 = vld [vmem:[%s3] sm:$0xf]
    %v349 = vlaneseq
    %v350 = vshrl.u32 %v349, 7
    %v351 = vsub.s32 0, %v350
    %v352 = vrot.slane %v347, %v351
    %v353 = vlaneseq
    %v354 = vshrl.u32 %v353, 7
    %v355 = vsub.s32 1, %v354
    %v356 = vrot.slane %v347, %v355
    %v357 = vlaneseq
    %v358 = vshrl.u32 %v357, 7
    %v359 = vsub.s32 2, %v358
    %v360 = vrot.slane %v347, %v359
    %v361 = vlaneseq
    %v362 = vshrl.u32 %v361, 7
    %v363 = vsub.s32 3, %v362
    %v364 = vrot.slane %v347, %v363
    %v373 = vunpack.c.l.b16 %v119
    %v374 = vunpack.c.h.b16 %v119
    %v375 = vunpack.c.l.b16 %v120
    %v376 = vunpack.c.h.b16 %v120
    %v377 = vunpack.c.l.b16 %v121
    %v378 = vunpack.c.h.b16 %v121
    %v379 = vunpack.c.l.b16 %v122
    %v380 = vpack.c.b16 %v373, %v373
    %v381 = vpack.c.b16 %v374, %v374
    %v382 = vpack.c.b16 %v375, %v375
    %v383 = vpack.c.b16 %v376, %v376
    %v384 = vpack.c.b16 %v377, %v377
    %v385 = vpack.c.b16 %v378, %v378
    %v386 = vpack.c.b16 %v379, %v379
    %v618 = vunpack.c.l.b16 %v123
    %v619 = vunpack.c.h.b16 %v123
    %v620 = vunpack.c.l.b16 %v124
    %v621 = vunpack.c.h.b16 %v124
    %v622 = vunpack.c.l.b16 %v125
    %v623 = vunpack.c.h.b16 %v125
    %v624 = vunpack.c.l.b16 %v126
    %v625 = vunpack.c.h.b16 %v126
    %v626 = vunpack.c.l.b16 %v127
    %v627 = vunpack.c.h.b16 %v127
    %v628 = vunpack.c.l.b16 %v128
    %v629 = vunpack.c.h.b16 %v128
    %v630 = vunpack.c.l.b16 %v129
    %v631 = vunpack.c.h.b16 %v129
    %v632 = vunpack.c.l.b16 %v130
    %v633 = vunpack.c.h.b16 %v130
    %v634 = vunpack.c.l.b16 %v131
    %v635 = vunpack.c.h.b16 %v131
    %v636 = vunpack.c.l.b16 %v132
    %v637 = vunpack.c.h.b16 %v132
    %v638 = vunpack.c.l.b16 %v133
    %v639 = vunpack.c.h.b16 %v133
    %v640 = vunpack.c.l.b16 %v134
    %v641 = vunpack.c.h.b16 %v134
    %v642 = vunpack.c.l.b16 %v135
    %v643 = vunpack.c.h.b16 %v135
    %v644 = vunpack.c.l.b16 %v136
    %v645 = vunpack.c.h.b16 %v136
    %v646 = vunpack.c.l.b16 %v137
    %v647 = vunpack.c.h.b16 %v137
    %v648 = vunpack.c.l.b16 %v138
    %v649 = vunpack.c.h.b16 %v138
    %v650 = vunpack.c.l.b16 %v139
    %v651 = vunpack.c.h.b16 %v139
    %v652 = vunpack.c.l.b16 %v140
    %v653 = vunpack.c.h.b16 %v140
    %v654 = vunpack.c.l.b16 %v141
    %v655 = vunpack.c.h.b16 %v141
    %v656 = vunpack.c.l.b16 %v142
    %v657 = vunpack.c.h.b16 %v142
    %v658 = vunpack.c.l.b16 %v143
    %v659 = vunpack.c.h.b16 %v143
    %v660 = vunpack.c.l.b16 %v144
    %v661 = vunpack.c.h.b16 %v144
    %v662 = vunpack.c.l.b16 %v145
    %v663 = vunpack.c.h.b16 %v145
    %v664 = vunpack.c.l.b16 %v146
    %v665 = vunpack.c.h.b16 %v146
    %v666 = vunpack.c.l.b16 %v147
    %v667 = vunpack.c.h.b16 %v147
    %v668 = vunpack.c.l.b16 %v148
    %v669 = vunpack.c.h.b16 %v148
    %v670 = vunpack.c.l.b16 %v149
    %v671 = vunpack.c.h.b16 %v149
    %v672 = vunpack.c.l.b16 %v150
    %v673 = vunpack.c.h.b16 %v150
    %v674 = vunpack.c.l.b16 %v151
    %v675 = vunpack.c.h.b16 %v151
    %v676 = vunpack.c.l.b16 %v152
    %v677 = vunpack.c.h.b16 %v152
    %v678 = vunpack.c.l.b16 %v153
    %v679 = vunpack.c.h.b16 %v153
    %v680 = vunpack.c.l.b16 %v154
    %v681 = vunpack.c.h.b16 %v154
    %v682 = vunpack.c.l.b16 %v155
    %v683 = vunpack.c.h.b16 %v155
    %v684 = vunpack.c.l.b16 %v156
    %v685 = vunpack.c.h.b16 %v156
    %v686 = vunpack.c.l.b16 %v157
    %v687 = vunpack.c.h.b16 %v157
    %v688 = vunpack.c.l.b16 %v158
    %v689 = vunpack.c.h.b16 %v158
    %v690 = vunpack.c.l.b16 %v159
    %v691 = vunpack.c.h.b16 %v159
    %v692 = vunpack.c.l.b16 %v160
    %v693 = vunpack.c.h.b16 %v160
    %v694 = vunpack.c.l.b16 %v161
    %v695 = vunpack.c.h.b16 %v161
    %v696 = vunpack.c.l.b16 %v162
    %v697 = vunpack.c.h.b16 %v162
    %v698 = vunpack.c.l.b16 %v163
    %v699 = vunpack.c.h.b16 %v163
    %v700 = vunpack.c.l.b16 %v164
    %v701 = vunpack.c.h.b16 %v164
    %v702 = vunpack.c.l.b16 %v165
    %v703 = vunpack.c.h.b16 %v165
    %v704 = vunpack.c.l.b16 %v166
    %v705 = vunpack.c.h.b16 %v166
    %v706 = vunpack.c.l.b16 %v167
    %v707 = vunpack.c.h.b16 %v167
    %v708 = vunpack.c.l.b16 %v168
    %v709 = vunpack.c.h.b16 %v168
    %v710 = vunpack.c.l.b16 %v169
    %v711 = vunpack.c.h.b16 %v169
    %v712 = vunpack.c.l.b16 %v170
    %v713 = vunpack.c.h.b16 %v170
    %v714 = vunpack.c.l.b16 %v171
    %v715 = vunpack.c.h.b16 %v171
    %v716 = vunpack.c.l.b16 %v172
    %v717 = vunpack.c.h.b16 %v172
    %v718 = vunpack.c.l.b16 %v173
    %v719 = vunpack.c.h.b16 %v173
    %v720 = vunpack.c.l.b16 %v174
    %v721 = vunpack.c.h.b16 %v174
    %v722 = vunpack.c.l.b16 %v175
    %v723 = vunpack.c.h.b16 %v175
    %v724 = vunpack.c.l.b16 %v176
    %v725 = vunpack.c.h.b16 %v176
    %v726 = vunpack.c.l.b16 %v177
    %v727 = vunpack.c.h.b16 %v177
    %v728 = vunpack.c.l.b16 %v178
    %v729 = vunpack.c.h.b16 %v178
    %v730 = vunpack.c.l.b16 %v179
    %v731 = vunpack.c.h.b16 %v179
    %v732 = vunpack.c.l.b16 %v180
    %v733 = vunpack.c.h.b16 %v180
    %v734 = vunpack.c.l.b16 %v181
    %v735 = vunpack.c.h.b16 %v181
    %v736 = vunpack.c.l.b16 %v182
    %v737 = vunpack.c.h.b16 %v182
    %v738 = vunpack.c.l.b16 %v183
    %v739 = vunpack.c.h.b16 %v183
    %v740 = vunpack.c.l.b16 %v184
    %v741 = vunpack.c.h.b16 %v184
    %v742 = vunpack.c.l.b16 %v185
    %v743 = vunpack.c.h.b16 %v185
    %v744 = vunpack.c.l.b16 %v186
    %v745 = vunpack.c.h.b16 %v186
    %v746 = vunpack.c.l.b16 %v187
    %v747 = vunpack.c.h.b16 %v187
    %v748 = vunpack.c.l.b16 %v188
    %v749 = vunpack.c.h.b16 %v188
    %v750 = vunpack.c.l.b16 %v189
    %v751 = vunpack.c.h.b16 %v189
    %v752 = vunpack.c.l.b16 %v190
    %v753 = vunpack.c.h.b16 %v190
    %v754 = vunpack.c.l.b16 %v191
    %v755 = vunpack.c.h.b16 %v191
    %v756 = vunpack.c.l.b16 %v192
    %v757 = vunpack.c.h.b16 %v192
    %v758 = vunpack.c.l.b16 %v193
    %v759 = vunpack.c.h.b16 %v193
    %v760 = vunpack.c.l.b16 %v194
    %v761 = vunpack.c.h.b16 %v194
    %v762 = vunpack.c.l.b16 %v195
    %v763 = vunpack.c.h.b16 %v195
    %v764 = vunpack.c.l.b16 %v196
    %v765 = vunpack.c.h.b16 %v196
    %v766 = vunpack.c.l.b16 %v197
    %v767 = vunpack.c.h.b16 %v197
    %v768 = vunpack.c.l.b16 %v198
    %v769 = vunpack.c.h.b16 %v198
    %v770 = vunpack.c.l.b16 %v199
    %v771 = vunpack.c.h.b16 %v199
    %v772 = vunpack.c.l.b16 %v200
    %v773 = vunpack.c.h.b16 %v200
    %v774 = vunpack.c.l.b16 %v201
    %v775 = vunpack.c.h.b16 %v201
    %v776 = vunpack.c.l.b16 %v202
    %v777 = vunpack.c.h.b16 %v202
    %v778 = vunpack.c.l.b16 %v203
    %v779 = vunpack.c.h.b16 %v203
    %v780 = vunpack.c.l.b16 %v204
    %v781 = vunpack.c.h.b16 %v204
    %v782 = vunpack.c.l.b16 %v205
    %v783 = vunpack.c.h.b16 %v205
    %v784 = vunpack.c.l.b16 %v206
    %v785 = vunpack.c.h.b16 %v206
    %v786 = vunpack.c.l.b16 %v207
    %v787 = vunpack.c.h.b16 %v207
    %v788 = vunpack.c.l.b16 %v208
    %v789 = vunpack.c.h.b16 %v208
    %v790 = vunpack.c.l.b16 %v209
    %v791 = vunpack.c.h.b16 %v209
    %v792 = vunpack.c.l.b16 %v210
    %v793 = vunpack.c.h.b16 %v210
    %v794 = vunpack.c.l.b16 %v211
    %v795 = vunpack.c.h.b16 %v211
    %v796 = vunpack.c.l.b16 %v212
    %v797 = vunpack.c.h.b16 %v212
    %v798 = vunpack.c.l.b16 %v213
    %v799 = vunpack.c.h.b16 %v213
    %v800 = vunpack.c.l.b16 %v214
    %v801 = vunpack.c.h.b16 %v214
    %v802 = vunpack.c.l.b16 %v215
    %v803 = vunpack.c.h.b16 %v215
    %v804 = vunpack.c.l.b16 %v216
    %v805 = vunpack.c.h.b16 %v216
    %v806 = vunpack.c.l.b16 %v217
    %v807 = vunpack.c.h.b16 %v217
    %v808 = vunpack.c.l.b16 %v218
    %v809 = vunpack.c.h.b16 %v218
    %v810 = vunpack.c.l.b16 %v219
    %v811 = vunpack.c.h.b16 %v219
    %v812 = vunpack.c.l.b16 %v220
    %v813 = vunpack.c.h.b16 %v220
    %v814 = vunpack.c.l.b16 %v221
    %v815 = vunpack.c.h.b16 %v221
    %v816 = vunpack.c.l.b16 %v222
    %v817 = vunpack.c.h.b16 %v222
    %v818 = vunpack.c.l.b16 %v223
    %v819 = vunpack.c.h.b16 %v223
    %v820 = vunpack.c.l.b16 %v224
    %v821 = vunpack.c.h.b16 %v224
    %v822 = vunpack.c.l.b16 %v225
    %v823 = vunpack.c.h.b16 %v225
    %v824 = vunpack.c.l.b16 %v226
    %v825 = vunpack.c.h.b16 %v226
    %v826 = vunpack.c.l.b16 %v227
    %v827 = vunpack.c.h.b16 %v227
    %v828 = vunpack.c.l.b16 %v228
    %v829 = vunpack.c.h.b16 %v228
    %v830 = vunpack.c.l.b16 %v229
    %v831 = vunpack.c.h.b16 %v229
    %v832 = vunpack.c.l.b16 %v230
    %v833 = vunpack.c.h.b16 %v230
    %v834 = vunpack.c.l.b16 %v231
    %v835 = vunpack.c.h.b16 %v231
    %v836 = vunpack.c.l.b16 %v232
    %v837 = vunpack.c.h.b16 %v232
    %v838 = vunpack.c.l.b16 %v233
    %v839 = vunpack.c.h.b16 %v233
    %v840 = vunpack.c.l.b16 %v234
    %v841 = vunpack.c.h.b16 %v234
    %v842 = vunpack.c.l.b16 %v235
    %v843 = vunpack.c.h.b16 %v235
    %v844 = vunpack.c.l.b16 %v236
    %v845 = vunpack.c.h.b16 %v236
    %v846 = vunpack.c.l.b16 %v237
    %v847 = vunpack.c.h.b16 %v237
    %v848 = vunpack.c.l.b16 %v238
    %v849 = vunpack.c.h.b16 %v238
    %v850 = vunpack.c.l.b16 %v239
    %v851 = vunpack.c.h.b16 %v239
    %v852 = vunpack.c.l.b16 %v240
    %v853 = vunpack.c.h.b16 %v240
    %v854 = vunpack.c.l.b16 %v241
    %v855 = vunpack.c.h.b16 %v241
    %v856 = vunpack.c.l.b16 %v242
    %v857 = vunpack.c.h.b16 %v242
    %v858 = vunpack.c.l.b16 %v243
    %v859 = vunpack.c.h.b16 %v243
    %v860 = vunpack.c.l.b16 %v244
    %v861 = vunpack.c.h.b16 %v244
    %v862 = vunpack.c.l.b16 %v245
    %v863 = vunpack.c.h.b16 %v245
    %v864 = vunpack.c.l.b16 %v246
    %v865 = vunpack.c.h.b16 %v246
    %v866 = vunpack.c.l.b16 %v247
    %v867 = vunpack.c.h.b16 %v247
    %v868 = vunpack.c.l.b16 %v248
    %v869 = vunpack.c.h.b16 %v248
    %v870 = vunpack.c.l.b16 %v249
    %v871 = vunpack.c.h.b16 %v249
    %v872 = vunpack.c.l.b16 %v250
    %v873 = vunpack.c.h.b16 %v250
    %v874 = vunpack.c.l.b16 %v251
    %v875 = vunpack.c.h.b16 %v251
    %v876 = vunpack.c.l.b16 %v252
    %v877 = vunpack.c.h.b16 %v252
    %v878 = vunpack.c.l.b16 %v253
    %v879 = vunpack.c.h.b16 %v253
    %v880 = vunpack.c.l.b16 %v254
    %v881 = vunpack.c.h.b16 %v254
    %v882 = vunpack.c.l.b16 %v255
    %v883 = vunpack.c.h.b16 %v255
    %v884 = vunpack.c.l.b16 %v256
    %v885 = vunpack.c.h.b16 %v256
    %v886 = vunpack.c.l.b16 %v257
    %v887 = vunpack.c.h.b16 %v257
    %v888 = vunpack.c.l.b16 %v258
    %v889 = vunpack.c.h.b16 %v258
    %v890 = vunpack.c.l.b16 %v259
    %v891 = vunpack.c.h.b16 %v259
    %v892 = vunpack.c.l.b16 %v260
    %v893 = vunpack.c.h.b16 %v260
    %v894 = vunpack.c.l.b16 %v261
    %v895 = vunpack.c.h.b16 %v261
    %v896 = vunpack.c.l.b16 %v262
    %v897 = vunpack.c.h.b16 %v262
    %v898 = vunpack.c.l.b16 %v263
    %v899 = vunpack.c.h.b16 %v263
    %v900 = vunpack.c.l.b16 %v264
    %v901 = vunpack.c.h.b16 %v264
    %v902 = vunpack.c.l.b16 %v265
    %v903 = vunpack.c.h.b16 %v265
    %v904 = vunpack.c.l.b16 %v266
    %v905 = vunpack.c.h.b16 %v266
    %v906 = vunpack.c.l.b16 %v267
    %v907 = vunpack.c.h.b16 %v267
    %v908 = vunpack.c.l.b16 %v268
    %v909 = vunpack.c.h.b16 %v268
    %v910 = vunpack.c.l.b16 %v269
    %v911 = vunpack.c.h.b16 %v269
    %v912 = vunpack.c.l.b16 %v270
    %v913 = vunpack.c.h.b16 %v270
    %v914 = vunpack.c.l.b16 %v271
    %v915 = vunpack.c.h.b16 %v271
    %v916 = vunpack.c.l.b16 %v272
    %v917 = vunpack.c.h.b16 %v272
    %v918 = vunpack.c.l.b16 %v273
    %v919 = vunpack.c.h.b16 %v273
    %v920 = vunpack.c.l.b16 %v274
    %v921 = vunpack.c.h.b16 %v274
    %v922 = vunpack.c.l.b16 %v275
    %v923 = vunpack.c.h.b16 %v275
    %v924 = vunpack.c.l.b16 %v276
    %v925 = vunpack.c.h.b16 %v276
    %v926 = vunpack.c.l.b16 %v277
    %v927 = vunpack.c.h.b16 %v277
    %v928 = vunpack.c.l.b16 %v278
    %v929 = vunpack.c.h.b16 %v278
    %v930 = vunpack.c.l.b16 %v279
    %v931 = vunpack.c.h.b16 %v279
    %v932 = vunpack.c.l.b16 %v280
    %v933 = vunpack.c.h.b16 %v280
    %v934 = vunpack.c.l.b16 %v281
    %v935 = vunpack.c.h.b16 %v281
    %v936 = vunpack.c.l.b16 %v282
    %v937 = vunpack.c.h.b16 %v282
    %v938 = vunpack.c.l.b16 %v283
    %v939 = vunpack.c.h.b16 %v283
    %v940 = vunpack.c.l.b16 %v284
    %v941 = vunpack.c.h.b16 %v284
    %v942 = vunpack.c.l.b16 %v285
    %v943 = vunpack.c.h.b16 %v285
    %v944 = vunpack.c.l.b16 %v286
    %v945 = vunpack.c.h.b16 %v286
    %v946 = vunpack.c.l.b16 %v287
    %v947 = vunpack.c.h.b16 %v287
    %v948 = vunpack.c.l.b16 %v288
    %v949 = vunpack.c.h.b16 %v288
    %v950 = vunpack.c.l.b16 %v289
    %v951 = vunpack.c.h.b16 %v289
    %v952 = vunpack.c.l.b16 %v290
    %v953 = vunpack.c.h.b16 %v290
    %v954 = vunpack.c.l.b16 %v291
    %v955 = vunpack.c.h.b16 %v291
    %v956 = vunpack.c.l.b16 %v292
    %v957 = vunpack.c.h.b16 %v292
    %v958 = vunpack.c.l.b16 %v293
    %v959 = vunpack.c.h.b16 %v293
    %v960 = vunpack.c.l.b16 %v294
    %v961 = vunpack.c.h.b16 %v294
    %v962 = vunpack.c.l.b16 %v295
    %v963 = vunpack.c.h.b16 %v295
    %v964 = vunpack.c.l.b16 %v296
    %v965 = vunpack.c.h.b16 %v296
    %v966 = vunpack.c.l.b16 %v297
    %v967 = vunpack.c.h.b16 %v297
    %v968 = vunpack.c.l.b16 %v298
    %v969 = vunpack.c.h.b16 %v298
    %v970 = vunpack.c.l.b16 %v299
    %v971 = vunpack.c.h.b16 %v299
    %v972 = vunpack.c.l.b16 %v300
    %v973 = vunpack.c.h.b16 %v300
    %v974 = vunpack.c.l.b16 %v301
    %v975 = vunpack.c.h.b16 %v301
    %v976 = vunpack.c.l.b16 %v302
    %v977 = vunpack.c.h.b16 %v302
    %v978 = vunpack.c.l.b16 %v303
    %v979 = vunpack.c.h.b16 %v303
    %v980 = vunpack.c.l.b16 %v304
    %v981 = vunpack.c.h.b16 %v304
    %v982 = vunpack.c.l.b16 %v305
    %v983 = vunpack.c.h.b16 %v305
    %v984 = vunpack.c.l.b16 %v306
    %v985 = vunpack.c.h.b16 %v306
    %v986 = vunpack.c.l.b16 %v307
    %v987 = vunpack.c.h.b16 %v307
    %v988 = vunpack.c.l.b16 %v308
    %v989 = vunpack.c.h.b16 %v308
    %v990 = vunpack.c.l.b16 %v309
    %v991 = vunpack.c.h.b16 %v309
    %v992 = vunpack.c.l.b16 %v310
    %v993 = vunpack.c.h.b16 %v310
    %v994 = vunpack.c.l.b16 %v311
    %v995 = vunpack.c.h.b16 %v311
    %v996 = vunpack.c.l.b16 %v312
    %v997 = vunpack.c.h.b16 %v312
    %v998 = vunpack.c.l.b16 %v313
    %v999 = vunpack.c.h.b16 %v313
    %v1000 = vunpack.c.l.b16 %v314
    %v1001 = vunpack.c.h.b16 %v314
    %v1002 = vunpack.c.l.b16 %v315
    %v1003 = vunpack.c.h.b16 %v315
    %v1004 = vunpack.c.l.b16 %v316
    %v1005 = vunpack.c.h.b16 %v316
    %v1006 = vunpack.c.l.b16 %v317
    %v1007 = vunpack.c.h.b16 %v317
    %v1008 = vunpack.c.l.b16 %v318
    %v1009 = vunpack.c.h.b16 %v318
    %v1010 = vunpack.c.l.b16 %v319
    %v1011 = vunpack.c.h.b16 %v319
    %v1012 = vunpack.c.l.b16 %v320
    %v1013 = vunpack.c.h.b16 %v320
    %v1014 = vunpack.c.l.b16 %v321
    %v1015 = vunpack.c.h.b16 %v321
    %v1016 = vunpack.c.l.b16 %v322
    %v1017 = vunpack.c.h.b16 %v322
    %v1018 = vunpack.c.l.b16 %v323
    %v1019 = vunpack.c.h.b16 %v323
    %v1020 = vunpack.c.l.b16 %v324
    %v1021 = vunpack.c.h.b16 %v324
    %v1022 = vunpack.c.l.b16 %v325
    %v1023 = vunpack.c.h.b16 %v325
    %v1024 = vunpack.c.l.b16 %v326
    %v1025 = vunpack.c.h.b16 %v326
    %v1026 = vunpack.c.l.b16 %v327
    %v1027 = vunpack.c.h.b16 %v327
    %v1028 = vunpack.c.l.b16 %v328
    %v1029 = vunpack.c.h.b16 %v328
    %v1030 = vunpack.c.l.b16 %v329
    %v1031 = vunpack.c.h.b16 %v329
    %v1032 = vunpack.c.l.b16 %v330
    %v1033 = vunpack.c.h.b16 %v330
    %v1034 = vunpack.c.l.b16 %v331
    %v1035 = vunpack.c.h.b16 %v331
    %v1036 = vunpack.c.l.b16 %v332
    %v1037 = vunpack.c.h.b16 %v332
    %v1038 = vunpack.c.l.b16 %v333
    %v1039 = vunpack.c.h.b16 %v333
    %v1040 = vunpack.c.l.b16 %v334
    %v1041 = vunpack.c.h.b16 %v334
    %v1042 = vunpack.c.l.b16 %v335
    %v1043 = vunpack.c.h.b16 %v335
    %v1044 = vunpack.c.l.b16 %v336
    %v1045 = vunpack.c.h.b16 %v336
    %v1046 = vunpack.c.l.b16 %v337
    %v1047 = vunpack.c.h.b16 %v337
    %v1048 = vunpack.c.l.b16 %v338
    %v1049 = vunpack.c.h.b16 %v338
    %v1050 = vunpack.c.l.b16 %v339
    %v1051 = vunpack.c.h.b16 %v339
    %v1052 = vunpack.c.l.b16 %v340
    %v1053 = vunpack.c.h.b16 %v340
    %v1054 = vunpack.c.l.b16 %v341
    %v1055 = vunpack.c.h.b16 %v341
    %v1056 = vunpack.c.l.b16 %v342
    %v1057 = vunpack.c.h.b16 %v342
    %v1058 = vunpack.c.l.b16 %v343
    %v1059 = vunpack.c.h.b16 %v343
    %v1060 = vunpack.c.l.b16 %v344
    %v1061 = vunpack.c.h.b16 %v344
    %v1062 = vunpack.c.l.b16 %v345
    %v1063 = vunpack.c.h.b16 %v345
    %v1064 = vunpack.c.l.b16 %v346
    %v1065 = vunpack.c.h.b16 %v346
    %v1066 = vpack.c.b16 %v622, %v618
    %v1067 = vpack.c.b16 %v623, %v619
    %v1068 = vpack.c.b16 %v624, %v620
    %v1069 = vpack.c.b16 %v625, %v621
    %v1070 = vpack.c.b16 %v630, %v626
    %v1071 = vpack.c.b16 %v631, %v627
    %v1072 = vpack.c.b16 %v632, %v628
    %v1073 = vpack.c.b16 %v633, %v629
    %v1074 = vpack.c.b16 %v638, %v634
    %v1075 = vpack.c.b16 %v639, %v635
    %v1076 = vpack.c.b16 %v640, %v636
    %v1077 = vpack.c.b16 %v641, %v637
    %v1078 = vpack.c.b16 %v646, %v642
    %v1079 = vpack.c.b16 %v647, %v643
    %v1080 = vpack.c.b16 %v648, %v644
    %v1081 = vpack.c.b16 %v649, %v645
    %v1082 = vpack.c.b16 %v654, %v650
    %v1083 = vpack.c.b16 %v655, %v651
    %v1084 = vpack.c.b16 %v656, %v652
    %v1085 = vpack.c.b16 %v657, %v653
    %v1086 = vpack.c.b16 %v662, %v658
    %v1087 = vpack.c.b16 %v663, %v659
    %v1088 = vpack.c.b16 %v664, %v660
    %v1089 = vpack.c.b16 %v665, %v661
    %v1090 = vpack.c.b16 %v670, %v666
    %v1091 = vpack.c.b16 %v671, %v667
    %v1092 = vpack.c.b16 %v672, %v668
    %v1093 = vpack.c.b16 %v673, %v669
    %v1094 = vpack.c.b16 %v678, %v674
    %v1095 = vpack.c.b16 %v679, %v675
    %v1096 = vpack.c.b16 %v680, %v676
    %v1097 = vpack.c.b16 %v681, %v677
    %v1098 = vpack.c.b16 %v686, %v682
    %v1099 = vpack.c.b16 %v687, %v683
    %v1100 = vpack.c.b16 %v688, %v684
    %v1101 = vpack.c.b16 %v689, %v685
    %v1102 = vpack.c.b16 %v694, %v690
    %v1103 = vpack.c.b16 %v695, %v691
    %v1104 = vpack.c.b16 %v696, %v692
    %v1105 = vpack.c.b16 %v697, %v693
    %v1106 = vpack.c.b16 %v702, %v698
    %v1107 = vpack.c.b16 %v703, %v699
    %v1108 = vpack.c.b16 %v704, %v700
    %v1109 = vpack.c.b16 %v705, %v701
    %v1110 = vpack.c.b16 %v710, %v706
    %v1111 = vpack.c.b16 %v711, %v707
    %v1112 = vpack.c.b16 %v712, %v708
    %v1113 = vpack.c.b16 %v713, %v709
    %v1114 = vpack.c.b16 %v718, %v714
    %v1115 = vpack.c.b16 %v719, %v715
    %v1116 = vpack.c.b16 %v720, %v716
    %v1117 = vpack.c.b16 %v721, %v717
    %v1118 = vpack.c.b16 %v726, %v722
    %v1119 = vpack.c.b16 %v727, %v723
    %v1120 = vpack.c.b16 %v728, %v724
    %v1121 = vpack.c.b16 %v729, %v725
    %v1122 = vpack.c.b16 %v734, %v730
    %v1123 = vpack.c.b16 %v735, %v731
    %v1124 = vpack.c.b16 %v736, %v732
    %v1125 = vpack.c.b16 %v737, %v733
    %v1126 = vpack.c.b16 %v742, %v738
    %v1127 = vpack.c.b16 %v743, %v739
    %v1128 = vpack.c.b16 %v744, %v740
    %v1129 = vpack.c.b16 %v745, %v741
    %v1130 = vpack.c.b16 %v750, %v746
    %v1131 = vpack.c.b16 %v751, %v747
    %v1132 = vpack.c.b16 %v752, %v748
    %v1133 = vpack.c.b16 %v753, %v749
    %v1134 = vpack.c.b16 %v758, %v754
    %v1135 = vpack.c.b16 %v759, %v755
    %v1136 = vpack.c.b16 %v760, %v756
    %v1137 = vpack.c.b16 %v761, %v757
    %v1138 = vpack.c.b16 %v766, %v762
    %v1139 = vpack.c.b16 %v767, %v763
    %v1140 = vpack.c.b16 %v768, %v764
    %v1141 = vpack.c.b16 %v769, %v765
    %v1142 = vpack.c.b16 %v774, %v770
    %v1143 = vpack.c.b16 %v775, %v771
    %v1144 = vpack.c.b16 %v776, %v772
    %v1145 = vpack.c.b16 %v777, %v773
    %v1146 = vpack.c.b16 %v782, %v778
    %v1147 = vpack.c.b16 %v783, %v779
    %v1148 = vpack.c.b16 %v784, %v780
    %v1149 = vpack.c.b16 %v785, %v781
    %v1150 = vpack.c.b16 %v790, %v786
    %v1151 = vpack.c.b16 %v791, %v787
    %v1152 = vpack.c.b16 %v792, %v788
    %v1153 = vpack.c.b16 %v793, %v789
    %v1154 = vpack.c.b16 %v798, %v794
    %v1155 = vpack.c.b16 %v799, %v795
    %v1156 = vpack.c.b16 %v800, %v796
    %v1157 = vpack.c.b16 %v801, %v797
    %v1158 = vpack.c.b16 %v806, %v802
    %v1159 = vpack.c.b16 %v807, %v803
    %v1160 = vpack.c.b16 %v808, %v804
    %v1161 = vpack.c.b16 %v809, %v805
    %v1162 = vpack.c.b16 %v814, %v810
    %v1163 = vpack.c.b16 %v815, %v811
    %v1164 = vpack.c.b16 %v816, %v812
    %v1165 = vpack.c.b16 %v817, %v813
    %v1166 = vpack.c.b16 %v822, %v818
    %v1167 = vpack.c.b16 %v823, %v819
    %v1168 = vpack.c.b16 %v824, %v820
    %v1169 = vpack.c.b16 %v825, %v821
    %v1170 = vpack.c.b16 %v830, %v826
    %v1171 = vpack.c.b16 %v831, %v827
    %v1172 = vpack.c.b16 %v832, %v828
    %v1173 = vpack.c.b16 %v833, %v829
    %v1174 = vpack.c.b16 %v838, %v834
    %v1175 = vpack.c.b16 %v839, %v835
    %v1176 = vpack.c.b16 %v840, %v836
    %v1177 = vpack.c.b16 %v841, %v837
    %v1178 = vpack.c.b16 %v846, %v842
    %v1179 = vpack.c.b16 %v847, %v843
    %v1180 = vpack.c.b16 %v848, %v844
    %v1181 = vpack.c.b16 %v849, %v845
    %v1182 = vpack.c.b16 %v854, %v850
    %v1183 = vpack.c.b16 %v855, %v851
    %v1184 = vpack.c.b16 %v856, %v852
    %v1185 = vpack.c.b16 %v857, %v853
    %v1186 = vpack.c.b16 %v862, %v858
    %v1187 = vpack.c.b16 %v863, %v859
    %v1188 = vpack.c.b16 %v864, %v860
    %v1189 = vpack.c.b16 %v865, %v861
    %v1190 = vpack.c.b16 %v870, %v866
    %v1191 = vpack.c.b16 %v871, %v867
    %v1192 = vpack.c.b16 %v872, %v868
    %v1193 = vpack.c.b16 %v873, %v869
    %v1194 = vpack.c.b16 %v878, %v874
    %v1195 = vpack.c.b16 %v879, %v875
    %v1196 = vpack.c.b16 %v880, %v876
    %v1197 = vpack.c.b16 %v881, %v877
    %v1198 = vpack.c.b16 %v886, %v882
    %v1199 = vpack.c.b16 %v887, %v883
    %v1200 = vpack.c.b16 %v888, %v884
    %v1201 = vpack.c.b16 %v889, %v885
    %v1202 = vpack.c.b16 %v894, %v890
    %v1203 = vpack.c.b16 %v895, %v891
    %v1204 = vpack.c.b16 %v896, %v892
    %v1205 = vpack.c.b16 %v897, %v893
    %v1206 = vpack.c.b16 %v902, %v898
    %v1207 = vpack.c.b16 %v903, %v899
    %v1208 = vpack.c.b16 %v904, %v900
    %v1209 = vpack.c.b16 %v905, %v901
    %v1210 = vpack.c.b16 %v910, %v906
    %v1211 = vpack.c.b16 %v911, %v907
    %v1212 = vpack.c.b16 %v912, %v908
    %v1213 = vpack.c.b16 %v913, %v909
    %v1214 = vpack.c.b16 %v918, %v914
    %v1215 = vpack.c.b16 %v919, %v915
    %v1216 = vpack.c.b16 %v920, %v916
    %v1217 = vpack.c.b16 %v921, %v917
    %v1218 = vpack.c.b16 %v926, %v922
    %v1219 = vpack.c.b16 %v927, %v923
    %v1220 = vpack.c.b16 %v928, %v924
    %v1221 = vpack.c.b16 %v929, %v925
    %v1222 = vpack.c.b16 %v934, %v930
    %v1223 = vpack.c.b16 %v935, %v931
    %v1224 = vpack.c.b16 %v936, %v932
    %v1225 = vpack.c.b16 %v937, %v933
    %v1226 = vpack.c.b16 %v942, %v938
    %v1227 = vpack.c.b16 %v943, %v939
    %v1228 = vpack.c.b16 %v944, %v940
    %v1229 = vpack.c.b16 %v945, %v941
    %v1230 = vpack.c.b16 %v950, %v946
    %v1231 = vpack.c.b16 %v951, %v947
    %v1232 = vpack.c.b16 %v952, %v948
    %v1233 = vpack.c.b16 %v953, %v949
    %v1234 = vpack.c.b16 %v958, %v954
    %v1235 = vpack.c.b16 %v959, %v955
    %v1236 = vpack.c.b16 %v960, %v956
    %v1237 = vpack.c.b16 %v961, %v957
    %v1238 = vpack.c.b16 %v966, %v962
    %v1239 = vpack.c.b16 %v967, %v963
    %v1240 = vpack.c.b16 %v968, %v964
    %v1241 = vpack.c.b16 %v969, %v965
    %v1242 = vpack.c.b16 %v974, %v970
    %v1243 = vpack.c.b16 %v975, %v971
    %v1244 = vpack.c.b16 %v976, %v972
    %v1245 = vpack.c.b16 %v977, %v973
    %v1246 = vpack.c.b16 %v982, %v978
    %v1247 = vpack.c.b16 %v983, %v979
    %v1248 = vpack.c.b16 %v984, %v980
    %v1249 = vpack.c.b16 %v985, %v981
    %v1250 = vpack.c.b16 %v990, %v986
    %v1251 = vpack.c.b16 %v991, %v987
    %v1252 = vpack.c.b16 %v992, %v988
    %v1253 = vpack.c.b16 %v993, %v989
    %v1254 = vpack.c.b16 %v998, %v994
    %v1255 = vpack.c.b16 %v999, %v995
    %v1256 = vpack.c.b16 %v1000, %v996
    %v1257 = vpack.c.b16 %v1001, %v997
    %v1258 = vpack.c.b16 %v1006, %v1002
    %v1259 = vpack.c.b16 %v1007, %v1003
    %v1260 = vpack.c.b16 %v1008, %v1004
    %v1261 = vpack.c.b16 %v1009, %v1005
    %v1262 = vpack.c.b16 %v1014, %v1010
    %v1263 = vpack.c.b16 %v1015, %v1011
    %v1264 = vpack.c.b16 %v1016, %v1012
    %v1265 = vpack.c.b16 %v1017, %v1013
    %v1266 = vpack.c.b16 %v1022, %v1018
    %v1267 = vpack.c.b16 %v1023, %v1019
    %v1268 = vpack.c.b16 %v1024, %v1020
    %v1269 = vpack.c.b16 %v1025, %v1021
    %v1270 = vpack.c.b16 %v1030, %v1026
    %v1271 = vpack.c.b16 %v1031, %v1027
    %v1272 = vpack.c.b16 %v1032, %v1028
    %v1273 = vpack.c.b16 %v1033, %v1029
    %v1274 = vpack.c.b16 %v1038, %v1034
    %v1275 = vpack.c.b16 %v1039, %v1035
    %v1276 = vpack.c.b16 %v1040, %v1036
    %v1277 = vpack.c.b16 %v1041, %v1037
    %v1278 = vpack.c.b16 %v1046, %v1042
    %v1279 = vpack.c.b16 %v1047, %v1043
    %v1280 = vpack.c.b16 %v1048, %v1044
    %v1281 = vpack.c.b16 %v1049, %v1045
    %v1282 = vpack.c.b16 %v1054, %v1050
    %v1283 = vpack.c.b16 %v1055, %v1051
    %v1284 = vpack.c.b16 %v1056, %v1052
    %v1285 = vpack.c.b16 %v1057, %v1053
    %v1286 = vpack.c.b16 %v1062, %v1058
    %v1287 = vpack.c.b16 %v1063, %v1059
    %v1288 = vpack.c.b16 %v1064, %v1060
    %v1289 = vpack.c.b16 %v1065, %v1061
    %1514 = vmatprep.subr.bf16.mxu0 %v1067
    %1515 = vmatpush1.bf16.msra.mxu0 %v1066
    %1516 = vmatprep.subr.bf16.mxu0 %v1071
    %1517 = vmatpush1.bf16.msra.mxu0 %v1070
    %1518 = vmatprep.subr.bf16.mxu0 %v1075
    %1519 = vmatpush1.bf16.msra.mxu0 %v1074
    %1520 = vmatprep.subr.bf16.mxu0 %v1079
    %1521 = vmatpush1.bf16.msra.mxu0 %v1078
    %1522 = vmatprep.subr.bf16.mxu0 %v1083
    %1523 = vmatpush1.bf16.msra.mxu0 %v1082
    %1524 = vmatprep.subr.bf16.mxu0 %v1087
    %1525 = vmatpush1.bf16.msra.mxu0 %v1086
    %1526 = vmatprep.subr.bf16.mxu0 %v1091
    %1527 = vmatpush1.bf16.msra.mxu0 %v1090
    %1528 = vmatprep.subr.bf16.mxu0 %v1095
    %1529 = vmatpush1.bf16.msra.mxu0 %v1094
    %1530 = vmatprep.subr.bf16.mxu0 %v1099
    %1531 = vmatpush1.bf16.msra.mxu0 %v1098
    %1532 = vmatprep.subr.bf16.mxu0 %v1103
    %1533 = vmatpush1.bf16.msra.mxu0 %v1102
    %1534 = vmatprep.subr.bf16.mxu0 %v1107
    %1535 = vmatpush1.bf16.msra.mxu0 %v1106
    %1536 = vmatprep.subr.bf16.mxu0 %v1111
    %1537 = vmatpush1.bf16.msra.mxu0 %v1110
    %1538 = vmatprep.subr.bf16.mxu0 %v1115
    %1539 = vmatpush1.bf16.msra.mxu0 %v1114
    %1540 = vmatprep.subr.bf16.mxu0 %v1119
    %1541 = vmatpush1.bf16.msra.mxu0 %v1118
    %1542 = vmatprep.subr.bf16.mxu0 %v1123
    %1543 = vmatpush1.bf16.msra.mxu0 %v1122
    %1544 = vmatprep.subr.bf16.mxu0 %v1127
    %1545 = vmatpush1.bf16.msra.mxu0 %v1126
    %1546 = vmatprep.mubr.bf16.mxu0 %v381
    %1547 = vmatmul.mubr.bf16.gmra.mrb[0].mxu0 %v380
    %v1548 = vpop.f32.mrb[0].mxu0
    %v1549 = vadd.f32 %v352, %v1548
    %v1550 = vpop.f32.mrb[0].mxu0
    %v1551 = vadd.f32 %v356, %v1550
    %v1552 = vpop.f32.mrb[0].mxu0
    %v1553 = vpop.f32.mrb[0].mxu0
    %1554 = vdwg.mxu0
    %1555 = vmatprep.subr.bf16.mxu0 %v1131
    %1556 = vmatpush1.bf16.msra.mxu0 %v1130
    %1557 = vmatprep.subr.bf16.mxu0 %v1135
    %1558 = vmatpush1.bf16.msra.mxu0 %v1134
    %1559 = vmatprep.subr.bf16.mxu0 %v1139
    %1560 = vmatpush1.bf16.msra.mxu0 %v1138
    %1561 = vmatprep.subr.bf16.mxu0 %v1143
    %1562 = vmatpush1.bf16.msra.mxu0 %v1142
    %1563 = vmatprep.subr.bf16.mxu0 %v1147
    %1564 = vmatpush1.bf16.msra.mxu0 %v1146
    %1565 = vmatprep.subr.bf16.mxu0 %v1151
    %1566 = vmatpush1.bf16.msra.mxu0 %v1150
    %1567 = vmatprep.subr.bf16.mxu0 %v1155
    %1568 = vmatpush1.bf16.msra.mxu0 %v1154
    %1569 = vmatprep.subr.bf16.mxu0 %v1159
    %1570 = vmatpush1.bf16.msra.mxu0 %v1158
    %1571 = vmatprep.subr.bf16.mxu0 %v1163
    %1572 = vmatpush1.bf16.msra.mxu0 %v1162
    %1573 = vmatprep.subr.bf16.mxu0 %v1167
    %1574 = vmatpush1.bf16.msra.mxu0 %v1166
    %1575 = vmatprep.subr.bf16.mxu0 %v1171
    %1576 = vmatpush1.bf16.msra.mxu0 %v1170
    %1577 = vmatprep.subr.bf16.mxu0 %v1175
    %1578 = vmatpush1.bf16.msra.mxu0 %v1174
    %1579 = vmatprep.subr.bf16.mxu0 %v1179
    %1580 = vmatpush1.bf16.msra.mxu0 %v1178
    %1581 = vmatprep.subr.bf16.mxu0 %v1183
    %1582 = vmatpush1.bf16.msra.mxu0 %v1182
    %1583 = vmatprep.subr.bf16.mxu0 %v1187
    %1584 = vmatpush1.bf16.msra.mxu0 %v1186
    %1585 = vmatprep.subr.bf16.mxu0 %v1191
    %1586 = vmatpush1.bf16.msra.mxu0 %v1190
    %1587 = vmatprep.mubr.bf16.mxu0 %v383
    %1588 = vmatmul.mubr.bf16.gmra.mrb[0].mxu0 %v382
    %v1589 = vpop.f32.mrb[0].mxu0
    %v1590 = vadd.f32 %v1549, %v1589
    %v1591 = vpop.f32.mrb[0].mxu0
    %v1592 = vadd.f32 %v1551, %v1591
    %v1593 = vpop.f32.mrb[0].mxu0
    %v1594 = vpop.f32.mrb[0].mxu0
    %1595 = vdwg.mxu0
    %1596 = vmatprep.subr.bf16.mxu0 %v1195
    %1597 = vmatpush1.bf16.msra.mxu0 %v1194
    %1598 = vmatprep.subr.bf16.mxu0 %v1199
    %1599 = vmatpush1.bf16.msra.mxu0 %v1198
    %1600 = vmatprep.subr.bf16.mxu0 %v1203
    %1601 = vmatpush1.bf16.msra.mxu0 %v1202
    %1602 = vmatprep.subr.bf16.mxu0 %v1207
    %1603 = vmatpush1.bf16.msra.mxu0 %v1206
    %1604 = vmatprep.subr.bf16.mxu0 %v1211
    %1605 = vmatpush1.bf16.msra.mxu0 %v1210
    %1606 = vmatprep.subr.bf16.mxu0 %v1215
    %1607 = vmatpush1.bf16.msra.mxu0 %v1214
    %1608 = vmatprep.subr.bf16.mxu0 %v1219
    %1609 = vmatpush1.bf16.msra.mxu0 %v1218
    %1610 = vmatprep.subr.bf16.mxu0 %v1223
    %1611 = vmatpush1.bf16.msra.mxu0 %v1222
    %1612 = vmatprep.subr.bf16.mxu0 %v1227
    %1613 = vmatpush1.bf16.msra.mxu0 %v1226
    %1614 = vmatprep.subr.bf16.mxu0 %v1231
    %1615 = vmatpush1.bf16.msra.mxu0 %v1230
    %1616 = vmatprep.subr.bf16.mxu0 %v1235
    %1617 = vmatpush1.bf16.msra.mxu0 %v1234
    %1618 = vmatprep.subr.bf16.mxu0 %v1239
    %1619 = vmatpush1.bf16.msra.mxu0 %v1238
    %1620 = vmatprep.subr.bf16.mxu0 %v1243
    %1621 = vmatpush1.bf16.msra.mxu0 %v1242
    %1622 = vmatprep.subr.bf16.mxu0 %v1247
    %1623 = vmatpush1.bf16.msra.mxu0 %v1246
    %1624 = vmatprep.subr.bf16.mxu0 %v1251
    %1625 = vmatpush1.bf16.msra.mxu0 %v1250
    %1626 = vmatprep.subr.bf16.mxu0 %v1255
    %1627 = vmatpush1.bf16.msra.mxu0 %v1254
    %1628 = vmatprep.mubr.bf16.mxu0 %v385
    %1629 = vmatmul.mubr.bf16.gmra.mrb[0].mxu0 %v384
    %v1630 = vpop.f32.mrb[0].mxu0
    %v1631 = vadd.f32 %v1590, %v1630
    %v1632 = vpop.f32.mrb[0].mxu0
    %v1633 = vadd.f32 %v1592, %v1632
    %v1634 = vpop.f32.mrb[0].mxu0
    %v1635 = vpop.f32.mrb[0].mxu0
    %1636 = vdwg.mxu0
    %1637 = vmatprep.subr.bf16.mxu0 %v1259
    %1638 = vmatpush1.bf16.msra.mxu0 %v1258
    %1639 = vmatprep.subr.bf16.mxu0 %v1263
    %1640 = vmatpush1.bf16.msra.mxu0 %v1262
    %1641 = vmatprep.subr.bf16.mxu0 %v1267
    %1642 = vmatpush1.bf16.msra.mxu0 %v1266
    %1643 = vmatprep.subr.bf16.mxu0 %v1271
    %1644 = vmatpush1.bf16.msra.mxu0 %v1270
    %1645 = vmatprep.subr.bf16.mxu0 %v1275
    %1646 = vmatpush1.bf16.msra.mxu0 %v1274
    %1647 = vmatprep.subr.bf16.mxu0 %v1279
    %1648 = vmatpush1.bf16.msra.mxu0 %v1278
    %1649 = vmatprep.subr.bf16.mxu0 %v1283
    %1650 = vmatpush1.bf16.msra.mxu0 %v1282
    %1651 = vmatprep.subr.bf16.mxu0 %v1287
    %1652 = vmatpush1.bf16.msra.mxu0 %v1286
    %1653 = vmatprep.subr.bf16.mxu0 0
    %1654 = vmatpush1.bf16.msra.mxu0 0
    %1655 = vmatprep.subr.bf16.mxu0 0
    %1656 = vmatpush1.bf16.msra.mxu0 0
    %1657 = vmatprep.subr.bf16.mxu0 0
    %1658 = vmatpush1.bf16.msra.mxu0 0
    %1659 = vmatprep.subr.bf16.mxu0 0
    %1660 = vmatpush1.bf16.msra.mxu0 0
    %1661 = vmatprep.subr.bf16.mxu0 0
    %1662 = vmatpush1.bf16.msra.mxu0 0
    %1663 = vmatprep.subr.bf16.mxu0 0
    %1664 = vmatpush1.bf16.msra.mxu0 0
    %1665 = vmatprep.subr.bf16.mxu0 0
    %1666 = vmatpush1.bf16.msra.mxu0 0
    %1667 = vmatprep.subr.bf16.mxu0 0
    %1668 = vmatpush1.bf16.msra.mxu0 0
    %1669 = vmatprep.mubr.bf16.mxu0 0
    %1670 = vmatmul.mubr.bf16.gmra.mrb[0].mxu0 %v386
    %v1671 = vpop.f32.mrb[0].mxu0
    %v1672 = vadd.f32 %v1631, %v1671
    %v1673 = vpop.f32.mrb[0].mxu0
    %v1674 = vadd.f32 %v1633, %v1673
    %v1675 = vpop.f32.mrb[0].mxu0
    %v1676 = vpop.f32.mrb[0].mxu0
    %1677 = vdwg.mxu0
    %1678 = vmatprep.subr.bf16.mxu0 %v1069
    %1679 = vmatpush1.bf16.msra.mxu0 %v1068
    %1680 = vmatprep.subr.bf16.mxu0 %v1073
    %1681 = vmatpush1.bf16.msra.mxu0 %v1072
    %1682 = vmatprep.subr.bf16.mxu0 %v1077
    %1683 = vmatpush1.bf16.msra.mxu0 %v1076
    %1684 = vmatprep.subr.bf16.mxu0 %v1081
    %1685 = vmatpush1.bf16.msra.mxu0 %v1080
    %1686 = vmatprep.subr.bf16.mxu0 %v1085
    %1687 = vmatpush1.bf16.msra.mxu0 %v1084
    %1688 = vmatprep.subr.bf16.mxu0 %v1089
    %1689 = vmatpush1.bf16.msra.mxu0 %v1088
    %1690 = vmatprep.subr.bf16.mxu0 %v1093
    %1691 = vmatpush1.bf16.msra.mxu0 %v1092
    %1692 = vmatprep.subr.bf16.mxu0 %v1097
    %1693 = vmatpush1.bf16.msra.mxu0 %v1096
    %1694 = vmatprep.subr.bf16.mxu0 %v1101
    %1695 = vmatpush1.bf16.msra.mxu0 %v1100
    %1696 = vmatprep.subr.bf16.mxu0 %v1105
    %1697 = vmatpush1.bf16.msra.mxu0 %v1104
    %1698 = vmatprep.subr.bf16.mxu0 %v1109
    %1699 = vmatpush1.bf16.msra.mxu0 %v1108
    %1700 = vmatprep.subr.bf16.mxu0 %v1113
    %1701 = vmatpush1.bf16.msra.mxu0 %v1112
    %1702 = vmatprep.subr.bf16.mxu0 %v1117
    %1703 = vmatpush1.bf16.msra.mxu0 %v1116
    %1704 = vmatprep.subr.bf16.mxu0 %v1121
    %1705 = vmatpush1.bf16.msra.mxu0 %v1120
    %1706 = vmatprep.subr.bf16.mxu0 %v1125
    %1707 = vmatpush1.bf16.msra.mxu0 %v1124
    %1708 = vmatprep.subr.bf16.mxu0 %v1129
    %1709 = vmatpush1.bf16.msra.mxu0 %v1128
    %1710 = vmatprep.mubr.bf16.mxu0 %v381
    %1711 = vmatmul.mubr.bf16.gmra.mrb[0].mxu0 %v380
    %v1712 = vpop.f32.mrb[0].mxu0
    %v1713 = vadd.f32 %v360, %v1712
    %v1714 = vpop.f32.mrb[0].mxu0
    %v1715 = vadd.f32 %v364, %v1714
    %v1716 = vpop.f32.mrb[0].mxu0
    %v1717 = vpop.f32.mrb[0].mxu0
    %1718 = vdwg.mxu0
    %1719 = vmatprep.subr.bf16.mxu0 %v1133
    %1720 = vmatpush1.bf16.msra.mxu0 %v1132
    %1721 = vmatprep.subr.bf16.mxu0 %v1137
    %1722 = vmatpush1.bf16.msra.mxu0 %v1136
    %1723 = vmatprep.subr.bf16.mxu0 %v1141
    %1724 = vmatpush1.bf16.msra.mxu0 %v1140
    %1725 = vmatprep.subr.bf16.mxu0 %v1145
    %1726 = vmatpush1.bf16.msra.mxu0 %v1144
    %1727 = vmatprep.subr.bf16.mxu0 %v1149
    %1728 = vmatpush1.bf16.msra.mxu0 %v1148
    %1729 = vmatprep.subr.bf16.mxu0 %v1153
    %1730 = vmatpush1.bf16.msra.mxu0 %v1152
    %1731 = vmatprep.subr.bf16.mxu0 %v1157
    %1732 = vmatpush1.bf16.msra.mxu0 %v1156
    %1733 = vmatprep.subr.bf16.mxu0 %v1161
    %1734 = vmatpush1.bf16.msra.mxu0 %v1160
    %1735 = vmatprep.subr.bf16.mxu0 %v1165
    %1736 = vmatpush1.bf16.msra.mxu0 %v1164
    %1737 = vmatprep.subr.bf16.mxu0 %v1169
    %1738 = vmatpush1.bf16.msra.mxu0 %v1168
    %1739 = vmatprep.subr.bf16.mxu0 %v1173
    %1740 = vmatpush1.bf16.msra.mxu0 %v1172
    %1741 = vmatprep.subr.bf16.mxu0 %v1177
    %1742 = vmatpush1.bf16.msra.mxu0 %v1176
    %1743 = vmatprep.subr.bf16.mxu0 %v1181
    %1744 = vmatpush1.bf16.msra.mxu0 %v1180
    %1745 = vmatprep.subr.bf16.mxu0 %v1185
    %1746 = vmatpush1.bf16.msra.mxu0 %v1184
    %1747 = vmatprep.subr.bf16.mxu0 %v1189
    %1748 = vmatpush1.bf16.msra.mxu0 %v1188
    %1749 = vmatprep.subr.bf16.mxu0 %v1193
    %1750 = vmatpush1.bf16.msra.mxu0 %v1192
    %1751 = vmatprep.mubr.bf16.mxu0 %v383
    %1752 = vmatmul.mubr.bf16.gmra.mrb[0].mxu0 %v382
    %v1753 = vpop.f32.mrb[0].mxu0
    %v1754 = vadd.f32 %v1713, %v1753
    %v1755 = vpop.f32.mrb[0].mxu0
    %v1756 = vadd.f32 %v1715, %v1755
    %v1757 = vpop.f32.mrb[0].mxu0
    %v1758 = vpop.f32.mrb[0].mxu0
    %1759 = vdwg.mxu0
    %1760 = vmatprep.subr.bf16.mxu0 %v1197
    %1761 = vmatpush1.bf16.msra.mxu0 %v1196
    %1762 = vmatprep.subr.bf16.mxu0 %v1201
    %1763 = vmatpush1.bf16.msra.mxu0 %v1200
    %1764 = vmatprep.subr.bf16.mxu0 %v1205
    %1765 = vmatpush1.bf16.msra.mxu0 %v1204
    %1766 = vmatprep.subr.bf16.mxu0 %v1209
    %1767 = vmatpush1.bf16.msra.mxu0 %v1208
    %1768 = vmatprep.subr.bf16.mxu0 %v1213
    %1769 = vmatpush1.bf16.msra.mxu0 %v1212
    %1770 = vmatprep.subr.bf16.mxu0 %v1217
    %1771 = vmatpush1.bf16.msra.mxu0 %v1216
    %1772 = vmatprep.subr.bf16.mxu0 %v1221
    %1773 = vmatpush1.bf16.msra.mxu0 %v1220
    %1774 = vmatprep.subr.bf16.mxu0 %v1225
    %1775 = vmatpush1.bf16.msra.mxu0 %v1224
    %1776 = vmatprep.subr.bf16.mxu0 %v1229
    %1777 = vmatpush1.bf16.msra.mxu0 %v1228
    %1778 = vmatprep.subr.bf16.mxu0 %v1233
    %1779 = vmatpush1.bf16.msra.mxu0 %v1232
    %1780 = vmatprep.subr.bf16.mxu0 %v1237
    %1781 = vmatpush1.bf16.msra.mxu0 %v1236
    %1782 = vmatprep.subr.bf16.mxu0 %v1241
    %1783 = vmatpush1.bf16.msra.mxu0 %v1240
    %1784 = vmatprep.subr.bf16.mxu0 %v1245
    %1785 = vmatpush1.bf16.msra.mxu0 %v1244
    %1786 = vmatprep.subr.bf16.mxu0 %v1249
    %1787 = vmatpush1.bf16.msra.mxu0 %v1248
    %1788 = vmatprep.subr.bf16.mxu0 %v1253
    %1789 = vmatpush1.bf16.msra.mxu0 %v1252
    %1790 = vmatprep.subr.bf16.mxu0 %v1257
    %1791 = vmatpush1.bf16.msra.mxu0 %v1256
    %1792 = vmatprep.mubr.bf16.mxu0 %v385
    %1793 = vmatmul.mubr.bf16.gmra.mrb[0].mxu0 %v384
    %v1794 = vpop.f32.mrb[0].mxu0
    %v1795 = vadd.f32 %v1754, %v1794
    %v1796 = vpop.f32.mrb[0].mxu0
    %v1797 = vadd.f32 %v1756, %v1796
    %v1798 = vpop.f32.mrb[0].mxu0
    %v1799 = vpop.f32.mrb[0].mxu0
    %1800 = vdwg.mxu0
    %1801 = vmatprep.subr.bf16.mxu0 %v1261
    %1802 = vmatpush1.bf16.msra.mxu0 %v1260
    %1803 = vmatprep.subr.bf16.mxu0 %v1265
    %1804 = vmatpush1.bf16.msra.mxu0 %v1264
    %1805 = vmatprep.subr.bf16.mxu0 %v1269
    %1806 = vmatpush1.bf16.msra.mxu0 %v1268
    %1807 = vmatprep.subr.bf16.mxu0 %v1273
    %1808 = vmatpush1.bf16.msra.mxu0 %v1272
    %1809 = vmatprep.subr.bf16.mxu0 %v1277
    %1810 = vmatpush1.bf16.msra.mxu0 %v1276
    %1811 = vmatprep.subr.bf16.mxu0 %v1281
    %1812 = vmatpush1.bf16.msra.mxu0 %v1280
    %1813 = vmatprep.subr.bf16.mxu0 %v1285
    %1814 = vmatpush1.bf16.msra.mxu0 %v1284
    %1815 = vmatprep.subr.bf16.mxu0 %v1289
    %1816 = vmatpush1.bf16.msra.mxu0 %v1288
    %1817 = vmatprep.subr.bf16.mxu0 0
    %1818 = vmatpush1.bf16.msra.mxu0 0
    %1819 = vmatprep.subr.bf16.mxu0 0
    %1820 = vmatpush1.bf16.msra.mxu0 0
    %1821 = vmatprep.subr.bf16.mxu0 0
    %1822 = vmatpush1.bf16.msra.mxu0 0
    %1823 = vmatprep.subr.bf16.mxu0 0
    %1824 = vmatpush1.bf16.msra.mxu0 0
    %1825 = vmatprep.subr.bf16.mxu0 0
    %1826 = vmatpush1.bf16.msra.mxu0 0
    %1827 = vmatprep.subr.bf16.mxu0 0
    %1828 = vmatpush1.bf16.msra.mxu0 0
    %1829 = vmatprep.subr.bf16.mxu0 0
    %1830 = vmatpush1.bf16.msra.mxu0 0
    %1831 = vmatprep.subr.bf16.mxu0 0
    %1832 = vmatpush1.bf16.msra.mxu0 0
    %1833 = vmatprep.mubr.bf16.mxu0 0
    %1834 = vmatmul.mubr.bf16.gmra.mrb[0].mxu0 %v386
    %v1835 = vpop.f32.mrb[0].mxu0
    %v1836 = vadd.f32 %v1795, %v1835
    %v1837 = vpop.f32.mrb[0].mxu0
    %v1838 = vadd.f32 %v1797, %v1837
    %v1839 = vpop.f32.mrb[0].mxu0
    %v1840 = vpop.f32.mrb[0].mxu0
    %1841 = vdwg.mxu0
    %v1842 = vmax.f32 %v1672, 0.0
    %v1843 = vmax.f32 %v1674, 0.0
    %v1844 = vmax.f32 %v1836, 0.0
    %v1845 = vmax.f32 %v1838, 0.0
    %v1846 = vpack.c.bf16 %v1842, %v1842
    %v1847 = vpack.c.bf16 %v1843, %v1843
    %v1848 = vpack.c.bf16 %v1844, %v1844
    %v1849 = vpack.c.bf16 %v1845, %v1845
    %v1850 = vld [vmem:[#allocation8] sm:$0xff]
    %v1851 = vld [vmem:[#allocation8 + $0x8] sm:$0xff]
    %v1852 = vld [vmem:[#allocation8 + $0x10] sm:$0xff]
    %v1853 = vld [vmem:[#allocation8 + $0x18] sm:$0xff]
    %v1854 = vld [vmem:[#allocation8 + $0x20] sm:$0xff]
    %v1855 = vld [vmem:[#allocation8 + $0x28] sm:$0xff]
    %v1856 = vld [vmem:[#allocation8 + $0x30] sm:$0xff]
    %v1857 = vld [vmem:[#allocation8 + $0x38] sm:$0xff]
    %v1858 = vld [vmem:[#allocation8 + $0x40] sm:$0xff]
    %v1859 = vld [vmem:[#allocation8 + $0x48] sm:$0xff]
    %v1860 = vld [vmem:[#allocation8 + $0x50] sm:$0xff]
    %v1861 = vld [vmem:[#allocation8 + $0x58] sm:$0xff]
    %v1862 = vld [vmem:[#allocation8 + $0x60] sm:$0xff]
    %v1863 = vld [vmem:[#allocation8 + $0x68] sm:$0xff]
    %v1864 = vld [vmem:[#allocation8 + $0x70] sm:$0xff]
    %v1865 = vld [vmem:[#allocation8 + $0x78] sm:$0xff]
    %v1866 = vld [vmem:[#allocation8 + $0x80] sm:$0xff]
    %v1867 = vld [vmem:[#allocation8 + $0x88] sm:$0xff]
    %v1868 = vld [vmem:[#allocation8 + $0x90] sm:$0xff]
    %v1869 = vld [vmem:[#allocation8 + $0x98] sm:$0xff]
    %v1870 = vld [vmem:[#allocation8 + $0xa0] sm:$0xff]
    %v1871 = vld [vmem:[#allocation8 + $0xa8] sm:$0xff]
    %v1872 = vld [vmem:[#allocation8 + $0xb0] sm:$0xff]
    %v1873 = vld [vmem:[#allocation8 + $0xb8] sm:$0xff]
    %v1874 = vld [vmem:[#allocation8 + $0xc0] sm:$0xff]
    %v1875 = vld [vmem:[#allocation8 + $0xc8] sm:$0xff]
    %v1876 = vld [vmem:[#allocation8 + $0xd0] sm:$0xff]
    %v1877 = vld [vmem:[#allocation8 + $0xd8] sm:$0xff]
    %v1878 = vld [vmem:[#allocation8 + $0xe0] sm:$0xff]
    %v1879 = vld [vmem:[#allocation8 + $0xe8] sm:$0xff]
    %v1880 = vld [vmem:[#allocation8 + $0xf0] sm:$0xff]
    %v1881 = vld [vmem:[#allocation8 + $0xf8] sm:$0xff]
    %v1882 = vld [vmem:[#allocation8 + $0x100] sm:$0xff]
    %v1883 = vld [vmem:[#allocation8 + $0x108] sm:$0xff]
    %v1884 = vld [vmem:[#allocation8 + $0x110] sm:$0xff]
    %v1885 = vld [vmem:[#allocation8 + $0x118] sm:$0xff]
    %v1886 = vld [vmem:[#allocation8 + $0x120] sm:$0xff]
    %v1887 = vld [vmem:[#allocation8 + $0x128] sm:$0xff]
    %v1888 = vld [vmem:[#allocation8 + $0x130] sm:$0xff]
    %v1889 = vld [vmem:[#allocation8 + $0x138] sm:$0xff]
    %v1890 = vld [vmem:[#allocation8 + $0x140] sm:$0xff]
    %v1891 = vld [vmem:[#allocation8 + $0x148] sm:$0xff]
    %v1892 = vld [vmem:[#allocation8 + $0x150] sm:$0xff]
    %v1893 = vld [vmem:[#allocation8 + $0x158] sm:$0xff]
    %v1894 = vld [vmem:[#allocation8 + $0x160] sm:$0xff]
    %v1895 = vld [vmem:[#allocation8 + $0x168] sm:$0xff]
    %v1896 = vld [vmem:[#allocation8 + $0x170] sm:$0xff]
    %v1897 = vld [vmem:[#allocation8 + $0x178] sm:$0xff]
    %v1898 = vld [vmem:[#allocation8 + $0x180] sm:$0xff]
    %v1899 = vld [vmem:[#allocation8 + $0x188] sm:$0xff]
    %v1900 = vld [vmem:[#allocation8 + $0x190] sm:$0xff]
    %v1901 = vld [vmem:[#allocation8 + $0x198] sm:$0xff]
    %v1902 = vld [vmem:[#allocation8 + $0x1a0] sm:$0xff]
    %v1903 = vld [vmem:[#allocation8 + $0x1a8] sm:$0xff]
    %v1904 = vld [vmem:[#allocation8 + $0x1b0] sm:$0xff]
    %v1905 = vld [vmem:[#allocation8 + $0x1b8] sm:$0xff]
    %v1906 = vld [vmem:[#allocation8 + $0x1c0] sm:$0xff]
    %v1907 = vld [vmem:[#allocation8 + $0x1c8] sm:$0xff]
    %v1908 = vld [vmem:[#allocation8 + $0x1d0] sm:$0xff]
    %v1909 = vld [vmem:[#allocation8 + $0x1d8] sm:$0xff]
    %v1910 = vld [vmem:[#allocation8 + $0x1e0] sm:$0xff]
    %v1911 = vld [vmem:[#allocation8 + $0x1e8] sm:$0xff]
    %v1912 = vld [vmem:[#allocation8 + $0x1f0] sm:$0xff]
    %v1913 = vld [vmem:[#allocation8 + $0x1f8] sm:$0xff]
    %v1914 = vld [vmem:[%s5] sm:$0x3]
    %v1916 = vlaneseq
    %v1917 = vshrl.u32 %v1916, 7
    %v1918 = vsub.s32 0, %v1917
    %v1919 = vrot.slane %v1914, %v1918
    %v1920 = vlaneseq
    %v1921 = vshrl.u32 %v1920, 7
    %v1922 = vsub.s32 1, %v1921
    %v1923 = vrot.slane %v1914, %v1922
    %v1990 = vunpack.c.l.b16 %v1850
    %v1991 = vunpack.c.h.b16 %v1850
    %v1992 = vunpack.c.l.b16 %v1851
    %v1993 = vunpack.c.h.b16 %v1851
    %v1994 = vunpack.c.l.b16 %v1852
    %v1995 = vunpack.c.h.b16 %v1852
    %v1996 = vunpack.c.l.b16 %v1853
    %v1997 = vunpack.c.h.b16 %v1853
    %v1998 = vunpack.c.l.b16 %v1854
    %v1999 = vunpack.c.h.b16 %v1854
    %v2000 = vunpack.c.l.b16 %v1855
    %v2001 = vunpack.c.h.b16 %v1855
    %v2002 = vunpack.c.l.b16 %v1856
    %v2003 = vunpack.c.h.b16 %v1856
    %v2004 = vunpack.c.l.b16 %v1857
    %v2005 = vunpack.c.h.b16 %v1857
    %v2006 = vunpack.c.l.b16 %v1858
    %v2007 = vunpack.c.h.b16 %v1858
    %v2008 = vunpack.c.l.b16 %v1859
    %v2009 = vunpack.c.h.b16 %v1859
    %v2010 = vunpack.c.l.b16 %v1860
    %v2011 = vunpack.c.h.b16 %v1860
    %v2012 = vunpack.c.l.b16 %v1861
    %v2013 = vunpack.c.h.b16 %v1861
    %v2014 = vunpack.c.l.b16 %v1862
    %v2015 = vunpack.c.h.b16 %v1862
    %v2016 = vunpack.c.l.b16 %v1863
    %v2017 = vunpack.c.h.b16 %v1863
    %v2018 = vunpack.c.l.b16 %v1864
    %v2019 = vunpack.c.h.b16 %v1864
    %v2020 = vunpack.c.l.b16 %v1865
    %v2021 = vunpack.c.h.b16 %v1865
    %v2022 = vunpack.c.l.b16 %v1866
    %v2023 = vunpack.c.h.b16 %v1866
    %v2024 = vunpack.c.l.b16 %v1867
    %v2025 = vunpack.c.h.b16 %v1867
    %v2026 = vunpack.c.l.b16 %v1868
    %v2027 = vunpack.c.h.b16 %v1868
    %v2028 = vunpack.c.l.b16 %v1869
    %v2029 = vunpack.c.h.b16 %v1869
    %v2030 = vunpack.c.l.b16 %v1870
    %v2031 = vunpack.c.h.b16 %v1870
    %v2032 = vunpack.c.l.b16 %v1871
    %v2033 = vunpack.c.h.b16 %v1871
    %v2034 = vunpack.c.l.b16 %v1872
    %v2035 = vunpack.c.h.b16 %v1872
    %v2036 = vunpack.c.l.b16 %v1873
    %v2037 = vunpack.c.h.b16 %v1873
    %v2038 = vunpack.c.l.b16 %v1874
    %v2039 = vunpack.c.h.b16 %v1874
    %v2040 = vunpack.c.l.b16 %v1875
    %v2041 = vunpack.c.h.b16 %v1875
    %v2042 = vunpack.c.l.b16 %v1876
    %v2043 = vunpack.c.h.b16 %v1876
    %v2044 = vunpack.c.l.b16 %v1877
    %v2045 = vunpack.c.h.b16 %v1877
    %v2046 = vunpack.c.l.b16 %v1878
    %v2047 = vunpack.c.h.b16 %v1878
    %v2048 = vunpack.c.l.b16 %v1879
    %v2049 = vunpack.c.h.b16 %v1879
    %v2050 = vunpack.c.l.b16 %v1880
    %v2051 = vunpack.c.h.b16 %v1880
    %v2052 = vunpack.c.l.b16 %v1881
    %v2053 = vunpack.c.h.b16 %v1881
    %v2054 = vunpack.c.l.b16 %v1882
    %v2055 = vunpack.c.h.b16 %v1882
    %v2056 = vunpack.c.l.b16 %v1883
    %v2057 = vunpack.c.h.b16 %v1883
    %v2058 = vunpack.c.l.b16 %v1884
    %v2059 = vunpack.c.h.b16 %v1884
    %v2060 = vunpack.c.l.b16 %v1885
    %v2061 = vunpack.c.h.b16 %v1885
    %v2062 = vunpack.c.l.b16 %v1886
    %v2063 = vunpack.c.h.b16 %v1886
    %v2064 = vunpack.c.l.b16 %v1887
    %v2065 = vunpack.c.h.b16 %v1887
    %v2066 = vunpack.c.l.b16 %v1888
    %v2067 = vunpack.c.h.b16 %v1888
    %v2068 = vunpack.c.l.b16 %v1889
    %v2069 = vunpack.c.h.b16 %v1889
    %v2070 = vunpack.c.l.b16 %v1890
    %v2071 = vunpack.c.h.b16 %v1890
    %v2072 = vunpack.c.l.b16 %v1891
    %v2073 = vunpack.c.h.b16 %v1891
    %v2074 = vunpack.c.l.b16 %v1892
    %v2075 = vunpack.c.h.b16 %v1892
    %v2076 = vunpack.c.l.b16 %v1893
    %v2077 = vunpack.c.h.b16 %v1893
    %v2078 = vunpack.c.l.b16 %v1894
    %v2079 = vunpack.c.h.b16 %v1894
    %v2080 = vunpack.c.l.b16 %v1895
    %v2081 = vunpack.c.h.b16 %v1895
    %v2082 = vunpack.c.l.b16 %v1896
    %v2083 = vunpack.c.h.b16 %v1896
    %v2084 = vunpack.c.l.b16 %v1897
    %v2085 = vunpack.c.h.b16 %v1897
    %v2086 = vunpack.c.l.b16 %v1898
    %v2087 = vunpack.c.h.b16 %v1898
    %v2088 = vunpack.c.l.b16 %v1899
    %v2089 = vunpack.c.h.b16 %v1899
    %v2090 = vunpack.c.l.b16 %v1900
    %v2091 = vunpack.c.h.b16 %v1900
    %v2092 = vunpack.c.l.b16 %v1901
    %v2093 = vunpack.c.h.b16 %v1901
    %v2094 = vunpack.c.l.b16 %v1902
    %v2095 = vunpack.c.h.b16 %v1902
    %v2096 = vunpack.c.l.b16 %v1903
    %v2097 = vunpack.c.h.b16 %v1903
    %v2098 = vunpack.c.l.b16 %v1904
    %v2099 = vunpack.c.h.b16 %v1904
    %v2100 = vunpack.c.l.b16 %v1905
    %v2101 = vunpack.c.h.b16 %v1905
    %v2102 = vunpack.c.l.b16 %v1906
    %v2103 = vunpack.c.h.b16 %v1906
    %v2104 = vunpack.c.l.b16 %v1907
    %v2105 = vunpack.c.h.b16 %v1907
    %v2106 = vunpack.c.l.b16 %v1908
    %v2107 = vunpack.c.h.b16 %v1908
    %v2108 = vunpack.c.l.b16 %v1909
    %v2109 = vunpack.c.h.b16 %v1909
    %v2110 = vunpack.c.l.b16 %v1910
    %v2111 = vunpack.c.h.b16 %v1910
    %v2112 = vunpack.c.l.b16 %v1911
    %v2113 = vunpack.c.h.b16 %v1911
    %v2114 = vunpack.c.l.b16 %v1912
    %v2115 = vunpack.c.h.b16 %v1912
    %v2116 = vunpack.c.l.b16 %v1913
    %v2117 = vunpack.c.h.b16 %v1913
    %v2118 = vpack.c.b16 %v1992, %v1990
    %v2119 = vpack.c.b16 %v1993, %v1991
    %v2120 = vpack.c.b16 %v1996, %v1994
    %v2121 = vpack.c.b16 %v1997, %v1995
    %v2122 = vpack.c.b16 %v2000, %v1998
    %v2123 = vpack.c.b16 %v2001, %v1999
    %v2124 = vpack.c.b16 %v2004, %v2002
    %v2125 = vpack.c.b16 %v2005, %v2003
    %v2126 = vpack.c.b16 %v2008, %v2006
    %v2127 = vpack.c.b16 %v2009, %v2007
    %v2128 = vpack.c.b16 %v2012, %v2010
    %v2129 = vpack.c.b16 %v2013, %v2011
    %v2130 = vpack.c.b16 %v2016, %v2014
    %v2131 = vpack.c.b16 %v2017, %v2015
    %v2132 = vpack.c.b16 %v2020, %v2018
    %v2133 = vpack.c.b16 %v2021, %v2019
    %v2134 = vpack.c.b16 %v2024, %v2022
    %v2135 = vpack.c.b16 %v2025, %v2023
    %v2136 = vpack.c.b16 %v2028, %v2026
    %v2137 = vpack.c.b16 %v2029, %v2027
    %v2138 = vpack.c.b16 %v2032, %v2030
    %v2139 = vpack.c.b16 %v2033, %v2031
    %v2140 = vpack.c.b16 %v2036, %v2034
    %v2141 = vpack.c.b16 %v2037, %v2035
    %v2142 = vpack.c.b16 %v2040, %v2038
    %v2143 = vpack.c.b16 %v2041, %v2039
    %v2144 = vpack.c.b16 %v2044, %v2042
    %v2145 = vpack.c.b16 %v2045, %v2043
    %v2146 = vpack.c.b16 %v2048, %v2046
    %v2147 = vpack.c.b16 %v2049, %v2047
    %v2148 = vpack.c.b16 %v2052, %v2050
    %v2149 = vpack.c.b16 %v2053, %v2051
    %v2150 = vpack.c.b16 %v2056, %v2054
    %v2151 = vpack.c.b16 %v2057, %v2055
    %v2152 = vpack.c.b16 %v2060, %v2058
    %v2153 = vpack.c.b16 %v2061, %v2059
    %v2154 = vpack.c.b16 %v2064, %v2062
    %v2155 = vpack.c.b16 %v2065, %v2063
    %v2156 = vpack.c.b16 %v2068, %v2066
    %v2157 = vpack.c.b16 %v2069, %v2067
    %v2158 = vpack.c.b16 %v2072, %v2070
    %v2159 = vpack.c.b16 %v2073, %v2071
    %v2160 = vpack.c.b16 %v2076, %v2074
    %v2161 = vpack.c.b16 %v2077, %v2075
    %v2162 = vpack.c.b16 %v2080, %v2078
    %v2163 = vpack.c.b16 %v2081, %v2079
    %v2164 = vpack.c.b16 %v2084, %v2082
    %v2165 = vpack.c.b16 %v2085, %v2083
    %v2166 = vpack.c.b16 %v2088, %v2086
    %v2167 = vpack.c.b16 %v2089, %v2087
    %v2168 = vpack.c.b16 %v2092, %v2090
    %v2169 = vpack.c.b16 %v2093, %v2091
    %v2170 = vpack.c.b16 %v2096, %v2094
    %v2171 = vpack.c.b16 %v2097, %v2095
    %v2172 = vpack.c.b16 %v2100, %v2098
    %v2173 = vpack.c.b16 %v2101, %v2099
    %v2174 = vpack.c.b16 %v2104, %v2102
    %v2175 = vpack.c.b16 %v2105, %v2103
    %v2176 = vpack.c.b16 %v2108, %v2106
    %v2177 = vpack.c.b16 %v2109, %v2107
    %v2178 = vpack.c.b16 %v2112, %v2110
    %v2179 = vpack.c.b16 %v2113, %v2111
    %v2180 = vpack.c.b16 %v2116, %v2114
    %v2181 = vpack.c.b16 %v2117, %v2115
    %2246 = vmatprep.subr.bf16.mxu0 %v2119
    %2247 = vmatpush1.bf16.msra.mxu0 %v2118
    %2248 = vmatprep.subr.bf16.mxu0 %v2121
    %2249 = vmatpush1.bf16.msra.mxu0 %v2120
    %2250 = vmatprep.subr.bf16.mxu0 %v2123
    %2251 = vmatpush1.bf16.msra.mxu0 %v2122
    %2252 = vmatprep.subr.bf16.mxu0 %v2125
    %2253 = vmatpush1.bf16.msra.mxu0 %v2124
    %2254 = vmatprep.subr.bf16.mxu0 %v2127
    %2255 = vmatpush1.bf16.msra.mxu0 %v2126
    %2256 = vmatprep.subr.bf16.mxu0 %v2129
    %2257 = vmatpush1.bf16.msra.mxu0 %v2128
    %2258 = vmatprep.subr.bf16.mxu0 %v2131
    %2259 = vmatpush1.bf16.msra.mxu0 %v2130
    %2260 = vmatprep.subr.bf16.mxu0 %v2133
    %2261 = vmatpush1.bf16.msra.mxu0 %v2132
    %2262 = vmatprep.subr.bf16.mxu0 %v2135
    %2263 = vmatpush1.bf16.msra.mxu0 %v2134
    %2264 = vmatprep.subr.bf16.mxu0 %v2137
    %2265 = vmatpush1.bf16.msra.mxu0 %v2136
    %2266 = vmatprep.subr.bf16.mxu0 %v2139
    %2267 = vmatpush1.bf16.msra.mxu0 %v2138
    %2268 = vmatprep.subr.bf16.mxu0 %v2141
    %2269 = vmatpush1.bf16.msra.mxu0 %v2140
    %2270 = vmatprep.subr.bf16.mxu0 %v2143
    %2271 = vmatpush1.bf16.msra.mxu0 %v2142
    %2272 = vmatprep.subr.bf16.mxu0 %v2145
    %2273 = vmatpush1.bf16.msra.mxu0 %v2144
    %2274 = vmatprep.subr.bf16.mxu0 %v2147
    %2275 = vmatpush1.bf16.msra.mxu0 %v2146
    %2276 = vmatprep.subr.bf16.mxu0 %v2149
    %2277 = vmatpush1.bf16.msra.mxu0 %v2148
    %2278 = vmatprep.mubr.bf16.mxu0 %v1847
    %2279 = vmatmul.mubr.bf16.gmra.mrb[0].mxu0 %v1846
    %v2280 = vpop.f32.mrb[0].mxu0
    %v2281 = vadd.f32 %v1919, %v2280
    %v2282 = vpop.f32.mrb[0].mxu0
    %v2283 = vadd.f32 %v1923, %v2282
    %v2284 = vpop.f32.mrb[0].mxu0
    %v2285 = vpop.f32.mrb[0].mxu0
    %2286 = vdwg.mxu0
    %2287 = vmatprep.subr.bf16.mxu0 %v2151
    %2288 = vmatpush1.bf16.msra.mxu0 %v2150
    %2289 = vmatprep.subr.bf16.mxu0 %v2153
    %2290 = vmatpush1.bf16.msra.mxu0 %v2152
    %2291 = vmatprep.subr.bf16.mxu0 %v2155
    %2292 = vmatpush1.bf16.msra.mxu0 %v2154
    %2293 = vmatprep.subr.bf16.mxu0 %v2157
    %2294 = vmatpush1.bf16.msra.mxu0 %v2156
    %2295 = vmatprep.subr.bf16.mxu0 %v2159
    %2296 = vmatpush1.bf16.msra.mxu0 %v2158
    %2297 = vmatprep.subr.bf16.mxu0 %v2161
    %2298 = vmatpush1.bf16.msra.mxu0 %v2160
    %2299 = vmatprep.subr.bf16.mxu0 %v2163
    %2300 = vmatpush1.bf16.msra.mxu0 %v2162
    %2301 = vmatprep.subr.bf16.mxu0 %v2165
    %2302 = vmatpush1.bf16.msra.mxu0 %v2164
    %2303 = vmatprep.subr.bf16.mxu0 %v2167
    %2304 = vmatpush1.bf16.msra.mxu0 %v2166
    %2305 = vmatprep.subr.bf16.mxu0 %v2169
    %2306 = vmatpush1.bf16.msra.mxu0 %v2168
    %2307 = vmatprep.subr.bf16.mxu0 %v2171
    %2308 = vmatpush1.bf16.msra.mxu0 %v2170
    %2309 = vmatprep.subr.bf16.mxu0 %v2173
    %2310 = vmatpush1.bf16.msra.mxu0 %v2172
    %2311 = vmatprep.subr.bf16.mxu0 %v2175
    %2312 = vmatpush1.bf16.msra.mxu0 %v2174
    %2313 = vmatprep.subr.bf16.mxu0 %v2177
    %2314 = vmatpush1.bf16.msra.mxu0 %v2176
    %2315 = vmatprep.subr.bf16.mxu0 %v2179
    %2316 = vmatpush1.bf16.msra.mxu0 %v2178
    %2317 = vmatprep.subr.bf16.mxu0 %v2181
    %2318 = vmatpush1.bf16.msra.mxu0 %v2180
    %2319 = vmatprep.mubr.bf16.mxu0 %v1849
    %2320 = vmatmul.mubr.bf16.gmra.mrb[0].mxu0 %v1848
    %v2321 = vpop.f32.mrb[0].mxu0
    %v2322 = vadd.f32 %v2281, %v2321
    %v2323 = vpop.f32.mrb[0].mxu0
    %v2324 = vadd.f32 %v2283, %v2323
    %v2325 = vpop.f32.mrb[0].mxu0
    %v2326 = vpop.f32.mrb[0].mxu0
    %2327 = vdwg.mxu0
    %v2328 = vld [vmem:[#allocation5] sm:$0xff]
    %v2329 = vmul.f32 %v2324, 0.5
    %v2330 = vmul.f32 %v2329, 1.442695
    %v2331 = vpow.pop %v2330
    %v2332 = vmul.f32 %v2328, %v2331
    %v2333 = vadd.f32 %v2332, %v2322
    %v2334 = vpack.c.bf16 %v2333, %v2333
    %v2335 = vld [vmem:[#allocation10] sm:$0xff]
    %v2336 = vld [vmem:[#allocation10 + $0x8] sm:$0xff]
    %v2337 = vld [vmem:[#allocation10 + $0x10] sm:$0xff]
    %v2338 = vld [vmem:[#allocation10 + $0x18] sm:$0xff]
    %v2339 = vld [vmem:[#allocation10 + $0x20] sm:$0xff]
    %v2340 = vld [vmem:[#allocation10 + $0x28] sm:$0xff]
    %v2341 = vld [vmem:[#allocation10 + $0x30] sm:$0xff]
    %v2342 = vld [vmem:[#allocation10 + $0x38] sm:$0xff]
    %v2343 = vld [vmem:[#allocation10 + $0x40] sm:$0xff]
    %v2344 = vld [vmem:[#allocation10 + $0x48] sm:$0xff]
    %v2345 = vld [vmem:[#allocation10 + $0x50] sm:$0xff]
    %v2346 = vld [vmem:[#allocation10 + $0x58] sm:$0xff]
    %v2347 = vld [vmem:[#allocation10 + $0x60] sm:$0xff]
    %v2348 = vld [vmem:[#allocation10 + $0x68] sm:$0xff]
    %v2349 = vld [vmem:[#allocation10 + $0x70] sm:$0xff]
    %v2350 = vld [vmem:[#allocation10 + $0x78] sm:$0xff]
    %v2351 = vld [vmem:[#allocation10 + $0x80] sm:$0xff]
    %v2352 = vld [vmem:[#allocation10 + $0x88] sm:$0xff]
    %v2353 = vld [vmem:[#allocation10 + $0x90] sm:$0xff]
    %v2354 = vld [vmem:[#allocation10 + $0x98] sm:$0xff]
    %v2355 = vld [vmem:[#allocation10 + $0xa0] sm:$0xff]
    %v2356 = vld [vmem:[#allocation10 + $0xa8] sm:$0xff]
    %v2357 = vld [vmem:[#allocation10 + $0xb0] sm:$0xff]
    %v2358 = vld [vmem:[#allocation10 + $0xb8] sm:$0xff]
    %v2359 = vld [vmem:[#allocation10 + $0xc0] sm:$0xff]
    %v2360 = vld [vmem:[#allocation10 + $0xc8] sm:$0xff]
    %v2361 = vld [vmem:[#allocation10 + $0xd0] sm:$0xff]
    %v2362 = vld [vmem:[#allocation10 + $0xd8] sm:$0xff]
    %v2363 = vld [vmem:[#allocation10 + $0xe0] sm:$0xff]
    %v2364 = vld [vmem:[#allocation10 + $0xe8] sm:$0xff]
    %v2365 = vld [vmem:[#allocation10 + $0xf0] sm:$0xff]
    %v2366 = vld [vmem:[#allocation10 + $0xf8] sm:$0xff]
    %v2367 = vld [vmem:[%s7] sm:$0xf]
    %v2369 = vlaneseq
    %v2370 = vshrl.u32 %v2369, 7
    %v2371 = vsub.s32 0, %v2370
    %v2372 = vrot.slane %v2367, %v2371
    %v2373 = vlaneseq
    %v2374 = vshrl.u32 %v2373, 7
    %v2375 = vsub.s32 1, %v2374
    %v2376 = vrot.slane %v2367, %v2375
    %v2377 = vlaneseq
    %v2378 = vshrl.u32 %v2377, 7
    %v2379 = vsub.s32 2, %v2378
    %v2380 = vrot.slane %v2367, %v2379
    %v2381 = vlaneseq
    %v2382 = vshrl.u32 %v2381, 7
    %v2383 = vsub.s32 3, %v2382
    %v2384 = vrot.slane %v2367, %v2383
    %v2421 = vunpack.c.l.b16 %v2335
    %v2422 = vunpack.c.h.b16 %v2335
    %v2423 = vunpack.c.l.b16 %v2336
    %v2424 = vunpack.c.h.b16 %v2336
    %v2425 = vunpack.c.l.b16 %v2337
    %v2426 = vunpack.c.h.b16 %v2337
    %v2427 = vunpack.c.l.b16 %v2338
    %v2428 = vunpack.c.h.b16 %v2338
    %v2429 = vunpack.c.l.b16 %v2339
    %v2430 = vunpack.c.h.b16 %v2339
    %v2431 = vunpack.c.l.b16 %v2340
    %v2432 = vunpack.c.h.b16 %v2340
    %v2433 = vunpack.c.l.b16 %v2341
    %v2434 = vunpack.c.h.b16 %v2341
    %v2435 = vunpack.c.l.b16 %v2342
    %v2436 = vunpack.c.h.b16 %v2342
    %v2437 = vunpack.c.l.b16 %v2343
    %v2438 = vunpack.c.h.b16 %v2343
    %v2439 = vunpack.c.l.b16 %v2344
    %v2440 = vunpack.c.h.b16 %v2344
    %v2441 = vunpack.c.l.b16 %v2345
    %v2442 = vunpack.c.h.b16 %v2345
    %v2443 = vunpack.c.l.b16 %v2346
    %v2444 = vunpack.c.h.b16 %v2346
    %v2445 = vunpack.c.l.b16 %v2347
    %v2446 = vunpack.c.h.b16 %v2347
    %v2447 = vunpack.c.l.b16 %v2348
    %v2448 = vunpack.c.h.b16 %v2348
    %v2449 = vunpack.c.l.b16 %v2349
    %v2450 = vunpack.c.h.b16 %v2349
    %v2451 = vunpack.c.l.b16 %v2350
    %v2452 = vunpack.c.h.b16 %v2350
    %v2453 = vunpack.c.l.b16 %v2351
    %v2454 = vunpack.c.h.b16 %v2351
    %v2455 = vunpack.c.l.b16 %v2352
    %v2456 = vunpack.c.h.b16 %v2352
    %v2457 = vunpack.c.l.b16 %v2353
    %v2458 = vunpack.c.h.b16 %v2353
    %v2459 = vunpack.c.l.b16 %v2354
    %v2460 = vunpack.c.h.b16 %v2354
    %v2461 = vunpack.c.l.b16 %v2355
    %v2462 = vunpack.c.h.b16 %v2355
    %v2463 = vunpack.c.l.b16 %v2356
    %v2464 = vunpack.c.h.b16 %v2356
    %v2465 = vunpack.c.l.b16 %v2357
    %v2466 = vunpack.c.h.b16 %v2357
    %v2467 = vunpack.c.l.b16 %v2358
    %v2468 = vunpack.c.h.b16 %v2358
    %v2469 = vunpack.c.l.b16 %v2359
    %v2470 = vunpack.c.h.b16 %v2359
    %v2471 = vunpack.c.l.b16 %v2360
    %v2472 = vunpack.c.h.b16 %v2360
    %v2473 = vunpack.c.l.b16 %v2361
    %v2474 = vunpack.c.h.b16 %v2361
    %v2475 = vunpack.c.l.b16 %v2362
    %v2476 = vunpack.c.h.b16 %v2362
    %v2477 = vunpack.c.l.b16 %v2363
    %v2478 = vunpack.c.h.b16 %v2363
    %v2479 = vunpack.c.l.b16 %v2364
    %v2480 = vunpack.c.h.b16 %v2364
    %v2481 = vunpack.c.l.b16 %v2365
    %v2482 = vunpack.c.h.b16 %v2365
    %v2483 = vunpack.c.l.b16 %v2366
    %v2484 = vunpack.c.h.b16 %v2366
    %v2485 = vpack.c.b16 %v2425, %v2421
    %v2486 = vpack.c.b16 %v2426, %v2422
    %v2487 = vpack.c.b16 %v2427, %v2423
    %v2488 = vpack.c.b16 %v2428, %v2424
    %v2489 = vpack.c.b16 %v2433, %v2429
    %v2490 = vpack.c.b16 %v2434, %v2430
    %v2491 = vpack.c.b16 %v2435, %v2431
    %v2492 = vpack.c.b16 %v2436, %v2432
    %v2493 = vpack.c.b16 %v2441, %v2437
    %v2494 = vpack.c.b16 %v2442, %v2438
    %v2495 = vpack.c.b16 %v2443, %v2439
    %v2496 = vpack.c.b16 %v2444, %v2440
    %v2497 = vpack.c.b16 %v2449, %v2445
    %v2498 = vpack.c.b16 %v2450, %v2446
    %v2499 = vpack.c.b16 %v2451, %v2447
    %v2500 = vpack.c.b16 %v2452, %v2448
    %v2501 = vpack.c.b16 %v2457, %v2453
    %v2502 = vpack.c.b16 %v2458, %v2454
    %v2503 = vpack.c.b16 %v2459, %v2455
    %v2504 = vpack.c.b16 %v2460, %v2456
    %v2505 = vpack.c.b16 %v2465, %v2461
    %v2506 = vpack.c.b16 %v2466, %v2462
    %v2507 = vpack.c.b16 %v2467, %v2463
    %v2508 = vpack.c.b16 %v2468, %v2464
    %v2509 = vpack.c.b16 %v2473, %v2469
    %v2510 = vpack.c.b16 %v2474, %v2470
    %v2511 = vpack.c.b16 %v2475, %v2471
    %v2512 = vpack.c.b16 %v2476, %v2472
    %v2513 = vpack.c.b16 %v2481, %v2477
    %v2514 = vpack.c.b16 %v2482, %v2478
    %v2515 = vpack.c.b16 %v2483, %v2479
    %v2516 = vpack.c.b16 %v2484, %v2480
    %2549 = vmatprep.subr.bf16.mxu0 %v2486
    %2550 = vmatpush1.bf16.msra.mxu0 %v2485
    %2551 = vmatprep.subr.bf16.mxu0 %v2490
    %2552 = vmatpush1.bf16.msra.mxu0 %v2489
    %2553 = vmatprep.subr.bf16.mxu0 %v2494
    %2554 = vmatpush1.bf16.msra.mxu0 %v2493
    %2555 = vmatprep.subr.bf16.mxu0 %v2498
    %2556 = vmatpush1.bf16.msra.mxu0 %v2497
    %2557 = vmatprep.subr.bf16.mxu0 %v2502
    %2558 = vmatpush1.bf16.msra.mxu0 %v2501
    %2559 = vmatprep.subr.bf16.mxu0 %v2506
    %2560 = vmatpush1.bf16.msra.mxu0 %v2505
    %2561 = vmatprep.subr.bf16.mxu0 %v2510
    %2562 = vmatpush1.bf16.msra.mxu0 %v2509
    %2563 = vmatprep.subr.bf16.mxu0 %v2514
    %2564 = vmatpush1.bf16.msra.mxu0 %v2513
    %2565 = vmatprep.subr.bf16.mxu0 0
    %2566 = vmatpush1.bf16.msra.mxu0 0
    %2567 = vmatprep.subr.bf16.mxu0 0
    %2568 = vmatpush1.bf16.msra.mxu0 0
    %2569 = vmatprep.subr.bf16.mxu0 0
    %2570 = vmatpush1.bf16.msra.mxu0 0
    %2571 = vmatprep.subr.bf16.mxu0 0
    %2572 = vmatpush1.bf16.msra.mxu0 0
    %2573 = vmatprep.subr.bf16.mxu0 0
    %2574 = vmatpush1.bf16.msra.mxu0 0
    %2575 = vmatprep.subr.bf16.mxu0 0
    %2576 = vmatpush1.bf16.msra.mxu0 0
    %2577 = vmatprep.subr.bf16.mxu0 0
    %2578 = vmatpush1.bf16.msra.mxu0 0
    %2579 = vmatprep.subr.bf16.mxu0 0
    %2580 = vmatpush1.bf16.msra.mxu0 0
    %2581 = vmatprep.mubr.bf16.mxu0 0
    %2582 = vmatmul.mubr.bf16.gmra.mrb[0].mxu0 %v2334
    %v2583 = vpop.f32.mrb[0].mxu0
    %v2584 = vadd.f32 %v2372, %v2583
    %v2585 = vpop.f32.mrb[0].mxu0
    %v2586 = vadd.f32 %v2376, %v2585
    %v2587 = vpop.f32.mrb[0].mxu0
    %v2588 = vpop.f32.mrb[0].mxu0
    %2589 = vdwg.mxu0
    %2590 = vmatprep.subr.bf16.mxu0 %v2488
    %2591 = vmatpush1.bf16.msra.mxu0 %v2487
    %2592 = vmatprep.subr.bf16.mxu0 %v2492
    %2593 = vmatpush1.bf16.msra.mxu0 %v2491
    %2594 = vmatprep.subr.bf16.mxu0 %v2496
    %2595 = vmatpush1.bf16.msra.mxu0 %v2495
    %2596 = vmatprep.subr.bf16.mxu0 %v2500
    %2597 = vmatpush1.bf16.msra.mxu0 %v2499
    %2598 = vmatprep.subr.bf16.mxu0 %v2504
    %2599 = vmatpush1.bf16.msra.mxu0 %v2503
    %2600 = vmatprep.subr.bf16.mxu0 %v2508
    %2601 = vmatpush1.bf16.msra.mxu0 %v2507
    %2602 = vmatprep.subr.bf16.mxu0 %v2512
    %2603 = vmatpush1.bf16.msra.mxu0 %v2511
    %2604 = vmatprep.subr.bf16.mxu0 %v2516
    %2605 = vmatpush1.bf16.msra.mxu0 %v2515
    %2606 = vmatprep.subr.bf16.mxu0 0
    %2607 = vmatpush1.bf16.msra.mxu0 0
    %2608 = vmatprep.subr.bf16.mxu0 0
    %2609 = vmatpush1.bf16.msra.mxu0 0
    %2610 = vmatprep.subr.bf16.mxu0 0
    %2611 = vmatpush1.bf16.msra.mxu0 0
    %2612 = vmatprep.subr.bf16.mxu0 0
    %2613 = vmatpush1.bf16.msra.mxu0 0
    %2614 = vmatprep.subr.bf16.mxu0 0
    %2615 = vmatpush1.bf16.msra.mxu0 0
    %2616 = vmatprep.subr.bf16.mxu0 0
    %2617 = vmatpush1.bf16.msra.mxu0 0
    %2618 = vmatprep.subr.bf16.mxu0 0
    %2619 = vmatpush1.bf16.msra.mxu0 0
    %2620 = vmatprep.subr.bf16.mxu0 0
    %2621 = vmatpush1.bf16.msra.mxu0 0
    %2622 = vmatprep.mubr.bf16.mxu0 0
    %2623 = vmatmul.mubr.bf16.gmra.mrb[0].mxu0 %v2334
    %v2624 = vpop.f32.mrb[0].mxu0
    %v2625 = vadd.f32 %v2380, %v2624
    %v2626 = vpop.f32.mrb[0].mxu0
    %v2627 = vadd.f32 %v2384, %v2626
    %v2628 = vpop.f32.mrb[0].mxu0
    %v2629 = vpop.f32.mrb[0].mxu0
    %2630 = vdwg.mxu0
    %v2631 = vmax.f32 %v2584, 0.0
    %v2632 = vmax.f32 %v2586, 0.0
    %v2633 = vmax.f32 %v2625, 0.0
    %v2634 = vmax.f32 %v2627, 0.0
    %v2635 = vpack.c.bf16 %v2631, %v2631
    %v2636 = vpack.c.bf16 %v2632, %v2632
    %v2637 = vpack.c.bf16 %v2633, %v2633
    %v2638 = vpack.c.bf16 %v2634, %v2634
    %v2639 = vld [vmem:[#allocation11] sm:$0xff]
    %v2640 = vld [vmem:[#allocation11 + $0x8] sm:$0xff]
    %v2641 = vld [vmem:[#allocation11 + $0x10] sm:$0xff]
    %v2642 = vld [vmem:[#allocation11 + $0x18] sm:$0xf]
    %v2643 = vld [vmem:[#allocation11 + $0x1c] sm:$0xff]
    %v2644 = vld [vmem:[#allocation11 + $0x24] sm:$0xff]
    %v2645 = vld [vmem:[#allocation11 + $0x2c] sm:$0xff]
    %v2646 = vld [vmem:[#allocation11 + $0x34] sm:$0xf]
    %v2647 = vld [vmem:[#allocation11 + $0x38] sm:$0xff]
    %v2648 = vld [vmem:[#allocation11 + $0x40] sm:$0xff]
    %v2649 = vld [vmem:[#allocation11 + $0x48] sm:$0xff]
    %v2650 = vld [vmem:[#allocation11 + $0x50] sm:$0xf]
    %v2651 = vld [vmem:[#allocation11 + $0x54] sm:$0xff]
    %v2652 = vld [vmem:[#allocation11 + $0x5c] sm:$0xff]
    %v2653 = vld [vmem:[#allocation11 + $0x64] sm:$0xff]
    %v2654 = vld [vmem:[#allocation11 + $0x6c] sm:$0xf]
    %v2655 = vld [vmem:[#allocation11 + $0x70] sm:$0xff]
    %v2656 = vld [vmem:[#allocation11 + $0x78] sm:$0xff]
    %v2657 = vld [vmem:[#allocation11 + $0x80] sm:$0xff]
    %v2658 = vld [vmem:[#allocation11 + $0x88] sm:$0xf]
    %v2659 = vld [vmem:[#allocation11 + $0x8c] sm:$0xff]
    %v2660 = vld [vmem:[#allocation11 + $0x94] sm:$0xff]
    %v2661 = vld [vmem:[#allocation11 + $0x9c] sm:$0xff]
    %v2662 = vld [vmem:[#allocation11 + $0xa4] sm:$0xf]
    %v2663 = vld [vmem:[#allocation11 + $0xa8] sm:$0xff]
    %v2664 = vld [vmem:[#allocation11 + $0xb0] sm:$0xff]
    %v2665 = vld [vmem:[#allocation11 + $0xb8] sm:$0xff]
    %v2666 = vld [vmem:[#allocation11 + $0xc0] sm:$0xf]
    %v2667 = vld [vmem:[#allocation11 + $0xc4] sm:$0xff]
    %v2668 = vld [vmem:[#allocation11 + $0xcc] sm:$0xff]
    %v2669 = vld [vmem:[#allocation11 + $0xd4] sm:$0xff]
    %v2670 = vld [vmem:[#allocation11 + $0xdc] sm:$0xf]
    %v2671 = vld [vmem:[#allocation11 + $0xe0] sm:$0xff]
    %v2672 = vld [vmem:[#allocation11 + $0xe8] sm:$0xff]
    %v2673 = vld [vmem:[#allocation11 + $0xf0] sm:$0xff]
    %v2674 = vld [vmem:[#allocation11 + $0xf8] sm:$0xf]
    %v2675 = vld [vmem:[#allocation11 + $0xfc] sm:$0xff]
    %v2676 = vld [vmem:[#allocation11 + $0x104] sm:$0xff]
    %v2677 = vld [vmem:[#allocation11 + $0x10c] sm:$0xff]
    %v2678 = vld [vmem:[#allocation11 + $0x114] sm:$0xf]
    %v2679 = vld [vmem:[#allocation11 + $0x118] sm:$0xff]
    %v2680 = vld [vmem:[#allocation11 + $0x120] sm:$0xff]
    %v2681 = vld [vmem:[#allocation11 + $0x128] sm:$0xff]
    %v2682 = vld [vmem:[#allocation11 + $0x130] sm:$0xf]
    %v2683 = vld [vmem:[#allocation11 + $0x134] sm:$0xff]
    %v2684 = vld [vmem:[#allocation11 + $0x13c] sm:$0xff]
    %v2685 = vld [vmem:[#allocation11 + $0x144] sm:$0xff]
    %v2686 = vld [vmem:[#allocation11 + $0x14c] sm:$0xf]
    %v2687 = vld [vmem:[#allocation11 + $0x150] sm:$0xff]
    %v2688 = vld [vmem:[#allocation11 + $0x158] sm:$0xff]
    %v2689 = vld [vmem:[#allocation11 + $0x160] sm:$0xff]
    %v2690 = vld [vmem:[#allocation11 + $0x168] sm:$0xf]
    %v2691 = vld [vmem:[#allocation11 + $0x16c] sm:$0xff]
    %v2692 = vld [vmem:[#allocation11 + $0x174] sm:$0xff]
    %v2693 = vld [vmem:[#allocation11 + $0x17c] sm:$0xff]
    %v2694 = vld [vmem:[#allocation11 + $0x184] sm:$0xf]
    %v2695 = vld [vmem:[#allocation11 + $0x188] sm:$0xff]
    %v2696 = vld [vmem:[#allocation11 + $0x190] sm:$0xff]
    %v2697 = vld [vmem:[#allocation11 + $0x198] sm:$0xff]
    %v2698 = vld [vmem:[#allocation11 + $0x1a0] sm:$0xf]
    %v2699 = vld [vmem:[#allocation11 + $0x1a4] sm:$0xff]
    %v2700 = vld [vmem:[#allocation11 + $0x1ac] sm:$0xff]
    %v2701 = vld [vmem:[#allocation11 + $0x1b4] sm:$0xff]
    %v2702 = vld [vmem:[#allocation11 + $0x1bc] sm:$0xf]
    %v2703 = vld [vmem:[#allocation11 + $0x1c0] sm:$0xff]
    %v2704 = vld [vmem:[#allocation11 + $0x1c8] sm:$0xff]
    %v2705 = vld [vmem:[#allocation11 + $0x1d0] sm:$0xff]
    %v2706 = vld [vmem:[#allocation11 + $0x1d8] sm:$0xf]
    %v2707 = vld [vmem:[#allocation11 + $0x1dc] sm:$0xff]
    %v2708 = vld [vmem:[#allocation11 + $0x1e4] sm:$0xff]
    %v2709 = vld [vmem:[#allocation11 + $0x1ec] sm:$0xff]
    %v2710 = vld [vmem:[#allocation11 + $0x1f4] sm:$0xf]
    %v2711 = vld [vmem:[#allocation11 + $0x1f8] sm:$0xff]
    %v2712 = vld [vmem:[#allocation11 + $0x200] sm:$0xff]
    %v2713 = vld [vmem:[#allocation11 + $0x208] sm:$0xff]
    %v2714 = vld [vmem:[#allocation11 + $0x210] sm:$0xf]
    %v2715 = vld [vmem:[#allocation11 + $0x214] sm:$0xff]
    %v2716 = vld [vmem:[#allocation11 + $0x21c] sm:$0xff]
    %v2717 = vld [vmem:[#allocation11 + $0x224] sm:$0xff]
    %v2718 = vld [vmem:[#allocation11 + $0x22c] sm:$0xf]
    %v2719 = vld [vmem:[#allocation11 + $0x230] sm:$0xff]
    %v2720 = vld [vmem:[#allocation11 + $0x238] sm:$0xff]
    %v2721 = vld [vmem:[#allocation11 + $0x240] sm:$0xff]
    %v2722 = vld [vmem:[#allocation11 + $0x248] sm:$0xf]
    %v2723 = vld [vmem:[#allocation11 + $0x24c] sm:$0xff]
    %v2724 = vld [vmem:[#allocation11 + $0x254] sm:$0xff]
    %v2725 = vld [vmem:[#allocation11 + $0x25c] sm:$0xff]
    %v2726 = vld [vmem:[#allocation11 + $0x264] sm:$0xf]
    %v2727 = vld [vmem:[#allocation11 + $0x268] sm:$0xff]
    %v2728 = vld [vmem:[#allocation11 + $0x270] sm:$0xff]
    %v2729 = vld [vmem:[#allocation11 + $0x278] sm:$0xff]
    %v2730 = vld [vmem:[#allocation11 + $0x280] sm:$0xf]
    %v2731 = vld [vmem:[#allocation11 + $0x284] sm:$0xff]
    %v2732 = vld [vmem:[#allocation11 + $0x28c] sm:$0xff]
    %v2733 = vld [vmem:[#allocation11 + $0x294] sm:$0xff]
    %v2734 = vld [vmem:[#allocation11 + $0x29c] sm:$0xf]
    %v2735 = vld [vmem:[#allocation11 + $0x2a0] sm:$0xff]
    %v2736 = vld [vmem:[#allocation11 + $0x2a8] sm:$0xff]
    %v2737 = vld [vmem:[#allocation11 + $0x2b0] sm:$0xff]
    %v2738 = vld [vmem:[#allocation11 + $0x2b8] sm:$0xf]
    %v2739 = vld [vmem:[#allocation11 + $0x2bc] sm:$0xff]
    %v2740 = vld [vmem:[#allocation11 + $0x2c4] sm:$0xff]
    %v2741 = vld [vmem:[#allocation11 + $0x2cc] sm:$0xff]
    %v2742 = vld [vmem:[#allocation11 + $0x2d4] sm:$0xf]
    %v2743 = vld [vmem:[#allocation11 + $0x2d8] sm:$0xff]
    %v2744 = vld [vmem:[#allocation11 + $0x2e0] sm:$0xff]
    %v2745 = vld [vmem:[#allocation11 + $0x2e8] sm:$0xff]
    %v2746 = vld [vmem:[#allocation11 + $0x2f0] sm:$0xf]
    %v2747 = vld [vmem:[#allocation11 + $0x2f4] sm:$0xff]
    %v2748 = vld [vmem:[#allocation11 + $0x2fc] sm:$0xff]
    %v2749 = vld [vmem:[#allocation11 + $0x304] sm:$0xff]
    %v2750 = vld [vmem:[#allocation11 + $0x30c] sm:$0xf]
    %v2751 = vld [vmem:[#allocation11 + $0x310] sm:$0xff]
    %v2752 = vld [vmem:[#allocation11 + $0x318] sm:$0xff]
    %v2753 = vld [vmem:[#allocation11 + $0x320] sm:$0xff]
    %v2754 = vld [vmem:[#allocation11 + $0x328] sm:$0xf]
    %v2755 = vld [vmem:[#allocation11 + $0x32c] sm:$0xff]
    %v2756 = vld [vmem:[#allocation11 + $0x334] sm:$0xff]
    %v2757 = vld [vmem:[#allocation11 + $0x33c] sm:$0xff]
    %v2758 = vld [vmem:[#allocation11 + $0x344] sm:$0xf]
    %v2759 = vld [vmem:[#allocation11 + $0x348] sm:$0xff]
    %v2760 = vld [vmem:[#allocation11 + $0x350] sm:$0xff]
    %v2761 = vld [vmem:[#allocation11 + $0x358] sm:$0xff]
    %v2762 = vld [vmem:[#allocation11 + $0x360] sm:$0xf]
    %v2763 = vld [vmem:[#allocation11 + $0x364] sm:$0xff]
    %v2764 = vld [vmem:[#allocation11 + $0x36c] sm:$0xff]
    %v2765 = vld [vmem:[#allocation11 + $0x374] sm:$0xff]
    %v2766 = vld [vmem:[#allocation11 + $0x37c] sm:$0xf]
    %v2767 = vld [vmem:[#allocation11 + $0x380] sm:$0xff]
    %v2768 = vld [vmem:[#allocation11 + $0x388] sm:$0xff]
    %v2769 = vld [vmem:[#allocation11 + $0x390] sm:$0xff]
    %v2770 = vld [vmem:[#allocation11 + $0x398] sm:$0xf]
    %v2771 = vld [vmem:[#allocation11 + $0x39c] sm:$0xff]
    %v2772 = vld [vmem:[#allocation11 + $0x3a4] sm:$0xff]
    %v2773 = vld [vmem:[#allocation11 + $0x3ac] sm:$0xff]
    %v2774 = vld [vmem:[#allocation11 + $0x3b4] sm:$0xf]
    %v2775 = vld [vmem:[#allocation11 + $0x3b8] sm:$0xff]
    %v2776 = vld [vmem:[#allocation11 + $0x3c0] sm:$0xff]
    %v2777 = vld [vmem:[#allocation11 + $0x3c8] sm:$0xff]
    %v2778 = vld [vmem:[#allocation11 + $0x3d0] sm:$0xf]
    %v2779 = vld [vmem:[#allocation11 + $0x3d4] sm:$0xff]
    %v2780 = vld [vmem:[#allocation11 + $0x3dc] sm:$0xff]
    %v2781 = vld [vmem:[#allocation11 + $0x3e4] sm:$0xff]
    %v2782 = vld [vmem:[#allocation11 + $0x3ec] sm:$0xf]
    %v2783 = vld [vmem:[#allocation11 + $0x3f0] sm:$0xff]
    %v2784 = vld [vmem:[#allocation11 + $0x3f8] sm:$0xff]
    %v2785 = vld [vmem:[#allocation11 + $0x400] sm:$0xff]
    %v2786 = vld [vmem:[#allocation11 + $0x408] sm:$0xf]
    %v2787 = vld [vmem:[#allocation11 + $0x40c] sm:$0xff]
    %v2788 = vld [vmem:[#allocation11 + $0x414] sm:$0xff]
    %v2789 = vld [vmem:[#allocation11 + $0x41c] sm:$0xff]
    %v2790 = vld [vmem:[#allocation11 + $0x424] sm:$0xf]
    %v2791 = vld [vmem:[#allocation11 + $0x428] sm:$0xff]
    %v2792 = vld [vmem:[#allocation11 + $0x430] sm:$0xff]
    %v2793 = vld [vmem:[#allocation11 + $0x438] sm:$0xff]
    %v2794 = vld [vmem:[#allocation11 + $0x440] sm:$0xf]
    %v2795 = vld [vmem:[#allocation11 + $0x444] sm:$0xff]
    %v2796 = vld [vmem:[#allocation11 + $0x44c] sm:$0xff]
    %v2797 = vld [vmem:[#allocation11 + $0x454] sm:$0xff]
    %v2798 = vld [vmem:[#allocation11 + $0x45c] sm:$0xf]
    %v2799 = vld [vmem:[#allocation11 + $0x460] sm:$0xff]
    %v2800 = vld [vmem:[#allocation11 + $0x468] sm:$0xff]
    %v2801 = vld [vmem:[#allocation11 + $0x470] sm:$0xff]
    %v2802 = vld [vmem:[#allocation11 + $0x478] sm:$0xf]
    %v2803 = vld [vmem:[#allocation11 + $0x47c] sm:$0xff]
    %v2804 = vld [vmem:[#allocation11 + $0x484] sm:$0xff]
    %v2805 = vld [vmem:[#allocation11 + $0x48c] sm:$0xff]
    %v2806 = vld [vmem:[#allocation11 + $0x494] sm:$0xf]
    %v2807 = vld [vmem:[#allocation11 + $0x498] sm:$0xff]
    %v2808 = vld [vmem:[#allocation11 + $0x4a0] sm:$0xff]
    %v2809 = vld [vmem:[#allocation11 + $0x4a8] sm:$0xff]
    %v2810 = vld [vmem:[#allocation11 + $0x4b0] sm:$0xf]
    %v2811 = vld [vmem:[#allocation11 + $0x4b4] sm:$0xff]
    %v2812 = vld [vmem:[#allocation11 + $0x4bc] sm:$0xff]
    %v2813 = vld [vmem:[#allocation11 + $0x4c4] sm:$0xff]
    %v2814 = vld [vmem:[#allocation11 + $0x4cc] sm:$0xf]
    %v2815 = vld [vmem:[#allocation11 + $0x4d0] sm:$0xff]
    %v2816 = vld [vmem:[#allocation11 + $0x4d8] sm:$0xff]
    %v2817 = vld [vmem:[#allocation11 + $0x4e0] sm:$0xff]
    %v2818 = vld [vmem:[#allocation11 + $0x4e8] sm:$0xf]
    %v2819 = vld [vmem:[#allocation11 + $0x4ec] sm:$0xff]
    %v2820 = vld [vmem:[#allocation11 + $0x4f4] sm:$0xff]
    %v2821 = vld [vmem:[#allocation11 + $0x4fc] sm:$0xff]
    %v2822 = vld [vmem:[#allocation11 + $0x504] sm:$0xf]
    %v2823 = vld [vmem:[#allocation11 + $0x508] sm:$0xff]
    %v2824 = vld [vmem:[#allocation11 + $0x510] sm:$0xff]
    %v2825 = vld [vmem:[#allocation11 + $0x518] sm:$0xff]
    %v2826 = vld [vmem:[#allocation11 + $0x520] sm:$0xf]
    %v2827 = vld [vmem:[#allocation11 + $0x524] sm:$0xff]
    %v2828 = vld [vmem:[#allocation11 + $0x52c] sm:$0xff]
    %v2829 = vld [vmem:[#allocation11 + $0x534] sm:$0xff]
    %v2830 = vld [vmem:[#allocation11 + $0x53c] sm:$0xf]
    %v2831 = vld [vmem:[#allocation11 + $0x540] sm:$0xff]
    %v2832 = vld [vmem:[#allocation11 + $0x548] sm:$0xff]
    %v2833 = vld [vmem:[#allocation11 + $0x550] sm:$0xff]
    %v2834 = vld [vmem:[#allocation11 + $0x558] sm:$0xf]
    %v2835 = vld [vmem:[#allocation11 + $0x55c] sm:$0xff]
    %v2836 = vld [vmem:[#allocation11 + $0x564] sm:$0xff]
    %v2837 = vld [vmem:[#allocation11 + $0x56c] sm:$0xff]
    %v2838 = vld [vmem:[#allocation11 + $0x574] sm:$0xf]
    %v2839 = vld [vmem:[#allocation11 + $0x578] sm:$0xff]
    %v2840 = vld [vmem:[#allocation11 + $0x580] sm:$0xff]
    %v2841 = vld [vmem:[#allocation11 + $0x588] sm:$0xff]
    %v2842 = vld [vmem:[#allocation11 + $0x590] sm:$0xf]
    %v2843 = vld [vmem:[#allocation11 + $0x594] sm:$0xff]
    %v2844 = vld [vmem:[#allocation11 + $0x59c] sm:$0xff]
    %v2845 = vld [vmem:[#allocation11 + $0x5a4] sm:$0xff]
    %v2846 = vld [vmem:[#allocation11 + $0x5ac] sm:$0xf]
    %v2847 = vld [vmem:[#allocation11 + $0x5b0] sm:$0xff]
    %v2848 = vld [vmem:[#allocation11 + $0x5b8] sm:$0xff]
    %v2849 = vld [vmem:[#allocation11 + $0x5c0] sm:$0xff]
    %v2850 = vld [vmem:[#allocation11 + $0x5c8] sm:$0xf]
    %v2851 = vld [vmem:[#allocation11 + $0x5cc] sm:$0xff]
    %v2852 = vld [vmem:[#allocation11 + $0x5d4] sm:$0xff]
    %v2853 = vld [vmem:[#allocation11 + $0x5dc] sm:$0xff]
    %v2854 = vld [vmem:[#allocation11 + $0x5e4] sm:$0xf]
    %v2855 = vld [vmem:[#allocation11 + $0x5e8] sm:$0xff]
    %v2856 = vld [vmem:[#allocation11 + $0x5f0] sm:$0xff]
    %v2857 = vld [vmem:[#allocation11 + $0x5f8] sm:$0xff]
    %v2858 = vld [vmem:[#allocation11 + $0x600] sm:$0xf]
    %v2859 = vld [vmem:[#allocation11 + $0x604] sm:$0xff]
    %v2860 = vld [vmem:[#allocation11 + $0x60c] sm:$0xff]
    %v2861 = vld [vmem:[#allocation11 + $0x614] sm:$0xff]
    %v2862 = vld [vmem:[#allocation11 + $0x61c] sm:$0xf]
    %v2863 = vld [vmem:[#allocation11 + $0x620] sm:$0xff]
    %v2864 = vld [vmem:[#allocation11 + $0x628] sm:$0xff]
    %v2865 = vld [vmem:[#allocation11 + $0x630] sm:$0xff]
    %v2866 = vld [vmem:[#allocation11 + $0x638] sm:$0xf]
    %v2867 = vld [vmem:[#allocation11 + $0x63c] sm:$0xff]
    %v2868 = vld [vmem:[#allocation11 + $0x644] sm:$0xff]
    %v2869 = vld [vmem:[#allocation11 + $0x64c] sm:$0xff]
    %v2870 = vld [vmem:[#allocation11 + $0x654] sm:$0xf]
    %v2871 = vld [vmem:[#allocation11 + $0x658] sm:$0xff]
    %v2872 = vld [vmem:[#allocation11 + $0x660] sm:$0xff]
    %v2873 = vld [vmem:[#allocation11 + $0x668] sm:$0xff]
    %v2874 = vld [vmem:[#allocation11 + $0x670] sm:$0xf]
    %v2875 = vld [vmem:[#allocation11 + $0x674] sm:$0xff]
    %v2876 = vld [vmem:[#allocation11 + $0x67c] sm:$0xff]
    %v2877 = vld [vmem:[#allocation11 + $0x684] sm:$0xff]
    %v2878 = vld [vmem:[#allocation11 + $0x68c] sm:$0xf]
    %v2879 = vld [vmem:[#allocation11 + $0x690] sm:$0xff]
    %v2880 = vld [vmem:[#allocation11 + $0x698] sm:$0xff]
    %v2881 = vld [vmem:[#allocation11 + $0x6a0] sm:$0xff]
    %v2882 = vld [vmem:[#allocation11 + $0x6a8] sm:$0xf]
    %v2883 = vld [vmem:[#allocation11 + $0x6ac] sm:$0xff]
    %v2884 = vld [vmem:[#allocation11 + $0x6b4] sm:$0xff]
    %v2885 = vld [vmem:[#allocation11 + $0x6bc] sm:$0xff]
    %v2886 = vld [vmem:[#allocation11 + $0x6c4] sm:$0xf]
    %v2887 = vld [vmem:[#allocation11 + $0x6c8] sm:$0xff]
    %v2888 = vld [vmem:[#allocation11 + $0x6d0] sm:$0xff]
    %v2889 = vld [vmem:[#allocation11 + $0x6d8] sm:$0xff]
    %v2890 = vld [vmem:[#allocation11 + $0x6e0] sm:$0xf]
    %v2891 = vld [vmem:[#allocation11 + $0x6e4] sm:$0xff]
    %v2892 = vld [vmem:[#allocation11 + $0x6ec] sm:$0xff]
    %v2893 = vld [vmem:[#allocation11 + $0x6f4] sm:$0xff]
    %v2894 = vld [vmem:[#allocation11 + $0x6fc] sm:$0xf]
    %v2895 = vld [vmem:[%s9] sm:$0xff]
    %v2897 = vlaneseq
    %v2898 = vshrl.u32 %v2897, 7
    %v2899 = vsub.s32 0, %v2898
    %v2900 = vrot.slane %v2895, %v2899
    %v2901 = vlaneseq
    %v2902 = vshrl.u32 %v2901, 7
    %v2903 = vsub.s32 1, %v2902
    %v2904 = vrot.slane %v2895, %v2903
    %v2905 = vlaneseq
    %v2906 = vshrl.u32 %v2905, 7
    %v2907 = vsub.s32 2, %v2906
    %v2908 = vrot.slane %v2895, %v2907
    %v2909 = vlaneseq
    %v2910 = vshrl.u32 %v2909, 7
    %v2911 = vsub.s32 3, %v2910
    %v2912 = vrot.slane %v2895, %v2911
    %v2913 = vlaneseq
    %v2914 = vshrl.u32 %v2913, 7
    %v2915 = vsub.s32 4, %v2914
    %v2916 = vrot.slane %v2895, %v2915
    %v2917 = vlaneseq
    %v2918 = vshrl.u32 %v2917, 7
    %v2919 = vsub.s32 5, %v2918
    %v2920 = vrot.slane %v2895, %v2919
    %v2921 = vlaneseq
    %v2922 = vshrl.u32 %v2921, 7
    %v2923 = vsub.s32 6, %v2922
    %v2924 = vrot.slane %v2895, %v2923
    %v3188 = vunpack.c.l.b16 %v2639
    %v3189 = vunpack.c.h.b16 %v2639
    %v3190 = vunpack.c.l.b16 %v2640
    %v3191 = vunpack.c.h.b16 %v2640
    %v3192 = vunpack.c.l.b16 %v2641
    %v3193 = vunpack.c.h.b16 %v2641
    %v3194 = vunpack.c.l.b16 %v2642
    %v3195 = vunpack.c.l.b16 %v2643
    %v3196 = vunpack.c.h.b16 %v2643
    %v3197 = vunpack.c.l.b16 %v2644
    %v3198 = vunpack.c.h.b16 %v2644
    %v3199 = vunpack.c.l.b16 %v2645
    %v3200 = vunpack.c.h.b16 %v2645
    %v3201 = vunpack.c.l.b16 %v2646
    %v3202 = vunpack.c.l.b16 %v2647
    %v3203 = vunpack.c.h.b16 %v2647
    %v3204 = vunpack.c.l.b16 %v2648
    %v3205 = vunpack.c.h.b16 %v2648
    %v3206 = vunpack.c.l.b16 %v2649
    %v3207 = vunpack.c.h.b16 %v2649
    %v3208 = vunpack.c.l.b16 %v2650
    %v3209 = vunpack.c.l.b16 %v2651
    %v3210 = vunpack.c.h.b16 %v2651
    %v3211 = vunpack.c.l.b16 %v2652
    %v3212 = vunpack.c.h.b16 %v2652
    %v3213 = vunpack.c.l.b16 %v2653
    %v3214 = vunpack.c.h.b16 %v2653
    %v3215 = vunpack.c.l.b16 %v2654
    %v3216 = vunpack.c.l.b16 %v2655
    %v3217 = vunpack.c.h.b16 %v2655
    %v3218 = vunpack.c.l.b16 %v2656
    %v3219 = vunpack.c.h.b16 %v2656
    %v3220 = vunpack.c.l.b16 %v2657
    %v3221 = vunpack.c.h.b16 %v2657
    %v3222 = vunpack.c.l.b16 %v2658
    %v3223 = vunpack.c.l.b16 %v2659
    %v3224 = vunpack.c.h.b16 %v2659
    %v3225 = vunpack.c.l.b16 %v2660
    %v3226 = vunpack.c.h.b16 %v2660
    %v3227 = vunpack.c.l.b16 %v2661
    %v3228 = vunpack.c.h.b16 %v2661
    %v3229 = vunpack.c.l.b16 %v2662
    %v3230 = vunpack.c.l.b16 %v2663
    %v3231 = vunpack.c.h.b16 %v2663
    %v3232 = vunpack.c.l.b16 %v2664
    %v3233 = vunpack.c.h.b16 %v2664
    %v3234 = vunpack.c.l.b16 %v2665
    %v3235 = vunpack.c.h.b16 %v2665
    %v3236 = vunpack.c.l.b16 %v2666
    %v3237 = vunpack.c.l.b16 %v2667
    %v3238 = vunpack.c.h.b16 %v2667
    %v3239 = vunpack.c.l.b16 %v2668
    %v3240 = vunpack.c.h.b16 %v2668
    %v3241 = vunpack.c.l.b16 %v2669
    %v3242 = vunpack.c.h.b16 %v2669
    %v3243 = vunpack.c.l.b16 %v2670
    %v3244 = vunpack.c.l.b16 %v2671
    %v3245 = vunpack.c.h.b16 %v2671
    %v3246 = vunpack.c.l.b16 %v2672
    %v3247 = vunpack.c.h.b16 %v2672
    %v3248 = vunpack.c.l.b16 %v2673
    %v3249 = vunpack.c.h.b16 %v2673
    %v3250 = vunpack.c.l.b16 %v2674
    %v3251 = vunpack.c.l.b16 %v2675
    %v3252 = vunpack.c.h.b16 %v2675
    %v3253 = vunpack.c.l.b16 %v2676
    %v3254 = vunpack.c.h.b16 %v2676
    %v3255 = vunpack.c.l.b16 %v2677
    %v3256 = vunpack.c.h.b16 %v2677
    %v3257 = vunpack.c.l.b16 %v2678
    %v3258 = vunpack.c.l.b16 %v2679
    %v3259 = vunpack.c.h.b16 %v2679
    %v3260 = vunpack.c.l.b16 %v2680
    %v3261 = vunpack.c.h.b16 %v2680
    %v3262 = vunpack.c.l.b16 %v2681
    %v3263 = vunpack.c.h.b16 %v2681
    %v3264 = vunpack.c.l.b16 %v2682
    %v3265 = vunpack.c.l.b16 %v2683
    %v3266 = vunpack.c.h.b16 %v2683
    %v3267 = vunpack.c.l.b16 %v2684
    %v3268 = vunpack.c.h.b16 %v2684
    %v3269 = vunpack.c.l.b16 %v2685
    %v3270 = vunpack.c.h.b16 %v2685
    %v3271 = vunpack.c.l.b16 %v2686
    %v3272 = vunpack.c.l.b16 %v2687
    %v3273 = vunpack.c.h.b16 %v2687
    %v3274 = vunpack.c.l.b16 %v2688
    %v3275 = vunpack.c.h.b16 %v2688
    %v3276 = vunpack.c.l.b16 %v2689
    %v3277 = vunpack.c.h.b16 %v2689
    %v3278 = vunpack.c.l.b16 %v2690
    %v3279 = vunpack.c.l.b16 %v2691
    %v3280 = vunpack.c.h.b16 %v2691
    %v3281 = vunpack.c.l.b16 %v2692
    %v3282 = vunpack.c.h.b16 %v2692
    %v3283 = vunpack.c.l.b16 %v2693
    %v3284 = vunpack.c.h.b16 %v2693
    %v3285 = vunpack.c.l.b16 %v2694
    %v3286 = vunpack.c.l.b16 %v2695
    %v3287 = vunpack.c.h.b16 %v2695
    %v3288 = vunpack.c.l.b16 %v2696
    %v3289 = vunpack.c.h.b16 %v2696
    %v3290 = vunpack.c.l.b16 %v2697
    %v3291 = vunpack.c.h.b16 %v2697
    %v3292 = vunpack.c.l.b16 %v2698
    %v3293 = vunpack.c.l.b16 %v2699
    %v3294 = vunpack.c.h.b16 %v2699
    %v3295 = vunpack.c.l.b16 %v2700
    %v3296 = vunpack.c.h.b16 %v2700
    %v3297 = vunpack.c.l.b16 %v2701
    %v3298 = vunpack.c.h.b16 %v2701
    %v3299 = vunpack.c.l.b16 %v2702
    %v3300 = vunpack.c.l.b16 %v2703
    %v3301 = vunpack.c.h.b16 %v2703
    %v3302 = vunpack.c.l.b16 %v2704
    %v3303 = vunpack.c.h.b16 %v2704
    %v3304 = vunpack.c.l.b16 %v2705
    %v3305 = vunpack.c.h.b16 %v2705
    %v3306 = vunpack.c.l.b16 %v2706
    %v3307 = vunpack.c.l.b16 %v2707
    %v3308 = vunpack.c.h.b16 %v2707
    %v3309 = vunpack.c.l.b16 %v2708
    %v3310 = vunpack.c.h.b16 %v2708
    %v3311 = vunpack.c.l.b16 %v2709
    %v3312 = vunpack.c.h.b16 %v2709
    %v3313 = vunpack.c.l.b16 %v2710
    %v3314 = vunpack.c.l.b16 %v2711
    %v3315 = vunpack.c.h.b16 %v2711
    %v3316 = vunpack.c.l.b16 %v2712
    %v3317 = vunpack.c.h.b16 %v2712
    %v3318 = vunpack.c.l.b16 %v2713
    %v3319 = vunpack.c.h.b16 %v2713
    %v3320 = vunpack.c.l.b16 %v2714
    %v3321 = vunpack.c.l.b16 %v2715
    %v3322 = vunpack.c.h.b16 %v2715
    %v3323 = vunpack.c.l.b16 %v2716
    %v3324 = vunpack.c.h.b16 %v2716
    %v3325 = vunpack.c.l.b16 %v2717
    %v3326 = vunpack.c.h.b16 %v2717
    %v3327 = vunpack.c.l.b16 %v2718
    %v3328 = vunpack.c.l.b16 %v2719
    %v3329 = vunpack.c.h.b16 %v2719
    %v3330 = vunpack.c.l.b16 %v2720
    %v3331 = vunpack.c.h.b16 %v2720
    %v3332 = vunpack.c.l.b16 %v2721
    %v3333 = vunpack.c.h.b16 %v2721
    %v3334 = vunpack.c.l.b16 %v2722
    %v3335 = vunpack.c.l.b16 %v2723
    %v3336 = vunpack.c.h.b16 %v2723
    %v3337 = vunpack.c.l.b16 %v2724
    %v3338 = vunpack.c.h.b16 %v2724
    %v3339 = vunpack.c.l.b16 %v2725
    %v3340 = vunpack.c.h.b16 %v2725
    %v3341 = vunpack.c.l.b16 %v2726
    %v3342 = vunpack.c.l.b16 %v2727
    %v3343 = vunpack.c.h.b16 %v2727
    %v3344 = vunpack.c.l.b16 %v2728
    %v3345 = vunpack.c.h.b16 %v2728
    %v3346 = vunpack.c.l.b16 %v2729
    %v3347 = vunpack.c.h.b16 %v2729
    %v3348 = vunpack.c.l.b16 %v2730
    %v3349 = vunpack.c.l.b16 %v2731
    %v3350 = vunpack.c.h.b16 %v2731
    %v3351 = vunpack.c.l.b16 %v2732
    %v3352 = vunpack.c.h.b16 %v2732
    %v3353 = vunpack.c.l.b16 %v2733
    %v3354 = vunpack.c.h.b16 %v2733
    %v3355 = vunpack.c.l.b16 %v2734
    %v3356 = vunpack.c.l.b16 %v2735
    %v3357 = vunpack.c.h.b16 %v2735
    %v3358 = vunpack.c.l.b16 %v2736
    %v3359 = vunpack.c.h.b16 %v2736
    %v3360 = vunpack.c.l.b16 %v2737
    %v3361 = vunpack.c.h.b16 %v2737
    %v3362 = vunpack.c.l.b16 %v2738
    %v3363 = vunpack.c.l.b16 %v2739
    %v3364 = vunpack.c.h.b16 %v2739
    %v3365 = vunpack.c.l.b16 %v2740
    %v3366 = vunpack.c.h.b16 %v2740
    %v3367 = vunpack.c.l.b16 %v2741
    %v3368 = vunpack.c.h.b16 %v2741
    %v3369 = vunpack.c.l.b16 %v2742
    %v3370 = vunpack.c.l.b16 %v2743
    %v3371 = vunpack.c.h.b16 %v2743
    %v3372 = vunpack.c.l.b16 %v2744
    %v3373 = vunpack.c.h.b16 %v2744
    %v3374 = vunpack.c.l.b16 %v2745
    %v3375 = vunpack.c.h.b16 %v2745
    %v3376 = vunpack.c.l.b16 %v2746
    %v3377 = vunpack.c.l.b16 %v2747
    %v3378 = vunpack.c.h.b16 %v2747
    %v3379 = vunpack.c.l.b16 %v2748
    %v3380 = vunpack.c.h.b16 %v2748
    %v3381 = vunpack.c.l.b16 %v2749
    %v3382 = vunpack.c.h.b16 %v2749
    %v3383 = vunpack.c.l.b16 %v2750
    %v3384 = vunpack.c.l.b16 %v2751
    %v3385 = vunpack.c.h.b16 %v2751
    %v3386 = vunpack.c.l.b16 %v2752
    %v3387 = vunpack.c.h.b16 %v2752
    %v3388 = vunpack.c.l.b16 %v2753
    %v3389 = vunpack.c.h.b16 %v2753
    %v3390 = vunpack.c.l.b16 %v2754
    %v3391 = vunpack.c.l.b16 %v2755
    %v3392 = vunpack.c.h.b16 %v2755
    %v3393 = vunpack.c.l.b16 %v2756
    %v3394 = vunpack.c.h.b16 %v2756
    %v3395 = vunpack.c.l.b16 %v2757
    %v3396 = vunpack.c.h.b16 %v2757
    %v3397 = vunpack.c.l.b16 %v2758
    %v3398 = vunpack.c.l.b16 %v2759
    %v3399 = vunpack.c.h.b16 %v2759
    %v3400 = vunpack.c.l.b16 %v2760
    %v3401 = vunpack.c.h.b16 %v2760
    %v3402 = vunpack.c.l.b16 %v2761
    %v3403 = vunpack.c.h.b16 %v2761
    %v3404 = vunpack.c.l.b16 %v2762
    %v3405 = vunpack.c.l.b16 %v2763
    %v3406 = vunpack.c.h.b16 %v2763
    %v3407 = vunpack.c.l.b16 %v2764
    %v3408 = vunpack.c.h.b16 %v2764
    %v3409 = vunpack.c.l.b16 %v2765
    %v3410 = vunpack.c.h.b16 %v2765
    %v3411 = vunpack.c.l.b16 %v2766
    %v3412 = vunpack.c.l.b16 %v2767
    %v3413 = vunpack.c.h.b16 %v2767
    %v3414 = vunpack.c.l.b16 %v2768
    %v3415 = vunpack.c.h.b16 %v2768
    %v3416 = vunpack.c.l.b16 %v2769
    %v3417 = vunpack.c.h.b16 %v2769
    %v3418 = vunpack.c.l.b16 %v2770
    %v3419 = vunpack.c.l.b16 %v2771
    %v3420 = vunpack.c.h.b16 %v2771
    %v3421 = vunpack.c.l.b16 %v2772
    %v3422 = vunpack.c.h.b16 %v2772
    %v3423 = vunpack.c.l.b16 %v2773
    %v3424 = vunpack.c.h.b16 %v2773
    %v3425 = vunpack.c.l.b16 %v2774
    %v3426 = vunpack.c.l.b16 %v2775
    %v3427 = vunpack.c.h.b16 %v2775
    %v3428 = vunpack.c.l.b16 %v2776
    %v3429 = vunpack.c.h.b16 %v2776
    %v3430 = vunpack.c.l.b16 %v2777
    %v3431 = vunpack.c.h.b16 %v2777
    %v3432 = vunpack.c.l.b16 %v2778
    %v3433 = vunpack.c.l.b16 %v2779
    %v3434 = vunpack.c.h.b16 %v2779
    %v3435 = vunpack.c.l.b16 %v2780
    %v3436 = vunpack.c.h.b16 %v2780
    %v3437 = vunpack.c.l.b16 %v2781
    %v3438 = vunpack.c.h.b16 %v2781
    %v3439 = vunpack.c.l.b16 %v2782
    %v3440 = vunpack.c.l.b16 %v2783
    %v3441 = vunpack.c.h.b16 %v2783
    %v3442 = vunpack.c.l.b16 %v2784
    %v3443 = vunpack.c.h.b16 %v2784
    %v3444 = vunpack.c.l.b16 %v2785
    %v3445 = vunpack.c.h.b16 %v2785
    %v3446 = vunpack.c.l.b16 %v2786
    %v3447 = vunpack.c.l.b16 %v2787
    %v3448 = vunpack.c.h.b16 %v2787
    %v3449 = vunpack.c.l.b16 %v2788
    %v3450 = vunpack.c.h.b16 %v2788
    %v3451 = vunpack.c.l.b16 %v2789
    %v3452 = vunpack.c.h.b16 %v2789
    %v3453 = vunpack.c.l.b16 %v2790
    %v3454 = vunpack.c.l.b16 %v2791
    %v3455 = vunpack.c.h.b16 %v2791
    %v3456 = vunpack.c.l.b16 %v2792
    %v3457 = vunpack.c.h.b16 %v2792
    %v3458 = vunpack.c.l.b16 %v2793
    %v3459 = vunpack.c.h.b16 %v2793
    %v3460 = vunpack.c.l.b16 %v2794
    %v3461 = vunpack.c.l.b16 %v2795
    %v3462 = vunpack.c.h.b16 %v2795
    %v3463 = vunpack.c.l.b16 %v2796
    %v3464 = vunpack.c.h.b16 %v2796
    %v3465 = vunpack.c.l.b16 %v2797
    %v3466 = vunpack.c.h.b16 %v2797
    %v3467 = vunpack.c.l.b16 %v2798
    %v3468 = vunpack.c.l.b16 %v2799
    %v3469 = vunpack.c.h.b16 %v2799
    %v3470 = vunpack.c.l.b16 %v2800
    %v3471 = vunpack.c.h.b16 %v2800
    %v3472 = vunpack.c.l.b16 %v2801
    %v3473 = vunpack.c.h.b16 %v2801
    %v3474 = vunpack.c.l.b16 %v2802
    %v3475 = vunpack.c.l.b16 %v2803
    %v3476 = vunpack.c.h.b16 %v2803
    %v3477 = vunpack.c.l.b16 %v2804
    %v3478 = vunpack.c.h.b16 %v2804
    %v3479 = vunpack.c.l.b16 %v2805
    %v3480 = vunpack.c.h.b16 %v2805
    %v3481 = vunpack.c.l.b16 %v2806
    %v3482 = vunpack.c.l.b16 %v2807
    %v3483 = vunpack.c.h.b16 %v2807
    %v3484 = vunpack.c.l.b16 %v2808
    %v3485 = vunpack.c.h.b16 %v2808
    %v3486 = vunpack.c.l.b16 %v2809
    %v3487 = vunpack.c.h.b16 %v2809
    %v3488 = vunpack.c.l.b16 %v2810
    %v3489 = vunpack.c.l.b16 %v2811
    %v3490 = vunpack.c.h.b16 %v2811
    %v3491 = vunpack.c.l.b16 %v2812
    %v3492 = vunpack.c.h.b16 %v2812
    %v3493 = vunpack.c.l.b16 %v2813
    %v3494 = vunpack.c.h.b16 %v2813
    %v3495 = vunpack.c.l.b16 %v2814
    %v3496 = vunpack.c.l.b16 %v2815
    %v3497 = vunpack.c.h.b16 %v2815
    %v3498 = vunpack.c.l.b16 %v2816
    %v3499 = vunpack.c.h.b16 %v2816
    %v3500 = vunpack.c.l.b16 %v2817
    %v3501 = vunpack.c.h.b16 %v2817
    %v3502 = vunpack.c.l.b16 %v2818
    %v3503 = vunpack.c.l.b16 %v2819
    %v3504 = vunpack.c.h.b16 %v2819
    %v3505 = vunpack.c.l.b16 %v2820
    %v3506 = vunpack.c.h.b16 %v2820
    %v3507 = vunpack.c.l.b16 %v2821
    %v3508 = vunpack.c.h.b16 %v2821
    %v3509 = vunpack.c.l.b16 %v2822
    %v3510 = vunpack.c.l.b16 %v2823
    %v3511 = vunpack.c.h.b16 %v2823
    %v3512 = vunpack.c.l.b16 %v2824
    %v3513 = vunpack.c.h.b16 %v2824
    %v3514 = vunpack.c.l.b16 %v2825
    %v3515 = vunpack.c.h.b16 %v2825
    %v3516 = vunpack.c.l.b16 %v2826
    %v3517 = vunpack.c.l.b16 %v2827
    %v3518 = vunpack.c.h.b16 %v2827
    %v3519 = vunpack.c.l.b16 %v2828
    %v3520 = vunpack.c.h.b16 %v2828
    %v3521 = vunpack.c.l.b16 %v2829
    %v3522 = vunpack.c.h.b16 %v2829
    %v3523 = vunpack.c.l.b16 %v2830
    %v3524 = vunpack.c.l.b16 %v2831
    %v3525 = vunpack.c.h.b16 %v2831
    %v3526 = vunpack.c.l.b16 %v2832
    %v3527 = vunpack.c.h.b16 %v2832
    %v3528 = vunpack.c.l.b16 %v2833
    %v3529 = vunpack.c.h.b16 %v2833
    %v3530 = vunpack.c.l.b16 %v2834
    %v3531 = vunpack.c.l.b16 %v2835
    %v3532 = vunpack.c.h.b16 %v2835
    %v3533 = vunpack.c.l.b16 %v2836
    %v3534 = vunpack.c.h.b16 %v2836
    %v3535 = vunpack.c.l.b16 %v2837
    %v3536 = vunpack.c.h.b16 %v2837
    %v3537 = vunpack.c.l.b16 %v2838
    %v3538 = vunpack.c.l.b16 %v2839
    %v3539 = vunpack.c.h.b16 %v2839
    %v3540 = vunpack.c.l.b16 %v2840
    %v3541 = vunpack.c.h.b16 %v2840
    %v3542 = vunpack.c.l.b16 %v2841
    %v3543 = vunpack.c.h.b16 %v2841
    %v3544 = vunpack.c.l.b16 %v2842
    %v3545 = vunpack.c.l.b16 %v2843
    %v3546 = vunpack.c.h.b16 %v2843
    %v3547 = vunpack.c.l.b16 %v2844
    %v3548 = vunpack.c.h.b16 %v2844
    %v3549 = vunpack.c.l.b16 %v2845
    %v3550 = vunpack.c.h.b16 %v2845
    %v3551 = vunpack.c.l.b16 %v2846
    %v3552 = vunpack.c.l.b16 %v2847
    %v3553 = vunpack.c.h.b16 %v2847
    %v3554 = vunpack.c.l.b16 %v2848
    %v3555 = vunpack.c.h.b16 %v2848
    %v3556 = vunpack.c.l.b16 %v2849
    %v3557 = vunpack.c.h.b16 %v2849
    %v3558 = vunpack.c.l.b16 %v2850
    %v3559 = vunpack.c.l.b16 %v2851
    %v3560 = vunpack.c.h.b16 %v2851
    %v3561 = vunpack.c.l.b16 %v2852
    %v3562 = vunpack.c.h.b16 %v2852
    %v3563 = vunpack.c.l.b16 %v2853
    %v3564 = vunpack.c.h.b16 %v2853
    %v3565 = vunpack.c.l.b16 %v2854
    %v3566 = vunpack.c.l.b16 %v2855
    %v3567 = vunpack.c.h.b16 %v2855
    %v3568 = vunpack.c.l.b16 %v2856
    %v3569 = vunpack.c.h.b16 %v2856
    %v3570 = vunpack.c.l.b16 %v2857
    %v3571 = vunpack.c.h.b16 %v2857
    %v3572 = vunpack.c.l.b16 %v2858
    %v3573 = vunpack.c.l.b16 %v2859
    %v3574 = vunpack.c.h.b16 %v2859
    %v3575 = vunpack.c.l.b16 %v2860
    %v3576 = vunpack.c.h.b16 %v2860
    %v3577 = vunpack.c.l.b16 %v2861
    %v3578 = vunpack.c.h.b16 %v2861
    %v3579 = vunpack.c.l.b16 %v2862
    %v3580 = vunpack.c.l.b16 %v2863
    %v3581 = vunpack.c.h.b16 %v2863
    %v3582 = vunpack.c.l.b16 %v2864
    %v3583 = vunpack.c.h.b16 %v2864
    %v3584 = vunpack.c.l.b16 %v2865
    %v3585 = vunpack.c.h.b16 %v2865
    %v3586 = vunpack.c.l.b16 %v2866
    %v3587 = vunpack.c.l.b16 %v2867
    %v3588 = vunpack.c.h.b16 %v2867
    %v3589 = vunpack.c.l.b16 %v2868
    %v3590 = vunpack.c.h.b16 %v2868
    %v3591 = vunpack.c.l.b16 %v2869
    %v3592 = vunpack.c.h.b16 %v2869
    %v3593 = vunpack.c.l.b16 %v2870
    %v3594 = vunpack.c.l.b16 %v2871
    %v3595 = vunpack.c.h.b16 %v2871
    %v3596 = vunpack.c.l.b16 %v2872
    %v3597 = vunpack.c.h.b16 %v2872
    %v3598 = vunpack.c.l.b16 %v2873
    %v3599 = vunpack.c.h.b16 %v2873
    %v3600 = vunpack.c.l.b16 %v2874
    %v3601 = vunpack.c.l.b16 %v2875
    %v3602 = vunpack.c.h.b16 %v2875
    %v3603 = vunpack.c.l.b16 %v2876
    %v3604 = vunpack.c.h.b16 %v2876
    %v3605 = vunpack.c.l.b16 %v2877
    %v3606 = vunpack.c.h.b16 %v2877
    %v3607 = vunpack.c.l.b16 %v2878
    %v3608 = vunpack.c.l.b16 %v2879
    %v3609 = vunpack.c.h.b16 %v2879
    %v3610 = vunpack.c.l.b16 %v2880
    %v3611 = vunpack.c.h.b16 %v2880
    %v3612 = vunpack.c.l.b16 %v2881
    %v3613 = vunpack.c.h.b16 %v2881
    %v3614 = vunpack.c.l.b16 %v2882
    %v3615 = vunpack.c.l.b16 %v2883
    %v3616 = vunpack.c.h.b16 %v2883
    %v3617 = vunpack.c.l.b16 %v2884
    %v3618 = vunpack.c.h.b16 %v2884
    %v3619 = vunpack.c.l.b16 %v2885
    %v3620 = vunpack.c.h.b16 %v2885
    %v3621 = vunpack.c.l.b16 %v2886
    %v3622 = vunpack.c.l.b16 %v2887
    %v3623 = vunpack.c.h.b16 %v2887
    %v3624 = vunpack.c.l.b16 %v2888
    %v3625 = vunpack.c.h.b16 %v2888
    %v3626 = vunpack.c.l.b16 %v2889
    %v3627 = vunpack.c.h.b16 %v2889
    %v3628 = vunpack.c.l.b16 %v2890
    %v3629 = vunpack.c.l.b16 %v2891
    %v3630 = vunpack.c.h.b16 %v2891
    %v3631 = vunpack.c.l.b16 %v2892
    %v3632 = vunpack.c.h.b16 %v2892
    %v3633 = vunpack.c.l.b16 %v2893
    %v3634 = vunpack.c.h.b16 %v2893
    %v3635 = vunpack.c.l.b16 %v2894
    %v3636 = vpack.c.b16 %v3195, %v3188
    %v3637 = vpack.c.b16 %v3196, %v3189
    %v3638 = vpack.c.b16 %v3197, %v3190
    %v3639 = vpack.c.b16 %v3198, %v3191
    %v3640 = vpack.c.b16 %v3199, %v3192
    %v3641 = vpack.c.b16 %v3200, %v3193
    %v3642 = vpack.c.b16 %v3201, %v3194
    %v3643 = vpack.c.b16 %v3209, %v3202
    %v3644 = vpack.c.b16 %v3210, %v3203
    %v3645 = vpack.c.b16 %v3211, %v3204
    %v3646 = vpack.c.b16 %v3212, %v3205
    %v3647 = vpack.c.b16 %v3213, %v3206
    %v3648 = vpack.c.b16 %v3214, %v3207
    %v3649 = vpack.c.b16 %v3215, %v3208
    %v3650 = vpack.c.b16 %v3223, %v3216
    %v3651 = vpack.c.b16 %v3224, %v3217
    %v3652 = vpack.c.b16 %v3225, %v3218
    %v3653 = vpack.c.b16 %v3226, %v3219
    %v3654 = vpack.c.b16 %v3227, %v3220
    %v3655 = vpack.c.b16 %v3228, %v3221
    %v3656 = vpack.c.b16 %v3229, %v3222
    %v3657 = vpack.c.b16 %v3237, %v3230
    %v3658 = vpack.c.b16 %v3238, %v3231
    %v3659 = vpack.c.b16 %v3239, %v3232
    %v3660 = vpack.c.b16 %v3240, %v3233
    %v3661 = vpack.c.b16 %v3241, %v3234
    %v3662 = vpack.c.b16 %v3242, %v3235
    %v3663 = vpack.c.b16 %v3243, %v3236
    %v3664 = vpack.c.b16 %v3251, %v3244
    %v3665 = vpack.c.b16 %v3252, %v3245
    %v3666 = vpack.c.b16 %v3253, %v3246
    %v3667 = vpack.c.b16 %v3254, %v3247
    %v3668 = vpack.c.b16 %v3255, %v3248
    %v3669 = vpack.c.b16 %v3256, %v3249
    %v3670 = vpack.c.b16 %v3257, %v3250
    %v3671 = vpack.c.b16 %v3265, %v3258
    %v3672 = vpack.c.b16 %v3266, %v3259
    %v3673 = vpack.c.b16 %v3267, %v3260
    %v3674 = vpack.c.b16 %v3268, %v3261
    %v3675 = vpack.c.b16 %v3269, %v3262
    %v3676 = vpack.c.b16 %v3270, %v3263
    %v3677 = vpack.c.b16 %v3271, %v3264
    %v3678 = vpack.c.b16 %v3279, %v3272
    %v3679 = vpack.c.b16 %v3280, %v3273
    %v3680 = vpack.c.b16 %v3281, %v3274
    %v3681 = vpack.c.b16 %v3282, %v3275
    %v3682 = vpack.c.b16 %v3283, %v3276
    %v3683 = vpack.c.b16 %v3284, %v3277
    %v3684 = vpack.c.b16 %v3285, %v3278
    %v3685 = vpack.c.b16 %v3293, %v3286
    %v3686 = vpack.c.b16 %v3294, %v3287
    %v3687 = vpack.c.b16 %v3295, %v3288
    %v3688 = vpack.c.b16 %v3296, %v3289
    %v3689 = vpack.c.b16 %v3297, %v3290
    %v3690 = vpack.c.b16 %v3298, %v3291
    %v3691 = vpack.c.b16 %v3299, %v3292
    %v3692 = vpack.c.b16 %v3307, %v3300
    %v3693 = vpack.c.b16 %v3308, %v3301
    %v3694 = vpack.c.b16 %v3309, %v3302
    %v3695 = vpack.c.b16 %v3310, %v3303
    %v3696 = vpack.c.b16 %v3311, %v3304
    %v3697 = vpack.c.b16 %v3312, %v3305
    %v3698 = vpack.c.b16 %v3313, %v3306
    %v3699 = vpack.c.b16 %v3321, %v3314
    %v3700 = vpack.c.b16 %v3322, %v3315
    %v3701 = vpack.c.b16 %v3323, %v3316
    %v3702 = vpack.c.b16 %v3324, %v3317
    %v3703 = vpack.c.b16 %v3325, %v3318
    %v3704 = vpack.c.b16 %v3326, %v3319
    %v3705 = vpack.c.b16 %v3327, %v3320
    %v3706 = vpack.c.b16 %v3335, %v3328
    %v3707 = vpack.c.b16 %v3336, %v3329
    %v3708 = vpack.c.b16 %v3337, %v3330
    %v3709 = vpack.c.b16 %v3338, %v3331
    %v3710 = vpack.c.b16 %v3339, %v3332
    %v3711 = vpack.c.b16 %v3340, %v3333
    %v3712 = vpack.c.b16 %v3341, %v3334
    %v3713 = vpack.c.b16 %v3349, %v3342
    %v3714 = vpack.c.b16 %v3350, %v3343
    %v3715 = vpack.c.b16 %v3351, %v3344
    %v3716 = vpack.c.b16 %v3352, %v3345
    %v3717 = vpack.c.b16 %v3353, %v3346
    %v3718 = vpack.c.b16 %v3354, %v3347
    %v3719 = vpack.c.b16 %v3355, %v3348
    %v3720 = vpack.c.b16 %v3363, %v3356
    %v3721 = vpack.c.b16 %v3364, %v3357
    %v3722 = vpack.c.b16 %v3365, %v3358
    %v3723 = vpack.c.b16 %v3366, %v3359
    %v3724 = vpack.c.b16 %v3367, %v3360
    %v3725 = vpack.c.b16 %v3368, %v3361
    %v3726 = vpack.c.b16 %v3369, %v3362
    %v3727 = vpack.c.b16 %v3377, %v3370
    %v3728 = vpack.c.b16 %v3378, %v3371
    %v3729 = vpack.c.b16 %v3379, %v3372
    %v3730 = vpack.c.b16 %v3380, %v3373
    %v3731 = vpack.c.b16 %v3381, %v3374
    %v3732 = vpack.c.b16 %v3382, %v3375
    %v3733 = vpack.c.b16 %v3383, %v3376
    %v3734 = vpack.c.b16 %v3391, %v3384
    %v3735 = vpack.c.b16 %v3392, %v3385
    %v3736 = vpack.c.b16 %v3393, %v3386
    %v3737 = vpack.c.b16 %v3394, %v3387
    %v3738 = vpack.c.b16 %v3395, %v3388
    %v3739 = vpack.c.b16 %v3396, %v3389
    %v3740 = vpack.c.b16 %v3397, %v3390
    %v3741 = vpack.c.b16 %v3405, %v3398
    %v3742 = vpack.c.b16 %v3406, %v3399
    %v3743 = vpack.c.b16 %v3407, %v3400
    %v3744 = vpack.c.b16 %v3408, %v3401
    %v3745 = vpack.c.b16 %v3409, %v3402
    %v3746 = vpack.c.b16 %v3410, %v3403
    %v3747 = vpack.c.b16 %v3411, %v3404
    %v3748 = vpack.c.b16 %v3419, %v3412
    %v3749 = vpack.c.b16 %v3420, %v3413
    %v3750 = vpack.c.b16 %v3421, %v3414
    %v3751 = vpack.c.b16 %v3422, %v3415
    %v3752 = vpack.c.b16 %v3423, %v3416
    %v3753 = vpack.c.b16 %v3424, %v3417
    %v3754 = vpack.c.b16 %v3425, %v3418
    %v3755 = vpack.c.b16 %v3433, %v3426
    %v3756 = vpack.c.b16 %v3434, %v3427
    %v3757 = vpack.c.b16 %v3435, %v3428
    %v3758 = vpack.c.b16 %v3436, %v3429
    %v3759 = vpack.c.b16 %v3437, %v3430
    %v3760 = vpack.c.b16 %v3438, %v3431
    %v3761 = vpack.c.b16 %v3439, %v3432
    %v3762 = vpack.c.b16 %v3447, %v3440
    %v3763 = vpack.c.b16 %v3448, %v3441
    %v3764 = vpack.c.b16 %v3449, %v3442
    %v3765 = vpack.c.b16 %v3450, %v3443
    %v3766 = vpack.c.b16 %v3451, %v3444
    %v3767 = vpack.c.b16 %v3452, %v3445
    %v3768 = vpack.c.b16 %v3453, %v3446
    %v3769 = vpack.c.b16 %v3461, %v3454
    %v3770 = vpack.c.b16 %v3462, %v3455
    %v3771 = vpack.c.b16 %v3463, %v3456
    %v3772 = vpack.c.b16 %v3464, %v3457
    %v3773 = vpack.c.b16 %v3465, %v3458
    %v3774 = vpack.c.b16 %v3466, %v3459
    %v3775 = vpack.c.b16 %v3467, %v3460
    %v3776 = vpack.c.b16 %v3475, %v3468
    %v3777 = vpack.c.b16 %v3476, %v3469
    %v3778 = vpack.c.b16 %v3477, %v3470
    %v3779 = vpack.c.b16 %v3478, %v3471
    %v3780 = vpack.c.b16 %v3479, %v3472
    %v3781 = vpack.c.b16 %v3480, %v3473
    %v3782 = vpack.c.b16 %v3481, %v3474
    %v3783 = vpack.c.b16 %v3489, %v3482
    %v3784 = vpack.c.b16 %v3490, %v3483
    %v3785 = vpack.c.b16 %v3491, %v3484
    %v3786 = vpack.c.b16 %v3492, %v3485
    %v3787 = vpack.c.b16 %v3493, %v3486
    %v3788 = vpack.c.b16 %v3494, %v3487
    %v3789 = vpack.c.b16 %v3495, %v3488
    %v3790 = vpack.c.b16 %v3503, %v3496
    %v3791 = vpack.c.b16 %v3504, %v3497
    %v3792 = vpack.c.b16 %v3505, %v3498
    %v3793 = vpack.c.b16 %v3506, %v3499
    %v3794 = vpack.c.b16 %v3507, %v3500
    %v3795 = vpack.c.b16 %v3508, %v3501
    %v3796 = vpack.c.b16 %v3509, %v3502
    %v3797 = vpack.c.b16 %v3517, %v3510
    %v3798 = vpack.c.b16 %v3518, %v3511
    %v3799 = vpack.c.b16 %v3519, %v3512
    %v3800 = vpack.c.b16 %v3520, %v3513
    %v3801 = vpack.c.b16 %v3521, %v3514
    %v3802 = vpack.c.b16 %v3522, %v3515
    %v3803 = vpack.c.b16 %v3523, %v3516
    %v3804 = vpack.c.b16 %v3531, %v3524
    %v3805 = vpack.c.b16 %v3532, %v3525
    %v3806 = vpack.c.b16 %v3533, %v3526
    %v3807 = vpack.c.b16 %v3534, %v3527
    %v3808 = vpack.c.b16 %v3535, %v3528
    %v3809 = vpack.c.b16 %v3536, %v3529
    %v3810 = vpack.c.b16 %v3537, %v3530
    %v3811 = vpack.c.b16 %v3545, %v3538
    %v3812 = vpack.c.b16 %v3546, %v3539
    %v3813 = vpack.c.b16 %v3547, %v3540
    %v3814 = vpack.c.b16 %v3548, %v3541
    %v3815 = vpack.c.b16 %v3549, %v3542
    %v3816 = vpack.c.b16 %v3550, %v3543
    %v3817 = vpack.c.b16 %v3551, %v3544
    %v3818 = vpack.c.b16 %v3559, %v3552
    %v3819 = vpack.c.b16 %v3560, %v3553
    %v3820 = vpack.c.b16 %v3561, %v3554
    %v3821 = vpack.c.b16 %v3562, %v3555
    %v3822 = vpack.c.b16 %v3563, %v3556
    %v3823 = vpack.c.b16 %v3564, %v3557
    %v3824 = vpack.c.b16 %v3565, %v3558
    %v3825 = vpack.c.b16 %v3573, %v3566
    %v3826 = vpack.c.b16 %v3574, %v3567
    %v3827 = vpack.c.b16 %v3575, %v3568
    %v3828 = vpack.c.b16 %v3576, %v3569
    %v3829 = vpack.c.b16 %v3577, %v3570
    %v3830 = vpack.c.b16 %v3578, %v3571
    %v3831 = vpack.c.b16 %v3579, %v3572
    %v3832 = vpack.c.b16 %v3587, %v3580
    %v3833 = vpack.c.b16 %v3588, %v3581
    %v3834 = vpack.c.b16 %v3589, %v3582
    %v3835 = vpack.c.b16 %v3590, %v3583
    %v3836 = vpack.c.b16 %v3591, %v3584
    %v3837 = vpack.c.b16 %v3592, %v3585
    %v3838 = vpack.c.b16 %v3593, %v3586
    %v3839 = vpack.c.b16 %v3601, %v3594
    %v3840 = vpack.c.b16 %v3602, %v3595
    %v3841 = vpack.c.b16 %v3603, %v3596
    %v3842 = vpack.c.b16 %v3604, %v3597
    %v3843 = vpack.c.b16 %v3605, %v3598
    %v3844 = vpack.c.b16 %v3606, %v3599
    %v3845 = vpack.c.b16 %v3607, %v3600
    %v3846 = vpack.c.b16 %v3615, %v3608
    %v3847 = vpack.c.b16 %v3616, %v3609
    %v3848 = vpack.c.b16 %v3617, %v3610
    %v3849 = vpack.c.b16 %v3618, %v3611
    %v3850 = vpack.c.b16 %v3619, %v3612
    %v3851 = vpack.c.b16 %v3620, %v3613
    %v3852 = vpack.c.b16 %v3621, %v3614
    %v3853 = vpack.c.b16 %v3629, %v3622
    %v3854 = vpack.c.b16 %v3630, %v3623
    %v3855 = vpack.c.b16 %v3631, %v3624
    %v3856 = vpack.c.b16 %v3632, %v3625
    %v3857 = vpack.c.b16 %v3633, %v3626
    %v3858 = vpack.c.b16 %v3634, %v3627
    %v3859 = vpack.c.b16 %v3635, %v3628
    %4084 = vmatprep.subr.bf16.mxu0 %v3637
    %4085 = vmatpush1.bf16.msra.mxu0 %v3636
    %4086 = vmatprep.subr.bf16.mxu0 %v3644
    %4087 = vmatpush1.bf16.msra.mxu0 %v3643
    %4088 = vmatprep.subr.bf16.mxu0 %v3651
    %4089 = vmatpush1.bf16.msra.mxu0 %v3650
    %4090 = vmatprep.subr.bf16.mxu0 %v3658
    %4091 = vmatpush1.bf16.msra.mxu0 %v3657
    %4092 = vmatprep.subr.bf16.mxu0 %v3665
    %4093 = vmatpush1.bf16.msra.mxu0 %v3664
    %4094 = vmatprep.subr.bf16.mxu0 %v3672
    %4095 = vmatpush1.bf16.msra.mxu0 %v3671
    %4096 = vmatprep.subr.bf16.mxu0 %v3679
    %4097 = vmatpush1.bf16.msra.mxu0 %v3678
    %4098 = vmatprep.subr.bf16.mxu0 %v3686
    %4099 = vmatpush1.bf16.msra.mxu0 %v3685
    %4100 = vmatprep.subr.bf16.mxu0 %v3693
    %4101 = vmatpush1.bf16.msra.mxu0 %v3692
    %4102 = vmatprep.subr.bf16.mxu0 %v3700
    %4103 = vmatpush1.bf16.msra.mxu0 %v3699
    %4104 = vmatprep.subr.bf16.mxu0 %v3707
    %4105 = vmatpush1.bf16.msra.mxu0 %v3706
    %4106 = vmatprep.subr.bf16.mxu0 %v3714
    %4107 = vmatpush1.bf16.msra.mxu0 %v3713
    %4108 = vmatprep.subr.bf16.mxu0 %v3721
    %4109 = vmatpush1.bf16.msra.mxu0 %v3720
    %4110 = vmatprep.subr.bf16.mxu0 %v3728
    %4111 = vmatpush1.bf16.msra.mxu0 %v3727
    %4112 = vmatprep.subr.bf16.mxu0 %v3735
    %4113 = vmatpush1.bf16.msra.mxu0 %v3734
    %4114 = vmatprep.subr.bf16.mxu0 %v3742
    %4115 = vmatpush1.bf16.msra.mxu0 %v3741
    %4116 = vmatprep.mubr.bf16.mxu0 %v2636
    %4117 = vmatmul.mubr.bf16.gmra.mrb[0].mxu0 %v2635
    %v4118 = vpop.f32.mrb[0].mxu0
    %v4119 = vadd.f32 %v2900, %v4118
    %v4120 = vpop.f32.mrb[0].mxu0
    %v4121 = vadd.f32 %v2904, %v4120
    %v4122 = vpop.f32.mrb[0].mxu0
    %v4123 = vpop.f32.mrb[0].mxu0
    %4124 = vdwg.mxu0
    %4125 = vmatprep.subr.bf16.mxu0 %v3749
    %4126 = vmatpush1.bf16.msra.mxu0 %v3748
    %4127 = vmatprep.subr.bf16.mxu0 %v3756
    %4128 = vmatpush1.bf16.msra.mxu0 %v3755
    %4129 = vmatprep.subr.bf16.mxu0 %v3763
    %4130 = vmatpush1.bf16.msra.mxu0 %v3762
    %4131 = vmatprep.subr.bf16.mxu0 %v3770
    %4132 = vmatpush1.bf16.msra.mxu0 %v3769
    %4133 = vmatprep.subr.bf16.mxu0 %v3777
    %4134 = vmatpush1.bf16.msra.mxu0 %v3776
    %4135 = vmatprep.subr.bf16.mxu0 %v3784
    %4136 = vmatpush1.bf16.msra.mxu0 %v3783
    %4137 = vmatprep.subr.bf16.mxu0 %v3791
    %4138 = vmatpush1.bf16.msra.mxu0 %v3790
    %4139 = vmatprep.subr.bf16.mxu0 %v3798
    %4140 = vmatpush1.bf16.msra.mxu0 %v3797
    %4141 = vmatprep.subr.bf16.mxu0 %v3805
    %4142 = vmatpush1.bf16.msra.mxu0 %v3804
    %4143 = vmatprep.subr.bf16.mxu0 %v3812
    %4144 = vmatpush1.bf16.msra.mxu0 %v3811
    %4145 = vmatprep.subr.bf16.mxu0 %v3819
    %4146 = vmatpush1.bf16.msra.mxu0 %v3818
    %4147 = vmatprep.subr.bf16.mxu0 %v3826
    %4148 = vmatpush1.bf16.msra.mxu0 %v3825
    %4149 = vmatprep.subr.bf16.mxu0 %v3833
    %4150 = vmatpush1.bf16.msra.mxu0 %v3832
    %4151 = vmatprep.subr.bf16.mxu0 %v3840
    %4152 = vmatpush1.bf16.msra.mxu0 %v3839
    %4153 = vmatprep.subr.bf16.mxu0 %v3847
    %4154 = vmatpush1.bf16.msra.mxu0 %v3846
    %4155 = vmatprep.subr.bf16.mxu0 %v3854
    %4156 = vmatpush1.bf16.msra.mxu0 %v3853
    %4157 = vmatprep.mubr.bf16.mxu0 %v2638
    %4158 = vmatmul.mubr.bf16.gmra.mrb[0].mxu0 %v2637
    %v4159 = vpop.f32.mrb[0].mxu0
    %v4160 = vadd.f32 %v4119, %v4159
    %v4161 = vpop.f32.mrb[0].mxu0
    %v4162 = vadd.f32 %v4121, %v4161
    %v4163 = vpop.f32.mrb[0].mxu0
    %v4164 = vpop.f32.mrb[0].mxu0
    %4165 = vdwg.mxu0
    %4166 = vmatprep.subr.bf16.mxu0 %v3639
    %4167 = vmatpush1.bf16.msra.mxu0 %v3638
    %4168 = vmatprep.subr.bf16.mxu0 %v3646
    %4169 = vmatpush1.bf16.msra.mxu0 %v3645
    %4170 = vmatprep.subr.bf16.mxu0 %v3653
    %4171 = vmatpush1.bf16.msra.mxu0 %v3652
    %4172 = vmatprep.subr.bf16.mxu0 %v3660
    %4173 = vmatpush1.bf16.msra.mxu0 %v3659
    %4174 = vmatprep.subr.bf16.mxu0 %v3667
    %4175 = vmatpush1.bf16.msra.mxu0 %v3666
    %4176 = vmatprep.subr.bf16.mxu0 %v3674
    %4177 = vmatpush1.bf16.msra.mxu0 %v3673
    %4178 = vmatprep.subr.bf16.mxu0 %v3681
    %4179 = vmatpush1.bf16.msra.mxu0 %v3680
    %4180 = vmatprep.subr.bf16.mxu0 %v3688
    %4181 = vmatpush1.bf16.msra.mxu0 %v3687
    %4182 = vmatprep.subr.bf16.mxu0 %v3695
    %4183 = vmatpush1.bf16.msra.mxu0 %v3694
    %4184 = vmatprep.subr.bf16.mxu0 %v3702
    %4185 = vmatpush1.bf16.msra.mxu0 %v3701
    %4186 = vmatprep.subr.bf16.mxu0 %v3709
    %4187 = vmatpush1.bf16.msra.mxu0 %v3708
    %4188 = vmatprep.subr.bf16.mxu0 %v3716
    %4189 = vmatpush1.bf16.msra.mxu0 %v3715
    %4190 = vmatprep.subr.bf16.mxu0 %v3723
    %4191 = vmatpush1.bf16.msra.mxu0 %v3722
    %4192 = vmatprep.subr.bf16.mxu0 %v3730
    %4193 = vmatpush1.bf16.msra.mxu0 %v3729
    %4194 = vmatprep.subr.bf16.mxu0 %v3737
    %4195 = vmatpush1.bf16.msra.mxu0 %v3736
    %4196 = vmatprep.subr.bf16.mxu0 %v3744
    %4197 = vmatpush1.bf16.msra.mxu0 %v3743
    %4198 = vmatprep.mubr.bf16.mxu0 %v2636
    %4199 = vmatmul.mubr.bf16.gmra.mrb[0].mxu0 %v2635
    %v4200 = vpop.f32.mrb[0].mxu0
    %v4201 = vadd.f32 %v2908, %v4200
    %v4202 = vpop.f32.mrb[0].mxu0
    %v4203 = vadd.f32 %v2912, %v4202
    %v4204 = vpop.f32.mrb[0].mxu0
    %v4205 = vpop.f32.mrb[0].mxu0
    %4206 = vdwg.mxu0
    %4207 = vmatprep.subr.bf16.mxu0 %v3751
    %4208 = vmatpush1.bf16.msra.mxu0 %v3750
    %4209 = vmatprep.subr.bf16.mxu0 %v3758
    %4210 = vmatpush1.bf16.msra.mxu0 %v3757
    %4211 = vmatprep.subr.bf16.mxu0 %v3765
    %4212 = vmatpush1.bf16.msra.mxu0 %v3764
    %4213 = vmatprep.subr.bf16.mxu0 %v3772
    %4214 = vmatpush1.bf16.msra.mxu0 %v3771
    %4215 = vmatprep.subr.bf16.mxu0 %v3779
    %4216 = vmatpush1.bf16.msra.mxu0 %v3778
    %4217 = vmatprep.subr.bf16.mxu0 %v3786
    %4218 = vmatpush1.bf16.msra.mxu0 %v3785
    %4219 = vmatprep.subr.bf16.mxu0 %v3793
    %4220 = vmatpush1.bf16.msra.mxu0 %v3792
    %4221 = vmatprep.subr.bf16.mxu0 %v3800
    %4222 = vmatpush1.bf16.msra.mxu0 %v3799
    %4223 = vmatprep.subr.bf16.mxu0 %v3807
    %4224 = vmatpush1.bf16.msra.mxu0 %v3806
    %4225 = vmatprep.subr.bf16.mxu0 %v3814
    %4226 = vmatpush1.bf16.msra.mxu0 %v3813
    %4227 = vmatprep.subr.bf16.mxu0 %v3821
    %4228 = vmatpush1.bf16.msra.mxu0 %v3820
    %4229 = vmatprep.subr.bf16.mxu0 %v3828
    %4230 = vmatpush1.bf16.msra.mxu0 %v3827
    %4231 = vmatprep.subr.bf16.mxu0 %v3835
    %4232 = vmatpush1.bf16.msra.mxu0 %v3834
    %4233 = vmatprep.subr.bf16.mxu0 %v3842
    %4234 = vmatpush1.bf16.msra.mxu0 %v3841
    %4235 = vmatprep.subr.bf16.mxu0 %v3849
    %4236 = vmatpush1.bf16.msra.mxu0 %v3848
    %4237 = vmatprep.subr.bf16.mxu0 %v3856
    %4238 = vmatpush1.bf16.msra.mxu0 %v3855
    %4239 = vmatprep.mubr.bf16.mxu0 %v2638
    %4240 = vmatmul.mubr.bf16.gmra.mrb[0].mxu0 %v2637
    %v4241 = vpop.f32.mrb[0].mxu0
    %v4242 = vadd.f32 %v4201, %v4241
    %v4243 = vpop.f32.mrb[0].mxu0
    %v4244 = vadd.f32 %v4203, %v4243
    %v4245 = vpop.f32.mrb[0].mxu0
    %v4246 = vpop.f32.mrb[0].mxu0
    %4247 = vdwg.mxu0
    %4248 = vmatprep.subr.bf16.mxu0 %v3641
    %4249 = vmatpush1.bf16.msra.mxu0 %v3640
    %4250 = vmatprep.subr.bf16.mxu0 %v3648
    %4251 = vmatpush1.bf16.msra.mxu0 %v3647
    %4252 = vmatprep.subr.bf16.mxu0 %v3655
    %4253 = vmatpush1.bf16.msra.mxu0 %v3654
    %4254 = vmatprep.subr.bf16.mxu0 %v3662
    %4255 = vmatpush1.bf16.msra.mxu0 %v3661
    %4256 = vmatprep.subr.bf16.mxu0 %v3669
    %4257 = vmatpush1.bf16.msra.mxu0 %v3668
    %4258 = vmatprep.subr.bf16.mxu0 %v3676
    %4259 = vmatpush1.bf16.msra.mxu0 %v3675
    %4260 = vmatprep.subr.bf16.mxu0 %v3683
    %4261 = vmatpush1.bf16.msra.mxu0 %v3682
    %4262 = vmatprep.subr.bf16.mxu0 %v3690
    %4263 = vmatpush1.bf16.msra.mxu0 %v3689
    %4264 = vmatprep.subr.bf16.mxu0 %v3697
    %4265 = vmatpush1.bf16.msra.mxu0 %v3696
    %4266 = vmatprep.subr.bf16.mxu0 %v3704
    %4267 = vmatpush1.bf16.msra.mxu0 %v3703
    %4268 = vmatprep.subr.bf16.mxu0 %v3711
    %4269 = vmatpush1.bf16.msra.mxu0 %v3710
    %4270 = vmatprep.subr.bf16.mxu0 %v3718
    %4271 = vmatpush1.bf16.msra.mxu0 %v3717
    %4272 = vmatprep.subr.bf16.mxu0 %v3725
    %4273 = vmatpush1.bf16.msra.mxu0 %v3724
    %4274 = vmatprep.subr.bf16.mxu0 %v3732
    %4275 = vmatpush1.bf16.msra.mxu0 %v3731
    %4276 = vmatprep.subr.bf16.mxu0 %v3739
    %4277 = vmatpush1.bf16.msra.mxu0 %v3738
    %4278 = vmatprep.subr.bf16.mxu0 %v3746
    %4279 = vmatpush1.bf16.msra.mxu0 %v3745
    %4280 = vmatprep.mubr.bf16.mxu0 %v2636
    %4281 = vmatmul.mubr.bf16.gmra.mrb[0].mxu0 %v2635
    %v4282 = vpop.f32.mrb[0].mxu0
    %v4283 = vadd.f32 %v2916, %v4282
    %v4284 = vpop.f32.mrb[0].mxu0
    %v4285 = vadd.f32 %v2920, %v4284
    %v4286 = vpop.f32.mrb[0].mxu0
    %v4287 = vpop.f32.mrb[0].mxu0
    %4288 = vdwg.mxu0
    %4289 = vmatprep.subr.bf16.mxu0 %v3753
    %4290 = vmatpush1.bf16.msra.mxu0 %v3752
    %4291 = vmatprep.subr.bf16.mxu0 %v3760
    %4292 = vmatpush1.bf16.msra.mxu0 %v3759
    %4293 = vmatprep.subr.bf16.mxu0 %v3767
    %4294 = vmatpush1.bf16.msra.mxu0 %v3766
    %4295 = vmatprep.subr.bf16.mxu0 %v3774
    %4296 = vmatpush1.bf16.msra.mxu0 %v3773
    %4297 = vmatprep.subr.bf16.mxu0 %v3781
    %4298 = vmatpush1.bf16.msra.mxu0 %v3780
    %4299 = vmatprep.subr.bf16.mxu0 %v3788
    %4300 = vmatpush1.bf16.msra.mxu0 %v3787
    %4301 = vmatprep.subr.bf16.mxu0 %v3795
    %4302 = vmatpush1.bf16.msra.mxu0 %v3794
    %4303 = vmatprep.subr.bf16.mxu0 %v3802
    %4304 = vmatpush1.bf16.msra.mxu0 %v3801
    %4305 = vmatprep.subr.bf16.mxu0 %v3809
    %4306 = vmatpush1.bf16.msra.mxu0 %v3808
    %4307 = vmatprep.subr.bf16.mxu0 %v3816
    %4308 = vmatpush1.bf16.msra.mxu0 %v3815
    %4309 = vmatprep.subr.bf16.mxu0 %v3823
    %4310 = vmatpush1.bf16.msra.mxu0 %v3822
    %4311 = vmatprep.subr.bf16.mxu0 %v3830
    %4312 = vmatpush1.bf16.msra.mxu0 %v3829
    %4313 = vmatprep.subr.bf16.mxu0 %v3837
    %4314 = vmatpush1.bf16.msra.mxu0 %v3836
    %4315 = vmatprep.subr.bf16.mxu0 %v3844
    %4316 = vmatpush1.bf16.msra.mxu0 %v3843
    %4317 = vmatprep.subr.bf16.mxu0 %v3851
    %4318 = vmatpush1.bf16.msra.mxu0 %v3850
    %4319 = vmatprep.subr.bf16.mxu0 %v3858
    %4320 = vmatpush1.bf16.msra.mxu0 %v3857
    %4321 = vmatprep.mubr.bf16.mxu0 %v2638
    %4322 = vmatmul.mubr.bf16.gmra.mrb[0].mxu0 %v2637
    %v4323 = vpop.f32.mrb[0].mxu0
    %v4324 = vadd.f32 %v4283, %v4323
    %v4325 = vpop.f32.mrb[0].mxu0
    %v4326 = vadd.f32 %v4285, %v4325
    %v4327 = vpop.f32.mrb[0].mxu0
    %v4328 = vpop.f32.mrb[0].mxu0
    %4329 = vdwg.mxu0
    %4330 = vmatprep.subr.bf16.mxu0 0
    %4331 = vmatpush1.bf16.msra.mxu0 %v3642
    %4332 = vmatprep.subr.bf16.mxu0 0
    %4333 = vmatpush1.bf16.msra.mxu0 %v3649
    %4334 = vmatprep.subr.bf16.mxu0 0
    %4335 = vmatpush1.bf16.msra.mxu0 %v3656
    %4336 = vmatprep.subr.bf16.mxu0 0
    %4337 = vmatpush1.bf16.msra.mxu0 %v3663
    %4338 = vmatprep.subr.bf16.mxu0 0
    %4339 = vmatpush1.bf16.msra.mxu0 %v3670
    %4340 = vmatprep.subr.bf16.mxu0 0
    %4341 = vmatpush1.bf16.msra.mxu0 %v3677
    %4342 = vmatprep.subr.bf16.mxu0 0
    %4343 = vmatpush1.bf16.msra.mxu0 %v3684
    %4344 = vmatprep.subr.bf16.mxu0 0
    %4345 = vmatpush1.bf16.msra.mxu0 %v3691
    %4346 = vmatprep.subr.bf16.mxu0 0
    %4347 = vmatpush1.bf16.msra.mxu0 %v3698
    %4348 = vmatprep.subr.bf16.mxu0 0
    %4349 = vmatpush1.bf16.msra.mxu0 %v3705
    %4350 = vmatprep.subr.bf16.mxu0 0
    %4351 = vmatpush1.bf16.msra.mxu0 %v3712
    %4352 = vmatprep.subr.bf16.mxu0 0
    %4353 = vmatpush1.bf16.msra.mxu0 %v3719
    %4354 = vmatprep.subr.bf16.mxu0 0
    %4355 = vmatpush1.bf16.msra.mxu0 %v3726
    %4356 = vmatprep.subr.bf16.mxu0 0
    %4357 = vmatpush1.bf16.msra.mxu0 %v3733
    %4358 = vmatprep.subr.bf16.mxu0 0
    %4359 = vmatpush1.bf16.msra.mxu0 %v3740
    %4360 = vmatprep.subr.bf16.mxu0 0
    %4361 = vmatpush1.bf16.msra.mxu0 %v3747
    %4362 = vmatprep.mubr.bf16.mxu0 %v2636
    %4363 = vmatmul.mubr.bf16.gmra.mrb[0].mxu0 %v2635
    %v4364 = vpop.f32.mrb[0].mxu0
    %v4365 = vadd.f32 %v2924, %v4364
    %v4366 = vpop.f32.mrb[0].mxu0
    %v4367 = vpop.f32.mrb[0].mxu0
    %v4368 = vpop.f32.mrb[0].mxu0
    %4369 = vdwg.mxu0
    %4370 = vmatprep.subr.bf16.mxu0 0
    %4371 = vmatpush1.bf16.msra.mxu0 %v3754
    %4372 = vmatprep.subr.bf16.mxu0 0
    %4373 = vmatpush1.bf16.msra.mxu0 %v3761
    %4374 = vmatprep.subr.bf16.mxu0 0
    %4375 = vmatpush1.bf16.msra.mxu0 %v3768
    %4376 = vmatprep.subr.bf16.mxu0 0
    %4377 = vmatpush1.bf16.msra.mxu0 %v3775
    %4378 = vmatprep.subr.bf16.mxu0 0
    %4379 = vmatpush1.bf16.msra.mxu0 %v3782
    %4380 = vmatprep.subr.bf16.mxu0 0
    %4381 = vmatpush1.bf16.msra.mxu0 %v3789
    %4382 = vmatprep.subr.bf16.mxu0 0
    %4383 = vmatpush1.bf16.msra.mxu0 %v3796
    %4384 = vmatprep.subr.bf16.mxu0 0
    %4385 = vmatpush1.bf16.msra.mxu0 %v3803
    %4386 = vmatprep.subr.bf16.mxu0 0
    %4387 = vmatpush1.bf16.msra.mxu0 %v3810
    %4388 = vmatprep.subr.bf16.mxu0 0
    %4389 = vmatpush1.bf16.msra.mxu0 %v3817
    %4390 = vmatprep.subr.bf16.mxu0 0
    %4391 = vmatpush1.bf16.msra.mxu0 %v3824
    %4392 = vmatprep.subr.bf16.mxu0 0
    %4393 = vmatpush1.bf16.msra.mxu0 %v3831
    %4394 = vmatprep.subr.bf16.mxu0 0
    %4395 = vmatpush1.bf16.msra.mxu0 %v3838
    %4396 = vmatprep.subr.bf16.mxu0 0
    %4397 = vmatpush1.bf16.msra.mxu0 %v3845
    %4398 = vmatprep.subr.bf16.mxu0 0
    %4399 = vmatpush1.bf16.msra.mxu0 %v3852
    %4400 = vmatprep.subr.bf16.mxu0 0
    %4401 = vmatpush1.bf16.msra.mxu0 %v3859
    %4402 = vmatprep.mubr.bf16.mxu0 %v2638
    %4403 = vmatmul.mubr.bf16.gmra.mrb[0].mxu0 %v2637
    %v4404 = vpop.f32.mrb[0].mxu0
    %v4405 = vadd.f32 %v4365, %v4404
    %v4406 = vpop.f32.mrb[0].mxu0
    %v4407 = vpop.f32.mrb[0].mxu0
    %v4408 = vpop.f32.mrb[0].mxu0
    %4409 = vdwg.mxu0
    %v4410 = vxor.u32 %v4160, 2147483648
    %v4411 = vxor.u32 %v4162, 2147483648
    %v4412 = vxor.u32 %v4242, 2147483648
    %v4413 = vxor.u32 %v4244, 2147483648
    %v4414 = vxor.u32 %v4324, 2147483648
    %v4415 = vxor.u32 %v4326, 2147483648
    %v4416 = vxor.u32 %v4405, 2147483648
    %v4417 = vmul.f32 %v4410, 1.442695
    %v4418 = vpow.pop %v4417
    %v4419 = vmul.f32 %v4411, 1.442695
    %v4420 = vpow.pop %v4419
    %v4421 = vmul.f32 %v4412, 1.442695
    %v4422 = vpow.pop %v4421
    %v4423 = vmul.f32 %v4413, 1.442695
    %v4424 = vpow.pop %v4423
    %v4425 = vmul.f32 %v4414, 1.442695
    %v4426 = vpow.pop %v4425
    %v4427 = vmul.f32 %v4415, 1.442695
    %v4428 = vpow.pop %v4427
    %v4429 = vmul.f32 %v4416, 1.442695
    %v4430 = vpow.pop %v4429
    %v4431 = vadd.f32 %v4418, 1.0
    %v4432 = vadd.f32 %v4420, 1.0
    %v4433 = vadd.f32 %v4422, 1.0
    %v4434 = vadd.f32 %v4424, 1.0
    %v4435 = vadd.f32 %v4426, 1.0
    %v4436 = vadd.f32 %v4428, 1.0
    %v4437 = vadd.f32 %v4430, 1.0
    %v4438 = vrcp.pop %v4431
    %v4439 = vmul.f32 1.0, %v4438
    %v4440 = vrcp.pop %v4432
    %v4441 = vmul.f32 1.0, %v4440
    %v4442 = vrcp.pop %v4433
    %v4443 = vmul.f32 1.0, %v4442
    %v4444 = vrcp.pop %v4434
    %v4445 = vmul.f32 1.0, %v4444
    %v4446 = vrcp.pop %v4435
    %v4447 = vmul.f32 1.0, %v4446
    %v4448 = vrcp.pop %v4436
    %v4449 = vmul.f32 1.0, %v4448
    %v4450 = vrcp.pop %v4437
    %v4451 = vmul.f32 1.0, %v4450
    %4452 = vst [vmem:[#allocation13] sm:$0xff] %v4439
    %4453 = vst [vmem:[#allocation13 + $0x8] sm:$0xff] %v4441
    %4454 = vst [vmem:[#allocation13 + $0x10] sm:$0xff] %v4443
    %4455 = vst [vmem:[#allocation13 + $0x18] sm:$0xff] %v4445
    %4456 = vst [vmem:[#allocation13 + $0x20] sm:$0xff] %v4447
    %4457 = vst [vmem:[#allocation13 + $0x28] sm:$0xff] %v4449
    %4458 = vst [vmem:[#allocation13 + $0x30] sm:$0xff] %v4451
    %4459 = vst [vmem:[#allocation14] sm:$0xff] %v2322
    %4460 = vst [vmem:[#allocation16] sm:$0xff] %v2324
    // Predicated region
    $region66: #{tpu_custom_call.1} parent=1 // pred_check
      _
    $region67: #{tpu_custom_call.1} parent=1 // pred_check_branch
      %4462 = sbr.rel (0) target = $region69
    $region68: #{tpu_custom_call.1} parent=1 // pred_region
      %s4464 = ssub.s32 896, 896
      %4465 = vsyncadd [#allocation4], %s4464
      %s4467 = sshll.u32 [#allocation13], 4
      %s4468 = int_to_ptr.vmem [resolvable:$true] %s4467
      %4470 = dma.vmem_to_hbm [thread:$0]  %s4468, 896, %s10, [#allocation4]
    $region69: #{tpu_custom_call.1} parent=1 // pred_fallthru
      _
    // Predicated region
    $region70: #{tpu_custom_call.1} parent=1 // pred_check
      _
    $region71: #{tpu_custom_call.1} parent=1 // pred_check_branch
      %4472 = sbr.rel (0) target = $region73
    $region72: #{tpu_custom_call.1} parent=1 // pred_region
      %s4474 = ssub.s32 128, 128
      %4475 = vsyncadd [#allocation15], %s4474
      %s4477 = sshll.u32 [#allocation14], 4
      %s4478 = int_to_ptr.vmem [resolvable:$true] %s4477
      %4480 = dma.vmem_to_hbm [thread:$0]  %s4478, 128, %s11, [#allocation15]
    $region73: #{tpu_custom_call.1} parent=1 // pred_fallthru
      _
    // Predicated region
    $region74: #{tpu_custom_call.1} parent=1 // pred_check
      _
    $region75: #{tpu_custom_call.1} parent=1 // pred_check_branch
      %4482 = sbr.rel (0) target = $region77
    $region76: #{tpu_custom_call.1} parent=1 // pred_region
      %s4484 = ssub.s32 128, 128
      %4485 = vsyncadd [#allocation15], %s4484
      %s4487 = sshll.u32 [#allocation16], 4
      %s4488 = int_to_ptr.vmem [resolvable:$true] %s4487
      %4490 = dma.vmem_to_hbm [thread:$0]  %s4488, 128, %s12, [#allocation15]
    $region77: #{tpu_custom_call.1} parent=1 // pred_fallthru
      _
    // Predicated region
    $region78: #{tpu_custom_call.1} parent=1 // pred_check
      _
    $region79: #{tpu_custom_call.1} parent=1 // pred_check_branch
      %4492 = sbr.rel (0) target = $region81
    $region80: #{tpu_custom_call.1} parent=1 // pred_region
      %4493 = dma.done [#allocation4], 896
    $region81: #{tpu_custom_call.1} parent=1 // pred_fallthru
      _
    // Predicated region
    $region82: #{tpu_custom_call.1} parent=1 // pred_check
      _
    $region83: #{tpu_custom_call.1} parent=1 // pred_check_branch
      %4495 = sbr.rel (0) target = $region85
    $region84: #{tpu_custom_call.1} parent=1 // pred_region
      %4496 = dma.done [#allocation15], 128
    $region85: #{tpu_custom_call.1} parent=1 // pred_fallthru
      _
    // Predicated region
    $region86: #{tpu_custom_call.1} parent=1 // pred_check
      _
    $region87: #{tpu_custom_call.1} parent=1 // pred_check_branch
      %4498 = sbr.rel (0) target = $region89
    $region88: #{tpu_custom_call.1} parent=1 // pred_region
      %4499 = dma.done [#allocation15], 128
    $region89: #{tpu_custom_call.1} parent=1 // pred_fallthru
      _
    %4500 = vsyncpa [#allocation3], 1
    %4501 = vsyncpa [#allocation6], 1
    %4502 = vsyncpa [#allocation9], 1
    %4503 = vsyncpa [#allocation12], 1
    %4504 = vsyncpa [#allocation4], 1
    %4505 = vsyncpa [#allocation15], 1

</llo_original>
